<compile_context>
chip_gen: v6e
topology: v6e:2x2x1
jax: 0.10.0
libtpu: 0.0.40
codegen_flags: <defaults>
</compile_context>

<pallas_src>
import functools

import jax
import jax.numpy as jnp
import numpy as np
from jax.experimental import pallas as pl
from jax.experimental.pallas import tpu as pltpu


# ----------------------------------------------------------------------------
# small helpers
# ----------------------------------------------------------------------------
def _round_up(x, m):
    return ((x + m - 1) // m) * m


def _largest_divisor_leq(n, cap, step=1):
    """Largest multiple of `step` that divides n and is <= cap (n % step == 0)."""
    d = min(cap, n)
    d -= d % step
    d = max(d, step)
    while d > step and n % d != 0:
        d -= step
    return d


_VMEM_LIMIT = 48 * 1024 * 1024  # fits v7x's 64 MiB physical VMEM with headroom


# ----------------------------------------------------------------------------
# Pallas kernel: one LSTM layer, T_chunk timesteps per grid step.
# grid = (batch_blocks ["parallel"], time_chunks ["arbitrary"]); h/c carried in
# VMEM scratch across time chunks, re-initialized from h0/c0 at t_chunk == 0.
# ----------------------------------------------------------------------------
def _lstm_layer_kernel(x_ref, h0_ref, c0_ref, wih_ref, whh_ref, b_ref,
                       out_ref, hT_ref, cT_ref,
                       h_sc, c_sc, xp_sc, *, nhid, t_chunk):
    ti = pl.program_id(1)

    @pl.when(ti == 0)
    def _():
        h_sc[...] = h0_ref[...]
        c_sc[...] = c0_ref[...]

    T, B, Din = x_ref.shape
    H4 = 4 * nhid

    # (1) Time-independent input projection for the whole chunk: one large MXU
    #     matmul (T*B, Din) @ (Din, 4H) with the combined bias folded in.
    x_flat = x_ref[...].reshape(T * B, Din)
    xp = jnp.dot(x_flat, wih_ref[...],
                 preferred_element_type=jnp.float32) + b_ref[...]
    xp_sc[...] = xp.reshape(T, B, H4)

    whh = whh_ref[...]                      # hoisted weight load (reused T times)

    # (2) Sequential recurrence: one small matmul + gates per timestep.
    #     Gate slabs are 128-lane aligned (nhid padded), so slicing is free.
    def step(t, carry):
        h, c = carry
        gates = xp_sc[t] + jnp.dot(h.astype(whh.dtype), whh,
                                   preferred_element_type=jnp.float32)
        i_g = jax.nn.sigmoid(gates[:, 0 * nhid:1 * nhid])
        f_g = jax.nn.sigmoid(gates[:, 1 * nhid:2 * nhid])
        g_g = jnp.tanh(gates[:, 2 * nhid:3 * nhid])
        o_g = jax.nn.sigmoid(gates[:, 3 * nhid:4 * nhid])
        c_new = f_g * c + i_g * g_g
        h_new = o_g * jnp.tanh(c_new)
        out_ref[t] = h_new.astype(out_ref.dtype)
        return h_new, c_new

    h, c = jax.lax.fori_loop(0, t_chunk, step, (h_sc[...], c_sc[...]),
                             unroll=True)
    h_sc[...] = h
    c_sc[...] = c
    # Written every chunk (cheap VMEM copy); HBM writeback happens when the
    # batch-block index changes / at grid end, which holds the final state.
    hT_ref[...] = h
    cT_ref[...] = c


def lstm_layer(x, h0, c0, wih_t, whh_t, b, *, t_chunk, b_blk):
    """x: (S, Bp, Din), h0/c0: (Bp, Hp), wih_t: (Din, 4Hp), whh_t: (Hp, 4Hp),
    b: (1, 4Hp).  All dims pre-padded to TPU tile boundaries."""
    S, Bp, Din = x.shape
    Hp = h0.shape[-1]
    n_b = Bp // b_blk
    n_t = S // t_chunk
    kernel = functools.partial(_lstm_layer_kernel, nhid=Hp, t_chunk=t_chunk)
    out, hT, cT = pl.pallas_call(
        kernel,
        out_shape=(
            jax.ShapeDtypeStruct((S, Bp, Hp), x.dtype),
            jax.ShapeDtypeStruct((Bp, Hp), jnp.float32),
            jax.ShapeDtypeStruct((Bp, Hp), jnp.float32),
        ),
        grid_spec=pltpu.PrefetchScalarGridSpec(
            num_scalar_prefetch=0,
            grid=(n_b, n_t),
            in_specs=[
                pl.BlockSpec((t_chunk, b_blk, Din), lambda bi, ti: (ti, bi, 0)),
                pl.BlockSpec((b_blk, Hp), lambda bi, ti: (bi, 0)),
                pl.BlockSpec((b_blk, Hp), lambda bi, ti: (bi, 0)),
                pl.BlockSpec((Din, 4 * Hp), lambda bi, ti: (0, 0)),
                pl.BlockSpec((Hp, 4 * Hp), lambda bi, ti: (0, 0)),
                pl.BlockSpec((1, 4 * Hp), lambda bi, ti: (0, 0)),
            ],
            out_specs=[
                pl.BlockSpec((t_chunk, b_blk, Hp), lambda bi, ti: (ti, bi, 0)),
                pl.BlockSpec((b_blk, Hp), lambda bi, ti: (bi, 0)),
                pl.BlockSpec((b_blk, Hp), lambda bi, ti: (bi, 0)),
            ],
            scratch_shapes=[
                pltpu.VMEM((b_blk, Hp), jnp.float32),            # h carry
                pltpu.VMEM((b_blk, Hp), jnp.float32),            # c carry
                pltpu.VMEM((t_chunk, b_blk, 4 * Hp), jnp.float32),  # input proj
            ],
        ),
        compiler_params=pltpu.CompilerParams(
            # batch blocks are independent (megacore-shardable on v7x);
            # time must stay sequential for the h/c carry.
            dimension_semantics=("parallel", "arbitrary"),
            vmem_limit_bytes=_VMEM_LIMIT),
    )(x, h0, c0, wih_t, whh_t, b)
    return out, hT, cT


# ----------------------------------------------------------------------------
# Pallas kernel: decoder linear, tiled GEMM (rows x vocab) with parallel grid.
# ----------------------------------------------------------------------------
def _decoder_kernel(x_ref, w_ref, b_ref, o_ref):
    o_ref[...] = (jnp.dot(x_ref[...], w_ref[...],
                          preferred_element_type=jnp.float32)
                  + b_ref[...]).astype(o_ref.dtype)


def decoder_linear(x2d, w_t, b, *, tile_n, tile_v):
    """x2d: (N, Hp), w_t: (Hp, Vp), b: (1, Vp) -> (N, Vp)."""
    N, H = x2d.shape
    V = w_t.shape[-1]
    grid = (N // tile_n, V // tile_v)
    cost = pl.CostEstimate(
        flops=2 * N * H * V,
        transcendentals=0,
        bytes_accessed=(x2d.size * x2d.dtype.itemsize
                        + w_t.size * w_t.dtype.itemsize
                        + b.size * b.dtype.itemsize
                        + N * V * 4))
    return pl.pallas_call(
        _decoder_kernel,
        out_shape=jax.ShapeDtypeStruct((N, V), jnp.float32),
        grid_spec=pltpu.PrefetchScalarGridSpec(
            num_scalar_prefetch=0,
            grid=grid,
            in_specs=[
                pl.BlockSpec((tile_n, H), lambda i, j: (i, 0)),
                pl.BlockSpec((H, tile_v), lambda i, j: (0, j)),
                pl.BlockSpec((1, tile_v), lambda i, j: (0, j)),
            ],
            out_specs=pl.BlockSpec((tile_n, tile_v), lambda i, j: (i, j)),
        ),
        compiler_params=pltpu.CompilerParams(
            dimension_semantics=("parallel", "parallel"),
            vmem_limit_bytes=_VMEM_LIMIT),
        cost_estimate=cost,
    )(x2d, w_t, b)


# ----------------------------------------------------------------------------
# Parameters: PyTorch-style init + one-time prep (transpose / pad / gate align).
# ----------------------------------------------------------------------------
def init_params(key, ntoken, ninp, nhid, nlayers):
    initrange = 0.1
    keys = jax.random.split(key, 2 + 4 * nlayers)
    params = {
        "emb": jax.random.uniform(keys[0], (ntoken, ninp), jnp.float32,
                                  -initrange, initrange),
        "dec_w": jax.random.uniform(keys[1], (ntoken, nhid), jnp.float32,
                                    -initrange, initrange),
        "dec_b": jnp.zeros((ntoken,), jnp.float32),
        "lstm": [],
    }
    k = 1.0 / jnp.sqrt(jnp.float32(nhid))     # PyTorch LSTM default init range
    for l in range(nlayers):
        din = ninp if l == 0 else nhid
        kw = keys[2 + 4 * l: 2 + 4 * (l + 1)]
        params["lstm"].append({
            "w_ih": jax.random.uniform(kw[0], (4 * nhid, din), jnp.float32, -k, k),
            "w_hh": jax.random.uniform(kw[1], (4 * nhid, nhid), jnp.float32, -k, k),
            "b_ih": jax.random.uniform(kw[2], (4 * nhid,), jnp.float32, -k, k),
            "b_hh": jax.random.uniform(kw[3], (4 * nhid,), jnp.float32, -k, k),
        })
    return params


def prepare_params(params, *, compute_dtype=jnp.float32):
    """One-time prep: transpose weights, pre-sum biases, pad every matmul
    dimension to TPU tile boundaries (lanes 128 / sublanes 8) and place each
    LSTM gate slab on its own 128-aligned column block (gate order i,f,g,o).
    Zero padding is exact: padded hidden lanes stay exactly 0 through the
    recurrence and contribute 0 to every matmul.
    (compute_dtype=jnp.bfloat16 halves DMA/VMEM traffic on v6e/v7x.)"""
    ntoken, ninp = params["emb"].shape
    nhid = params["lstm"][0]["w_hh"].shape[1]
    nlayers = len(params["lstm"])

    Dp = _round_up(ninp, 128)
    Hp = _round_up(nhid, 128)
    Vp = _round_up(ntoken, 128)

    emb = jnp.zeros((ntoken, Dp), compute_dtype)
    emb = emb.at[:, :ninp].set(params["emb"].astype(compute_dtype))

    def pad_gates_w(w, din, din_p):
        w_t = jnp.transpose(w).astype(compute_dtype)        # (din, 4*nhid)
        out = jnp.zeros((din_p, 4 * Hp), compute_dtype)
        for g in range(4):
            out = out.at[:din, g * Hp:g * Hp + nhid].set(
                w_t[:, g * nhid:(g + 1) * nhid])
        return out

    def pad_gates_b(bvec):
        out = jnp.zeros((1, 4 * Hp), jnp.float32)
        for g in range(4):
            out = out.at[0, g * Hp:g * Hp + nhid].set(
                bvec[g * nhid:(g + 1) * nhid])
        return out

    layers = []
    for l in range(nlayers):
        p = params["lstm"][l]
        din = ninp if l == 0 else nhid
        din_p = Dp if l == 0 else Hp
        layers.append({
            "wih_t": pad_gates_w(p["w_ih"], din, din_p),
            "whh_t": pad_gates_w(p["w_hh"], nhid, Hp),
            "b": pad_gates_b(p["b_ih"] + p["b_hh"]),
        })

    dec_w_t = jnp.zeros((Hp, Vp), compute_dtype)
    dec_w_t = dec_w_t.at[:nhid, :ntoken].set(
        jnp.transpose(params["dec_w"]).astype(compute_dtype))
    dec_b = jnp.zeros((1, Vp), jnp.float32).at[0, :ntoken].set(params["dec_b"])

    prep = {"emb": emb, "layers": layers, "dec_w_t": dec_w_t, "dec_b": dec_b}
    dims = {"ntoken": ntoken, "ninp": ninp, "nhid": nhid, "nlayers": nlayers,
            "Dp": Dp, "Hp": Hp, "Vp": Vp}
    return prep, dims


# ----------------------------------------------------------------------------
# Forward pass.
# ----------------------------------------------------------------------------
def rnn_model_forward(prep, dims, tokens, hidden, *, t_chunk_max=16):
    """tokens: (S, B) int32; hidden: (h, c) each (nlayers, B, nhid)."""
    ntoken, nhid, nlayers = dims["ntoken"], dims["nhid"], dims["nlayers"]
    Hp, Vp = dims["Hp"], dims["Vp"]

    h0_all, c0_all = hidden
    S, B = tokens.shape
    Bp = _round_up(max(B, 8), 8)

    # Embedding lookup (gather) in plain JAX; dropout is identity in eval mode.
    # TODO(synk): embedding gather not fused into the layer-0 LSTM kernel.
    emb = jnp.take(prep["emb"], tokens, axis=0)          # (S, B, Dp)
    if Bp != B:
        emb = jnp.pad(emb, ((0, 0), (0, Bp - B), (0, 0)))

    h0p = jnp.pad(h0_all.astype(jnp.float32),
                  ((0, 0), (0, Bp - B), (0, Hp - nhid)))
    c0p = jnp.pad(c0_all.astype(jnp.float32),
                  ((0, 0), (0, Bp - B), (0, Hp - nhid)))

    t_chunk = _largest_divisor_leq(S, min(t_chunk_max, S))
    b_blk = Bp // 2 if (Bp >= 16 and Bp % 16 == 0) else Bp   # 2 blocks => 2 TCs

    x = emb
    h_fin, c_fin = [], []
    for l in range(nlayers):
        lw = prep["layers"][l]
        x, hT, cT = lstm_layer(x, h0p[l], c0p[l],
                               lw["wih_t"], lw["whh_t"], lw["b"],
                               t_chunk=t_chunk, b_blk=b_blk)
        h_fin.append(hT[:B, :nhid])
        c_fin.append(cT[:B, :nhid])
        # TODO(synk): inter-layer dropout omitted (identity in eval mode).

    # Decoder: tiled GEMM over (rows = S*Bp, vocab = Vp).
    N = S * Bp
    x2d = x.reshape(N, Hp)
    tile_n = _largest_divisor_leq(N, 256, 8)
    tile_v = _largest_divisor_leq(Vp, 1024, 128)
    decoded = decoder_linear(x2d, prep["dec_w_t"], prep["dec_b"],
                             tile_n=tile_n, tile_v=tile_v)
    decoded = decoded.reshape(S, Bp, Vp)[:, :B, :ntoken]

    new_hidden = (jnp.stack(h_fin, axis=0), jnp.stack(c_fin, axis=0))
    return decoded, new_hidden


# ----------------------------------------------------------------------------
# Pure-JAX reference (for a numerical sanity check).
# ----------------------------------------------------------------------------
def reference_forward(params, tokens, hidden):
    hi = jax.lax.Precision.HIGHEST
    h_all, c_all = hidden
    x = jnp.take(params["emb"], tokens, axis=0)
    h_fin, c_fin = [], []
    for p in params["lstm"]:
        w_ih, w_hh = p["w_ih"], p["w_hh"]
        b = p["b_ih"] + p["b_hh"]
        H = w_hh.shape[1]
        li = len(h_fin)

        def cell(carry, x_t, w_ih=w_ih, w_hh=w_hh, b=b, H=H):
            h, c = carry
            gates = (jnp.matmul(x_t, w_ih.T, precision=hi)
                     + jnp.matmul(h, w_hh.T, precision=hi) + b)
            i = jax.nn.sigmoid(gates[:, 0 * H:1 * H])
            f = jax.nn.sigmoid(gates[:, 1 * H:2 * H])
            g = jnp.tanh(gates[:, 2 * H:3 * H])
            o = jax.nn.sigmoid(gates[:, 3 * H:4 * H])
            c = f * c + i * g
            h = o * jnp.tanh(c)
            return (h, c), h

        (hT, cT), ys = jax.lax.scan(cell, (h_all[li], c_all[li]), x)
        x = ys
        h_fin.append(hT)
        c_fin.append(cT)
    S, B, H = x.shape
    dec = (jnp.matmul(x.reshape(S * B, H), params["dec_w"].T, precision=hi)
           + params["dec_b"]).reshape(S, B, -1)
    return dec, (jnp.stack(h_fin, axis=0), jnp.stack(c_fin, axis=0))


if __name__ == "__main__":
    ntoken, ninp, nhid, nlayers = 64, 32, 32, 2
    seq_len, batch = 8, 4

    key = jax.random.PRNGKey(0)
    pkey, tkey = jax.random.split(key)
    params = init_params(pkey, ntoken, ninp, nhid, nlayers)
    prep, dims = prepare_params(params)          # one-time weight prep

    tokens = jax.random.randint(tkey, (seq_len, batch), 0, ntoken, jnp.int32)
    hidden = (jnp.zeros((nlayers, batch, nhid), jnp.float32),
              jnp.zeros((nlayers, batch, nhid), jnp.float32))

    forward = jax.jit(lambda p, t, h: rnn_model_forward(p, dims, t, h))
    decoded, (h_out, c_out) = forward(prep, tokens, hidden)
    jax.block_until_ready((decoded, h_out, c_out))

    assert decoded.shape == (seq_len, batch, ntoken)
    assert h_out.shape == (nlayers, batch, nhid)
    assert c_out.shape == (nlayers, batch, nhid)

    # Numerical sanity check against a plain-JAX reference.
    ref_dec, (ref_h, ref_c) = reference_forward(params, tokens, hidden)
    np.testing.assert_allclose(np.asarray(decoded), np.asarray(ref_dec),
                               atol=5e-3, rtol=5e-3)
    np.testing.assert_allclose(np.asarray(h_out), np.asarray(ref_h),
                               atol=5e-3, rtol=5e-3)
    np.testing.assert_allclose(np.asarray(c_out), np.asarray(ref_c),
                               atol=5e-3, rtol=5e-3)

    print("KERNEL_OK")
</pallas_src>

<mosaic_0001>
module attributes {stable_mosaic.version = 11 : i64} {
  func.func @_decoder_kernel(%arg0: i32, %arg1: i32, %arg2: memref<64x128xf32, #tpu.memory_space<vmem>>, %arg3: memref<128x128xf32, #tpu.memory_space<vmem>>, %arg4: memref<1x128xf32, #tpu.memory_space<vmem>>, %arg5: memref<64x128xf32, #tpu.memory_space<vmem>>) attributes {dimension_semantics = [#tpu.dimension_semantics<parallel>, #tpu.dimension_semantics<parallel>], iteration_bounds = array<i64: 1, 1>, scalar_prefetch = 0 : i64, scratch_operands = 0 : i64, tpu.core_type = #tpu.core_type<tc>, window_params = [{transform_indices = @transform_0, window_bounds = array<i64: 64, 128>}, {transform_indices = @transform_1, window_bounds = array<i64: 128, 128>}, {transform_indices = @transform_2, window_bounds = array<i64: 1, 128>}, {transform_indices = @transform_3, window_bounds = array<i64: 64, 128>}]} {
    %c0 = arith.constant 0 : index
    %c0_0 = arith.constant 0 : index
    %0 = vector.load %arg2[%c0, %c0_0] : memref<64x128xf32, #tpu.memory_space<vmem>>, vector<64x128xf32>
    %c0_1 = arith.constant 0 : index
    %c0_2 = arith.constant 0 : index
    %1 = vector.load %arg3[%c0_1, %c0_2] : memref<128x128xf32, #tpu.memory_space<vmem>>, vector<128x128xf32>
    %cst = arith.constant dense<0.000000e+00> : vector<64x128xf32>
    %2 = tpu.matmul %0, %1, %cst {dimension_numbers = #tpu.dot_dimension_numbers<[1], [0], [0], [1], [0, 0, 1, 1], [], []>} : vector<64x128xf32>, vector<128x128xf32>, vector<64x128xf32> -> vector<64x128xf32>
    %c0_3 = arith.constant 0 : index
    %c0_4 = arith.constant 0 : index
    %3 = vector.load %arg4[%c0_3, %c0_4] : memref<1x128xf32, #tpu.memory_space<vmem>>, vector<1x128xf32>
    %4 = vector.broadcast %3 : vector<1x128xf32> to vector<64x128xf32>
    %5 = arith.addf %2, %4 : vector<64x128xf32>
    %c0_5 = arith.constant 0 : index
    %c0_6 = arith.constant 0 : index
    %6 = vector.load %arg5[%c0_5, %c0_6] : memref<64x128xf32, #tpu.memory_space<vmem>>, vector<64x128xf32>
    tpu.vector_store %arg5[%c0_5, %c0_6], %5 {strides = array<i32>} : memref<64x128xf32, #tpu.memory_space<vmem>>, vector<64x128xf32>,
    return
  }
  func.func @transform_0(%arg0: i32, %arg1: i32) -> (i32, i32) {
    %c0_i32 = arith.constant 0 : i32
    %c0_i32_0 = arith.constant 0 : i32
    return %arg0, %c0_i32 : i32, i32
  }
  func.func @transform_1(%arg0: i32, %arg1: i32) -> (i32, i32) {
    %c0_i32 = arith.constant 0 : i32
    %c0_i32_0 = arith.constant 0 : i32
    return %c0_i32, %arg1 : i32, i32
  }
  func.func @transform_2(%arg0: i32, %arg1: i32) -> (i32, i32) {
    %c0_i32 = arith.constant 0 : i32
    %c0_i32_0 = arith.constant 0 : i32
    return %c0_i32, %arg1 : i32, i32
  }
  func.func @transform_3(%arg0: i32, %arg1: i32) -> (i32, i32) {
    %c0_i32 = arith.constant 0 : i32
    return %arg0, %arg1 : i32, i32
  }
}

module attributes {stable_mosaic.version = 11 : i64} {
  func.func @_lstm_layer_kernel(%arg0: i32, %arg1: i32, %arg2: memref<8x8x128xf32, #tpu.memory_space<vmem>>, %arg3: memref<8x128xf32, #tpu.memory_space<vmem>>, %arg4: memref<8x128xf32, #tpu.memory_space<vmem>>, %arg5: memref<128x512xf32, #tpu.memory_space<vmem>>, %arg6: memref<128x512xf32, #tpu.memory_space<vmem>>, %arg7: memref<1x512xf32, #tpu.memory_space<vmem>>, %arg8: memref<8x8x128xf32, #tpu.memory_space<vmem>>, %arg9: memref<8x128xf32, #tpu.memory_space<vmem>>, %arg10: memref<8x128xf32, #tpu.memory_space<vmem>>, %arg11: memref<8x128xf32, #tpu.memory_space<vmem>>, %arg12: memref<8x128xf32, #tpu.memory_space<vmem>>, %arg13: memref<8x8x512xf32, #tpu.memory_space<vmem>>) attributes {dimension_semantics = [#tpu.dimension_semantics<parallel>, #tpu.dimension_semantics<arbitrary>], iteration_bounds = array<i64: 1, 1>, scalar_prefetch = 0 : i64, scratch_operands = 3 : i64, tpu.core_type = #tpu.core_type<tc>, window_params = [{transform_indices = @transform_0, window_bounds = array<i64: 8, 8, 128>}, {transform_indices = @transform_1, window_bounds = array<i64: 8, 128>}, {transform_indices = @transform_2, window_bounds = array<i64: 8, 128>}, {pipeline_mode = #tpu.pipeline_mode<synchronous>, transform_indices = @transform_3, window_bounds = array<i64: 128, 512>}, {pipeline_mode = #tpu.pipeline_mode<synchronous>, transform_indices = @transform_4, window_bounds = array<i64: 128, 512>}, {pipeline_mode = #tpu.pipeline_mode<synchronous>, transform_indices = @transform_5, window_bounds = array<i64: 1, 512>}, {transform_indices = @transform_6, window_bounds = array<i64: 8, 8, 128>}, {transform_indices = @transform_7, window_bounds = array<i64: 8, 128>}, {transform_indices = @transform_8, window_bounds = array<i64: 8, 128>}]} {
    %c0_i32 = arith.constant 0 : i32
    %0 = arith.cmpi eq, %arg1, %c0_i32 : i32
    %1 = arith.extui %0 : i1 to i32
    %c0_i32_0 = arith.constant 0 : i32
    %2 = arith.cmpi ne, %1, %c0_i32_0 : i32
    scf.if %2 {
      %c0_89 = arith.constant 0 : index
      %c0_90 = arith.constant 0 : index
      %291 = vector.load %arg3[%c0_89, %c0_90] : memref<8x128xf32, #tpu.memory_space<vmem>>, vector<8x128xf32>
      %c0_91 = arith.constant 0 : index
      %c0_92 = arith.constant 0 : index
      %292 = vector.load %arg11[%c0_91, %c0_92] : memref<8x128xf32, #tpu.memory_space<vmem>>, vector<8x128xf32>
      tpu.vector_store %arg11[%c0_91, %c0_92], %291 {strides = array<i32>} : memref<8x128xf32, #tpu.memory_space<vmem>>, vector<8x128xf32>,
      %c0_93 = arith.constant 0 : index
      %c0_94 = arith.constant 0 : index
      %293 = vector.load %arg4[%c0_93, %c0_94] : memref<8x128xf32, #tpu.memory_space<vmem>>, vector<8x128xf32>
      %c0_95 = arith.constant 0 : index
      %c0_96 = arith.constant 0 : index
      %294 = vector.load %arg12[%c0_95, %c0_96] : memref<8x128xf32, #tpu.memory_space<vmem>>, vector<8x128xf32>
      tpu.vector_store %arg12[%c0_95, %c0_96], %293 {strides = array<i32>} : memref<8x128xf32, #tpu.memory_space<vmem>>, vector<8x128xf32>,
    } else {
    }
    %c0 = arith.constant 0 : index
    %c0_1 = arith.constant 0 : index
    %c0_2 = arith.constant 0 : index
    %3 = vector.load %arg2[%c0, %c0_1, %c0_2] : memref<8x8x128xf32, #tpu.memory_space<vmem>>, vector<8x8x128xf32>
    %4 = vector.shape_cast %3 : vector<8x8x128xf32> to vector<64x128xf32>
    %c0_3 = arith.constant 0 : index
    %c0_4 = arith.constant 0 : index
    %5 = vector.load %arg5[%c0_3, %c0_4] : memref<128x512xf32, #tpu.memory_space<vmem>>, vector<128x512xf32>
    %cst = arith.constant dense<0.000000e+00> : vector<64x512xf32>
    %6 = tpu.matmul %4, %5, %cst {dimension_numbers = #tpu.dot_dimension_numbers<[1], [0], [0], [1], [0, 0, 1, 1], [], []>} : vector<64x128xf32>, vector<128x512xf32>, vector<64x512xf32> -> vector<64x512xf32>
    %c0_5 = arith.constant 0 : index
    %c0_6 = arith.constant 0 : index
    %7 = vector.load %arg7[%c0_5, %c0_6] : memref<1x512xf32, #tpu.memory_space<vmem>>, vector<1x512xf32>
    %8 = vector.broadcast %7 : vector<1x512xf32> to vector<64x512xf32>
    %9 = arith.addf %6, %8 : vector<64x512xf32>
    %10 = vector.shape_cast %9 : vector<64x512xf32> to vector<8x8x512xf32>
    %c0_7 = arith.constant 0 : index
    %c0_8 = arith.constant 0 : index
    %c0_9 = arith.constant 0 : index
    %11 = vector.load %arg13[%c0_7, %c0_8, %c0_9] : memref<8x8x512xf32, #tpu.memory_space<vmem>>, vector<8x8x512xf32>
    tpu.vector_store %arg13[%c0_7, %c0_8, %c0_9], %10 {strides = array<i32>} : memref<8x8x512xf32, #tpu.memory_space<vmem>>, vector<8x8x512xf32>,
    %c0_10 = arith.constant 0 : index
    %c0_11 = arith.constant 0 : index
    %12 = vector.load %arg6[%c0_10, %c0_11] : memref<128x512xf32, #tpu.memory_space<vmem>>, vector<128x512xf32>
    %c0_12 = arith.constant 0 : index
    %c0_13 = arith.constant 0 : index
    %13 = vector.load %arg11[%c0_12, %c0_13] : memref<8x128xf32, #tpu.memory_space<vmem>>, vector<8x128xf32>
    %c0_14 = arith.constant 0 : index
    %c0_15 = arith.constant 0 : index
    %14 = vector.load %arg12[%c0_14, %c0_15] : memref<8x128xf32, #tpu.memory_space<vmem>>, vector<8x128xf32>
    %c0_i32_16 = arith.constant 0 : i32
    %15 = arith.index_cast %c0_i32_16 : i32 to index
    %c0_17 = arith.constant 0 : index
    %c0_18 = arith.constant 0 : index
    %16 = vector.load %arg13[%15, %c0_17, %c0_18] : memref<8x8x512xf32, #tpu.memory_space<vmem>>, vector<1x8x512xf32>
    %17 = vector.shape_cast %16 : vector<1x8x512xf32> to vector<8x512xf32>
    %cst_19 = arith.constant dense<0.000000e+00> : vector<8x512xf32>
    %18 = tpu.matmul %13, %12, %cst_19 {dimension_numbers = #tpu.dot_dimension_numbers<[1], [0], [0], [1], [0, 0, 1, 1], [], []>} : vector<8x128xf32>, vector<128x512xf32>, vector<8x512xf32> -> vector<8x512xf32>
    %19 = arith.addf %17, %18 : vector<8x512xf32>
    %20 = vector.extract_strided_slice %19 {offsets = [0, 0], sizes = [8, 128], strides = [1, 1]} : vector<8x512xf32> to vector<8x128xf32>
    %21 = arith.negf %20 : vector<8x128xf32>
    %22 = math.exp %21 : vector<8x128xf32>
    %cst_20 = arith.constant 1.000000e+00 : f32
    %23 = vector.broadcast %cst_20 : f32 to vector<8x128xf32>
    %24 = arith.addf %23, %22 : vector<8x128xf32>
    %25 = arith.divf %23, %24 : vector<8x128xf32>
    %26 = vector.extract_strided_slice %19 {offsets = [0, 128], sizes = [8, 128], strides = [1, 1]} : vector<8x512xf32> to vector<8x128xf32>
    %27 = arith.negf %26 : vector<8x128xf32>
    %28 = math.exp %27 : vector<8x128xf32>
    %cst_21 = arith.constant 1.000000e+00 : f32
    %29 = vector.broadcast %cst_21 : f32 to vector<8x128xf32>
    %30 = arith.addf %29, %28 : vector<8x128xf32>
    %31 = arith.divf %29, %30 : vector<8x128xf32>
    %32 = vector.extract_strided_slice %19 {offsets = [0, 256], sizes = [8, 128], strides = [1, 1]} : vector<8x512xf32> to vector<8x128xf32>
    %33 = math.tanh %32 : vector<8x128xf32>
    %34 = vector.extract_strided_slice %19 {offsets = [0, 384], sizes = [8, 128], strides = [1, 1]} : vector<8x512xf32> to vector<8x128xf32>
    %35 = arith.negf %34 : vector<8x128xf32>
    %36 = math.exp %35 : vector<8x128xf32>
    %cst_22 = arith.constant 1.000000e+00 : f32
    %37 = vector.broadcast %cst_22 : f32 to vector<8x128xf32>
    %38 = arith.addf %37, %36 : vector<8x128xf32>
    %39 = arith.divf %37, %38 : vector<8x128xf32>
    %40 = arith.mulf %31, %14 : vector<8x128xf32>
    %41 = arith.mulf %25, %33 : vector<8x128xf32>
    %42 = arith.addf %40, %41 : vector<8x128xf32>
    %43 = math.tanh %42 : vector<8x128xf32>
    %44 = arith.mulf %39, %43 : vector<8x128xf32>
    %45 = arith.index_cast %c0_i32_16 : i32 to index
    %c0_23 = arith.constant 0 : index
    %c0_24 = arith.constant 0 : index
    %46 = vector.load %arg8[%45, %c0_23, %c0_24] : memref<8x8x128xf32, #tpu.memory_space<vmem>>, vector<1x8x128xf32>
    %47 = vector.shape_cast %46 : vector<1x8x128xf32> to vector<8x128xf32>
    %48 = vector.shape_cast %44 : vector<8x128xf32> to vector<1x8x128xf32>
    tpu.vector_store %arg8[%45, %c0_23, %c0_24], %48 {strides = array<i32>} : memref<8x8x128xf32, #tpu.memory_space<vmem>>, vector<1x8x128xf32>,
    %c1_i32 = arith.constant 1 : i32
    %49 = arith.index_cast %c1_i32 : i32 to index
    %c0_25 = arith.constant 0 : index
    %c0_26 = arith.constant 0 : index
    %50 = vector.load %arg13[%49, %c0_25, %c0_26] : memref<8x8x512xf32, #tpu.memory_space<vmem>>, vector<1x8x512xf32>
    %51 = vector.shape_cast %50 : vector<1x8x512xf32> to vector<8x512xf32>
    %cst_27 = arith.constant dense<0.000000e+00> : vector<8x512xf32>
    %52 = tpu.matmul %44, %12, %cst_27 {dimension_numbers = #tpu.dot_dimension_numbers<[1], [0], [0], [1], [0, 0, 1, 1], [], []>} : vector<8x128xf32>, vector<128x512xf32>, vector<8x512xf32> -> vector<8x512xf32>
    %53 = arith.addf %51, %52 : vector<8x512xf32>
    %54 = vector.extract_strided_slice %53 {offsets = [0, 0], sizes = [8, 128], strides = [1, 1]} : vector<8x512xf32> to vector<8x128xf32>
    %55 = arith.negf %54 : vector<8x128xf32>
    %56 = math.exp %55 : vector<8x128xf32>
    %cst_28 = arith.constant 1.000000e+00 : f32
    %57 = vector.broadcast %cst_28 : f32 to vector<8x128xf32>
    %58 = arith.addf %57, %56 : vector<8x128xf32>
    %59 = arith.divf %57, %58 : vector<8x128xf32>
    %60 = vector.extract_strided_slice %53 {offsets = [0, 128], sizes = [8, 128], strides = [1, 1]} : vector<8x512xf32> to vector<8x128xf32>
    %61 = arith.negf %60 : vector<8x128xf32>
    %62 = math.exp %61 : vector<8x128xf32>
    %cst_29 = arith.constant 1.000000e+00 : f32
    %63 = vector.broadcast %cst_29 : f32 to vector<8x128xf32>
    %64 = arith.addf %63, %62 : vector<8x128xf32>
    %65 = arith.divf %63, %64 : vector<8x128xf32>
    %66 = vector.extract_strided_slice %53 {offsets = [0, 256], sizes = [8, 128], strides = [1, 1]} : vector<8x512xf32> to vector<8x128xf32>
    %67 = math.tanh %66 : vector<8x128xf32>
    %68 = vector.extract_strided_slice %53 {offsets = [0, 384], sizes = [8, 128], strides = [1, 1]} : vector<8x512xf32> to vector<8x128xf32>
    %69 = arith.negf %68 : vector<8x128xf32>
    %70 = math.exp %69 : vector<8x128xf32>
    %cst_30 = arith.constant 1.000000e+00 : f32
    %71 = vector.broadcast %cst_30 : f32 to vector<8x128xf32>
    %72 = arith.addf %71, %70 : vector<8x128xf32>
    %73 = arith.divf %71, %72 : vector<8x128xf32>
    %74 = arith.mulf %65, %42 : vector<8x128xf32>
    %75 = arith.mulf %59, %67 : vector<8x128xf32>
    %76 = arith.addf %74, %75 : vector<8x128xf32>
    %77 = math.tanh %76 : vector<8x128xf32>
    %78 = arith.mulf %73, %77 : vector<8x128xf32>
    %79 = arith.index_cast %c1_i32 : i32 to index
    %c0_31 = arith.constant 0 : index
    %c0_32 = arith.constant 0 : index
    %80 = vector.load %arg8[%79, %c0_31, %c0_32] : memref<8x8x128xf32, #tpu.memory_space<vmem>>, vector<1x8x128xf32>
    %81 = vector.shape_cast %80 : vector<1x8x128xf32> to vector<8x128xf32>
    %82 = vector.shape_cast %78 : vector<8x128xf32> to vector<1x8x128xf32>
    tpu.vector_store %arg8[%79, %c0_31, %c0_32], %82 {strides = array<i32>} : memref<8x8x128xf32, #tpu.memory_space<vmem>>, vector<1x8x128xf32>,
    %c2_i32 = arith.constant 2 : i32
    %83 = arith.index_cast %c2_i32 : i32 to index
    %c0_33 = arith.constant 0 : index
    %c0_34 = arith.constant 0 : index
    %84 = vector.load %arg13[%83, %c0_33, %c0_34] : memref<8x8x512xf32, #tpu.memory_space<vmem>>, vector<1x8x512xf32>
    %85 = vector.shape_cast %84 : vector<1x8x512xf32> to vector<8x512xf32>
    %cst_35 = arith.constant dense<0.000000e+00> : vector<8x512xf32>
    %86 = tpu.matmul %78, %12, %cst_35 {dimension_numbers = #tpu.dot_dimension_numbers<[1], [0], [0], [1], [0, 0, 1, 1], [], []>} : vector<8x128xf32>, vector<128x512xf32>, vector<8x512xf32> -> vector<8x512xf32>
    %87 = arith.addf %85, %86 : vector<8x512xf32>
    %88 = vector.extract_strided_slice %87 {offsets = [0, 0], sizes = [8, 128], strides = [1, 1]} : vector<8x512xf32> to vector<8x128xf32>
    %89 = arith.negf %88 : vector<8x128xf32>
    %90 = math.exp %89 : vector<8x128xf32>
    %cst_36 = arith.constant 1.000000e+00 : f32
    %91 = vector.broadcast %cst_36 : f32 to vector<8x128xf32>
    %92 = arith.addf %91, %90 : vector<8x128xf32>
    %93 = arith.divf %91, %92 : vector<8x128xf32>
    %94 = vector.extract_strided_slice %87 {offsets = [0, 128], sizes = [8, 128], strides = [1, 1]} : vector<8x512xf32> to vector<8x128xf32>
    %95 = arith.negf %94 : vector<8x128xf32>
    %96 = math.exp %95 : vector<8x128xf32>
    %cst_37 = arith.constant 1.000000e+00 : f32
    %97 = vector.broadcast %cst_37 : f32 to vector<8x128xf32>
    %98 = arith.addf %97, %96 : vector<8x128xf32>
    %99 = arith.divf %97, %98 : vector<8x128xf32>
    %100 = vector.extract_strided_slice %87 {offsets = [0, 256], sizes = [8, 128], strides = [1, 1]} : vector<8x512xf32> to vector<8x128xf32>
    %101 = math.tanh %100 : vector<8x128xf32>
    %102 = vector.extract_strided_slice %87 {offsets = [0, 384], sizes = [8, 128], strides = [1, 1]} : vector<8x512xf32> to vector<8x128xf32>
    %103 = arith.negf %102 : vector<8x128xf32>
    %104 = math.exp %103 : vector<8x128xf32>
    %cst_38 = arith.constant 1.000000e+00 : f32
    %105 = vector.broadcast %cst_38 : f32 to vector<8x128xf32>
    %106 = arith.addf %105, %104 : vector<8x128xf32>
    %107 = arith.divf %105, %106 : vector<8x128xf32>
    %108 = arith.mulf %99, %76 : vector<8x128xf32>
    %109 = arith.mulf %93, %101 : vector<8x128xf32>
    %110 = arith.addf %108, %109 : vector<8x128xf32>
    %111 = math.tanh %110 : vector<8x128xf32>
    %112 = arith.mulf %107, %111 : vector<8x128xf32>
    %113 = arith.index_cast %c2_i32 : i32 to index
    %c0_39 = arith.constant 0 : index
    %c0_40 = arith.constant 0 : index
    %114 = vector.load %arg8[%113, %c0_39, %c0_40] : memref<8x8x128xf32, #tpu.memory_space<vmem>>, vector<1x8x128xf32>
    %115 = vector.shape_cast %114 : vector<1x8x128xf32> to vector<8x128xf32>
    %116 = vector.shape_cast %112 : vector<8x128xf32> to vector<1x8x128xf32>
    tpu.vector_store %arg8[%113, %c0_39, %c0_40], %116 {strides = array<i32>} : memref<8x8x128xf32, #tpu.memory_space<vmem>>, vector<1x8x128xf32>,
    %c3_i32 = arith.constant 3 : i32
    %117 = arith.index_cast %c3_i32 : i32 to index
    %c0_41 = arith.constant 0 : index
    %c0_42 = arith.constant 0 : index
    %118 = vector.load %arg13[%117, %c0_41, %c0_42] : memref<8x8x512xf32, #tpu.memory_space<vmem>>, vector<1x8x512xf32>
    %119 = vector.shape_cast %118 : vector<1x8x512xf32> to vector<8x512xf32>
    %cst_43 = arith.constant dense<0.000000e+00> : vector<8x512xf32>
    %120 = tpu.matmul %112, %12, %cst_43 {dimension_numbers = #tpu.dot_dimension_numbers<[1], [0], [0], [1], [0, 0, 1, 1], [], []>} : vector<8x128xf32>, vector<128x512xf32>, vector<8x512xf32> -> vector<8x512xf32>
    %121 = arith.addf %119, %120 : vector<8x512xf32>
    %122 = vector.extract_strided_slice %121 {offsets = [0, 0], sizes = [8, 128], strides = [1, 1]} : vector<8x512xf32> to vector<8x128xf32>
    %123 = arith.negf %122 : vector<8x128xf32>
    %124 = math.exp %123 : vector<8x128xf32>
    %cst_44 = arith.constant 1.000000e+00 : f32
    %125 = vector.broadcast %cst_44 : f32 to vector<8x128xf32>
    %126 = arith.addf %125, %124 : vector<8x128xf32>
    %127 = arith.divf %125, %126 : vector<8x128xf32>
    %128 = vector.extract_strided_slice %121 {offsets = [0, 128], sizes = [8, 128], strides = [1, 1]} : vector<8x512xf32> to vector<8x128xf32>
    %129 = arith.negf %128 : vector<8x128xf32>
    %130 = math.exp %129 : vector<8x128xf32>
    %cst_45 = arith.constant 1.000000e+00 : f32
    %131 = vector.broadcast %cst_45 : f32 to vector<8x128xf32>
    %132 = arith.addf %131, %130 : vector<8x128xf32>
    %133 = arith.divf %131, %132 : vector<8x128xf32>
    %134 = vector.extract_strided_slice %121 {offsets = [0, 256], sizes = [8, 128], strides = [1, 1]} : vector<8x512xf32> to vector<8x128xf32>
    %135 = math.tanh %134 : vector<8x128xf32>
    %136 = vector.extract_strided_slice %121 {offsets = [0, 384], sizes = [8, 128], strides = [1, 1]} : vector<8x512xf32> to vector<8x128xf32>
    %137 = arith.negf %136 : vector<8x128xf32>
    %138 = math.exp %137 : vector<8x128xf32>
    %cst_46 = arith.constant 1.000000e+00 : f32
    %139 = vector.broadcast %cst_46 : f32 to vector<8x128xf32>
    %140 = arith.addf %139, %138 : vector<8x128xf32>
    %141 = arith.divf %139, %140 : vector<8x128xf32>
    %142 = arith.mulf %133, %110 : vector<8x128xf32>
    %143 = arith.mulf %127, %135 : vector<8x128xf32>
    %144 = arith.addf %142, %143 : vector<8x128xf32>
    %145 = math.tanh %144 : vector<8x128xf32>
    %146 = arith.mulf %141, %145 : vector<8x128xf32>
    %147 = arith.index_cast %c3_i32 : i32 to index
    %c0_47 = arith.constant 0 : index
    %c0_48 = arith.constant 0 : index
    %148 = vector.load %arg8[%147, %c0_47, %c0_48] : memref<8x8x128xf32, #tpu.memory_space<vmem>>, vector<1x8x128xf32>
    %149 = vector.shape_cast %148 : vector<1x8x128xf32> to vector<8x128xf32>
    %150 = vector.shape_cast %146 : vector<8x128xf32> to vector<1x8x128xf32>
    tpu.vector_store %arg8[%147, %c0_47, %c0_48], %150 {strides = array<i32>} : memref<8x8x128xf32, #tpu.memory_space<vmem>>, vector<1x8x128xf32>,
    %c4_i32 = arith.constant 4 : i32
    %151 = arith.index_cast %c4_i32 : i32 to index
    %c0_49 = arith.constant 0 : index
    %c0_50 = arith.constant 0 : index
    %152 = vector.load %arg13[%151, %c0_49, %c0_50] : memref<8x8x512xf32, #tpu.memory_space<vmem>>, vector<1x8x512xf32>
    %153 = vector.shape_cast %152 : vector<1x8x512xf32> to vector<8x512xf32>
    %cst_51 = arith.constant dense<0.000000e+00> : vector<8x512xf32>
    %154 = tpu.matmul %146, %12, %cst_51 {dimension_numbers = #tpu.dot_dimension_numbers<[1], [0], [0], [1], [0, 0, 1, 1], [], []>} : vector<8x128xf32>, vector<128x512xf32>, vector<8x512xf32> -> vector<8x512xf32>
    %155 = arith.addf %153, %154 : vector<8x512xf32>
    %156 = vector.extract_strided_slice %155 {offsets = [0, 0], sizes = [8, 128], strides = [1, 1]} : vector<8x512xf32> to vector<8x128xf32>
    %157 = arith.negf %156 : vector<8x128xf32>
    %158 = math.exp %157 : vector<8x128xf32>
    %cst_52 = arith.constant 1.000000e+00 : f32
    %159 = vector.broadcast %cst_52 : f32 to vector<8x128xf32>
    %160 = arith.addf %159, %158 : vector<8x128xf32>
    %161 = arith.divf %159, %160 : vector<8x128xf32>
    %162 = vector.extract_strided_slice %155 {offsets = [0, 128], sizes = [8, 128], strides = [1, 1]} : vector<8x512xf32> to vector<8x128xf32>
    %163 = arith.negf %162 : vector<8x128xf32>
    %164 = math.exp %163 : vector<8x128xf32>
    %cst_53 = arith.constant 1.000000e+00 : f32
    %165 = vector.broadcast %cst_53 : f32 to vector<8x128xf32>
    %166 = arith.addf %165, %164 : vector<8x128xf32>
    %167 = arith.divf %165, %166 : vector<8x128xf32>
    %168 = vector.extract_strided_slice %155 {offsets = [0, 256], sizes = [8, 128], strides = [1, 1]} : vector<8x512xf32> to vector<8x128xf32>
    %169 = math.tanh %168 : vector<8x128xf32>
    %170 = vector.extract_strided_slice %155 {offsets = [0, 384], sizes = [8, 128], strides = [1, 1]} : vector<8x512xf32> to vector<8x128xf32>
    %171 = arith.negf %170 : vector<8x128xf32>
    %172 = math.exp %171 : vector<8x128xf32>
    %cst_54 = arith.constant 1.000000e+00 : f32
    %173 = vector.broadcast %cst_54 : f32 to vector<8x128xf32>
    %174 = arith.addf %173, %172 : vector<8x128xf32>
    %175 = arith.divf %173, %174 : vector<8x128xf32>
    %176 = arith.mulf %167, %144 : vector<8x128xf32>
    %177 = arith.mulf %161, %169 : vector<8x128xf32>
    %178 = arith.addf %176, %177 : vector<8x128xf32>
    %179 = math.tanh %178 : vector<8x128xf32>
    %180 = arith.mulf %175, %179 : vector<8x128xf32>
    %181 = arith.index_cast %c4_i32 : i32 to index
    %c0_55 = arith.constant 0 : index
    %c0_56 = arith.constant 0 : index
    %182 = vector.load %arg8[%181, %c0_55, %c0_56] : memref<8x8x128xf32, #tpu.memory_space<vmem>>, vector<1x8x128xf32>
    %183 = vector.shape_cast %182 : vector<1x8x128xf32> to vector<8x128xf32>
    %184 = vector.shape_cast %180 : vector<8x128xf32> to vector<1x8x128xf32>
    tpu.vector_store %arg8[%181, %c0_55, %c0_56], %184 {strides = array<i32>} : memref<8x8x128xf32, #tpu.memory_space<vmem>>, vector<1x8x128xf32>,
    %c5_i32 = arith.constant 5 : i32
    %185 = arith.index_cast %c5_i32 : i32 to index
    %c0_57 = arith.constant 0 : index
    %c0_58 = arith.constant 0 : index
    %186 = vector.load %arg13[%185, %c0_57, %c0_58] : memref<8x8x512xf32, #tpu.memory_space<vmem>>, vector<1x8x512xf32>
    %187 = vector.shape_cast %186 : vector<1x8x512xf32> to vector<8x512xf32>
    %cst_59 = arith.constant dense<0.000000e+00> : vector<8x512xf32>
    %188 = tpu.matmul %180, %12, %cst_59 {dimension_numbers = #tpu.dot_dimension_numbers<[1], [0], [0], [1], [0, 0, 1, 1], [], []>} : vector<8x128xf32>, vector<128x512xf32>, vector<8x512xf32> -> vector<8x512xf32>
    %189 = arith.addf %187, %188 : vector<8x512xf32>
    %190 = vector.extract_strided_slice %189 {offsets = [0, 0], sizes = [8, 128], strides = [1, 1]} : vector<8x512xf32> to vector<8x128xf32>
    %191 = arith.negf %190 : vector<8x128xf32>
    %192 = math.exp %191 : vector<8x128xf32>
    %cst_60 = arith.constant 1.000000e+00 : f32
    %193 = vector.broadcast %cst_60 : f32 to vector<8x128xf32>
    %194 = arith.addf %193, %192 : vector<8x128xf32>
    %195 = arith.divf %193, %194 : vector<8x128xf32>
    %196 = vector.extract_strided_slice %189 {offsets = [0, 128], sizes = [8, 128], strides = [1, 1]} : vector<8x512xf32> to vector<8x128xf32>
    %197 = arith.negf %196 : vector<8x128xf32>
    %198 = math.exp %197 : vector<8x128xf32>
    %cst_61 = arith.constant 1.000000e+00 : f32
    %199 = vector.broadcast %cst_61 : f32 to vector<8x128xf32>
    %200 = arith.addf %199, %198 : vector<8x128xf32>
    %201 = arith.divf %199, %200 : vector<8x128xf32>
    %202 = vector.extract_strided_slice %189 {offsets = [0, 256], sizes = [8, 128], strides = [1, 1]} : vector<8x512xf32> to vector<8x128xf32>
    %203 = math.tanh %202 : vector<8x128xf32>
    %204 = vector.extract_strided_slice %189 {offsets = [0, 384], sizes = [8, 128], strides = [1, 1]} : vector<8x512xf32> to vector<8x128xf32>
    %205 = arith.negf %204 : vector<8x128xf32>
    %206 = math.exp %205 : vector<8x128xf32>
    %cst_62 = arith.constant 1.000000e+00 : f32
    %207 = vector.broadcast %cst_62 : f32 to vector<8x128xf32>
    %208 = arith.addf %207, %206 : vector<8x128xf32>
    %209 = arith.divf %207, %208 : vector<8x128xf32>
    %210 = arith.mulf %201, %178 : vector<8x128xf32>
    %211 = arith.mulf %195, %203 : vector<8x128xf32>
    %212 = arith.addf %210, %211 : vector<8x128xf32>
    %213 = math.tanh %212 : vector<8x128xf32>
    %214 = arith.mulf %209, %213 : vector<8x128xf32>
    %215 = arith.index_cast %c5_i32 : i32 to index
    %c0_63 = arith.constant 0 : index
    %c0_64 = arith.constant 0 : index
    %216 = vector.load %arg8[%215, %c0_63, %c0_64] : memref<8x8x128xf32, #tpu.memory_space<vmem>>, vector<1x8x128xf32>
    %217 = vector.shape_cast %216 : vector<1x8x128xf32> to vector<8x128xf32>
    %218 = vector.shape_cast %214 : vector<8x128xf32> to vector<1x8x128xf32>
    tpu.vector_store %arg8[%215, %c0_63, %c0_64], %218 {strides = array<i32>} : memref<8x8x128xf32, #tpu.memory_space<vmem>>, vector<1x8x128xf32>,
    %c6_i32 = arith.constant 6 : i32
    %219 = arith.index_cast %c6_i32 : i32 to index
    %c0_65 = arith.constant 0 : index
    %c0_66 = arith.constant 0 : index
    %220 = vector.load %arg13[%219, %c0_65, %c0_66] : memref<8x8x512xf32, #tpu.memory_space<vmem>>, vector<1x8x512xf32>
    %221 = vector.shape_cast %220 : vector<1x8x512xf32> to vector<8x512xf32>
    %cst_67 = arith.constant dense<0.000000e+00> : vector<8x512xf32>
    %222 = tpu.matmul %214, %12, %cst_67 {dimension_numbers = #tpu.dot_dimension_numbers<[1], [0], [0], [1], [0, 0, 1, 1], [], []>} : vector<8x128xf32>, vector<128x512xf32>, vector<8x512xf32> -> vector<8x512xf32>
    %223 = arith.addf %221, %222 : vector<8x512xf32>
    %224 = vector.extract_strided_slice %223 {offsets = [0, 0], sizes = [8, 128], strides = [1, 1]} : vector<8x512xf32> to vector<8x128xf32>
    %225 = arith.negf %224 : vector<8x128xf32>
    %226 = math.exp %225 : vector<8x128xf32>
    %cst_68 = arith.constant 1.000000e+00 : f32
    %227 = vector.broadcast %cst_68 : f32 to vector<8x128xf32>
    %228 = arith.addf %227, %226 : vector<8x128xf32>
    %229 = arith.divf %227, %228 : vector<8x128xf32>
    %230 = vector.extract_strided_slice %223 {offsets = [0, 128], sizes = [8, 128], strides = [1, 1]} : vector<8x512xf32> to vector<8x128xf32>
    %231 = arith.negf %230 : vector<8x128xf32>
    %232 = math.exp %231 : vector<8x128xf32>
    %cst_69 = arith.constant 1.000000e+00 : f32
    %233 = vector.broadcast %cst_69 : f32 to vector<8x128xf32>
    %234 = arith.addf %233, %232 : vector<8x128xf32>
    %235 = arith.divf %233, %234 : vector<8x128xf32>
    %236 = vector.extract_strided_slice %223 {offsets = [0, 256], sizes = [8, 128], strides = [1, 1]} : vector<8x512xf32> to vector<8x128xf32>
    %237 = math.tanh %236 : vector<8x128xf32>
    %238 = vector.extract_strided_slice %223 {offsets = [0, 384], sizes = [8, 128], strides = [1, 1]} : vector<8x512xf32> to vector<8x128xf32>
    %239 = arith.negf %238 : vector<8x128xf32>
    %240 = math.exp %239 : vector<8x128xf32>
    %cst_70 = arith.constant 1.000000e+00 : f32
    %241 = vector.broadcast %cst_70 : f32 to vector<8x128xf32>
    %242 = arith.addf %241, %240 : vector<8x128xf32>
    %243 = arith.divf %241, %242 : vector<8x128xf32>
    %244 = arith.mulf %235, %212 : vector<8x128xf32>
    %245 = arith.mulf %229, %237 : vector<8x128xf32>
    %246 = arith.addf %244, %245 : vector<8x128xf32>
    %247 = math.tanh %246 : vector<8x128xf32>
    %248 = arith.mulf %243, %247 : vector<8x128xf32>
    %249 = arith.index_cast %c6_i32 : i32 to index
    %c0_71 = arith.constant 0 : index
    %c0_72 = arith.constant 0 : index
    %250 = vector.load %arg8[%249, %c0_71, %c0_72] : memref<8x8x128xf32, #tpu.memory_space<vmem>>, vector<1x8x128xf32>
    %251 = vector.shape_cast %250 : vector<1x8x128xf32> to vector<8x128xf32>
    %252 = vector.shape_cast %248 : vector<8x128xf32> to vector<1x8x128xf32>
    tpu.vector_store %arg8[%249, %c0_71, %c0_72], %252 {strides = array<i32>} : memref<8x8x128xf32, #tpu.memory_space<vmem>>, vector<1x8x128xf32>,
    %c7_i32 = arith.constant 7 : i32
    %253 = arith.index_cast %c7_i32 : i32 to index
    %c0_73 = arith.constant 0 : index
    %c0_74 = arith.constant 0 : index
    %254 = vector.load %arg13[%253, %c0_73, %c0_74] : memref<8x8x512xf32, #tpu.memory_space<vmem>>, vector<1x8x512xf32>
    %255 = vector.shape_cast %254 : vector<1x8x512xf32> to vector<8x512xf32>
    %cst_75 = arith.constant dense<0.000000e+00> : vector<8x512xf32>
    %256 = tpu.matmul %248, %12, %cst_75 {dimension_numbers = #tpu.dot_dimension_numbers<[1], [0], [0], [1], [0, 0, 1, 1], [], []>} : vector<8x128xf32>, vector<128x512xf32>, vector<8x512xf32> -> vector<8x512xf32>
    %257 = arith.addf %255, %256 : vector<8x512xf32>
    %258 = vector.extract_strided_slice %257 {offsets = [0, 0], sizes = [8, 128], strides = [1, 1]} : vector<8x512xf32> to vector<8x128xf32>
    %259 = arith.negf %258 : vector<8x128xf32>
    %260 = math.exp %259 : vector<8x128xf32>
    %cst_76 = arith.constant 1.000000e+00 : f32
    %261 = vector.broadcast %cst_76 : f32 to vector<8x128xf32>
    %262 = arith.addf %261, %260 : vector<8x128xf32>
    %263 = arith.divf %261, %262 : vector<8x128xf32>
    %264 = vector.extract_strided_slice %257 {offsets = [0, 128], sizes = [8, 128], strides = [1, 1]} : vector<8x512xf32> to vector<8x128xf32>
    %265 = arith.negf %264 : vector<8x128xf32>
    %266 = math.exp %265 : vector<8x128xf32>
    %cst_77 = arith.constant 1.000000e+00 : f32
    %267 = vector.broadcast %cst_77 : f32 to vector<8x128xf32>
    %268 = arith.addf %267, %266 : vector<8x128xf32>
    %269 = arith.divf %267, %268 : vector<8x128xf32>
    %270 = vector.extract_strided_slice %257 {offsets = [0, 256], sizes = [8, 128], strides = [1, 1]} : vector<8x512xf32> to vector<8x128xf32>
    %271 = math.tanh %270 : vector<8x128xf32>
    %272 = vector.extract_strided_slice %257 {offsets = [0, 384], sizes = [8, 128], strides = [1, 1]} : vector<8x512xf32> to vector<8x128xf32>
    %273 = arith.negf %272 : vector<8x128xf32>
    %274 = math.exp %273 : vector<8x128xf32>
    %cst_78 = arith.constant 1.000000e+00 : f32
    %275 = vector.broadcast %cst_78 : f32 to vector<8x128xf32>
    %276 = arith.addf %275, %274 : vector<8x128xf32>
    %277 = arith.divf %275, %276 : vector<8x128xf32>
    %278 = arith.mulf %269, %246 : vector<8x128xf32>
    %279 = arith.mulf %263, %271 : vector<8x128xf32>
    %280 = arith.addf %278, %279 : vector<8x128xf32>
    %281 = math.tanh %280 : vector<8x128xf32>
    %282 = arith.mulf %277, %281 : vector<8x128xf32>
    %283 = arith.index_cast %c7_i32 : i32 to index
    %c0_79 = arith.constant 0 : index
    %c0_80 = arith.constant 0 : index
    %284 = vector.load %arg8[%283, %c0_79, %c0_80] : memref<8x8x128xf32, #tpu.memory_space<vmem>>, vector<1x8x128xf32>
    %285 = vector.shape_cast %284 : vector<1x8x128xf32> to vector<8x128xf32>
    %286 = vector.shape_cast %282 : vector<8x128xf32> to vector<1x8x128xf32>
    tpu.vector_store %arg8[%283, %c0_79, %c0_80], %286 {strides = array<i32>} : memref<8x8x128xf32, #tpu.memory_space<vmem>>, vector<1x8x128xf32>,
    %c8_i32 = arith.constant 8 : i32
    %c0_81 = arith.constant 0 : index
    %c0_82 = arith.constant 0 : index
    %287 = vector.load %arg11[%c0_81, %c0_82] : memref<8x128xf32, #tpu.memory_space<vmem>>, vector<8x128xf32>
    tpu.vector_store %arg11[%c0_81, %c0_82], %282 {strides = array<i32>} : memref<8x128xf32, #tpu.memory_space<vmem>>, vector<8x128xf32>,
    %c0_83 = arith.constant 0 : index
    %c0_84 = arith.constant 0 : index
    %288 = vector.load %arg12[%c0_83, %c0_84] : memref<8x128xf32, #tpu.memory_space<vmem>>, vector<8x128xf32>
    tpu.vector_store %arg12[%c0_83, %c0_84], %280 {strides = array<i32>} : memref<8x128xf32, #tpu.memory_space<vmem>>, vector<8x128xf32>,
    %c0_85 = arith.constant 0 : index
    %c0_86 = arith.constant 0 : index
    %289 = vector.load %arg9[%c0_85, %c0_86] : memref<8x128xf32, #tpu.memory_space<vmem>>, vector<8x128xf32>
    tpu.vector_store %arg9[%c0_85, %c0_86], %282 {strides = array<i32>} : memref<8x128xf32, #tpu.memory_space<vmem>>, vector<8x128xf32>,
    %c0_87 = arith.constant 0 : index
    %c0_88 = arith.constant 0 : index
    %290 = vector.load %arg10[%c0_87, %c0_88] : memref<8x128xf32, #tpu.memory_space<vmem>>, vector<8x128xf32>
    tpu.vector_store %arg10[%c0_87, %c0_88], %280 {strides = array<i32>} : memref<8x128xf32, #tpu.memory_space<vmem>>, vector<8x128xf32>,
    return
  }
  func.func @transform_0(%arg0: i32, %arg1: i32) -> (i32, i32, i32) {
    %c0_i32 = arith.constant 0 : i32
    %c0_i32_0 = arith.constant 0 : i32
    return %arg1, %arg0, %c0_i32 : i32, i32, i32
  }
  func.func @transform_1(%arg0: i32, %arg1: i32) -> (i32, i32) {
    %c0_i32 = arith.constant 0 : i32
    %c0_i32_0 = arith.constant 0 : i32
    return %arg0, %c0_i32 : i32, i32
  }
  func.func @transform_2(%arg0: i32, %arg1: i32) -> (i32, i32) {
    %c0_i32 = arith.constant 0 : i32
    %c0_i32_0 = arith.constant 0 : i32
    return %arg0, %c0_i32 : i32, i32
  }
  func.func @transform_3(%arg0: i32, %arg1: i32) -> (i32, i32) {
    %c0_i32 = arith.constant 0 : i32
    %c0_i32_0 = arith.constant 0 : i32
    %c0_i32_1 = arith.constant 0 : i32
    return %c0_i32, %c0_i32_0 : i32, i32
  }
  func.func @transform_4(%arg0: i32, %arg1: i32) -> (i32, i32) {
    %c0_i32 = arith.constant 0 : i32
    %c0_i32_0 = arith.constant 0 : i32
    %c0_i32_1 = arith.constant 0 : i32
    return %c0_i32, %c0_i32_0 : i32, i32
  }
  func.func @transform_5(%arg0: i32, %arg1: i32) -> (i32, i32) {
    %c0_i32 = arith.constant 0 : i32
    %c0_i32_0 = arith.constant 0 : i32
    %c0_i32_1 = arith.constant 0 : i32
    return %c0_i32, %c0_i32_0 : i32, i32
  }
  func.func @transform_6(%arg0: i32, %arg1: i32) -> (i32, i32, i32) {
    %c0_i32 = arith.constant 0 : i32
    %c0_i32_0 = arith.constant 0 : i32
    return %arg1, %arg0, %c0_i32 : i32, i32, i32
  }
  func.func @transform_7(%arg0: i32, %arg1: i32) -> (i32, i32) {
    %c0_i32 = arith.constant 0 : i32
    %c0_i32_0 = arith.constant 0 : i32
    return %arg0, %c0_i32 : i32, i32
  }
  func.func @transform_8(%arg0: i32, %arg1: i32) -> (i32, i32) {
    %c0_i32 = arith.constant 0 : i32
    %c0_i32_0 = arith.constant 0 : i32
    return %arg0, %c0_i32 : i32, i32
  }
}

module attributes {stable_mosaic.version = 11 : i64} {
  func.func @_lstm_layer_kernel(%arg0: i32, %arg1: i32, %arg2: memref<8x8x128xf32, #tpu.memory_space<vmem>>, %arg3: memref<8x128xf32, #tpu.memory_space<vmem>>, %arg4: memref<8x128xf32, #tpu.memory_space<vmem>>, %arg5: memref<128x512xf32, #tpu.memory_space<vmem>>, %arg6: memref<128x512xf32, #tpu.memory_space<vmem>>, %arg7: memref<1x512xf32, #tpu.memory_space<vmem>>, %arg8: memref<8x8x128xf32, #tpu.memory_space<vmem>>, %arg9: memref<8x128xf32, #tpu.memory_space<vmem>>, %arg10: memref<8x128xf32, #tpu.memory_space<vmem>>, %arg11: memref<8x128xf32, #tpu.memory_space<vmem>>, %arg12: memref<8x128xf32, #tpu.memory_space<vmem>>, %arg13: memref<8x8x512xf32, #tpu.memory_space<vmem>>) attributes {dimension_semantics = [#tpu.dimension_semantics<parallel>, #tpu.dimension_semantics<arbitrary>], iteration_bounds = array<i64: 1, 1>, scalar_prefetch = 0 : i64, scratch_operands = 3 : i64, tpu.core_type = #tpu.core_type<tc>, window_params = [{transform_indices = @transform_0, window_bounds = array<i64: 8, 8, 128>}, {transform_indices = @transform_1, window_bounds = array<i64: 8, 128>}, {transform_indices = @transform_2, window_bounds = array<i64: 8, 128>}, {pipeline_mode = #tpu.pipeline_mode<synchronous>, transform_indices = @transform_3, window_bounds = array<i64: 128, 512>}, {pipeline_mode = #tpu.pipeline_mode<synchronous>, transform_indices = @transform_4, window_bounds = array<i64: 128, 512>}, {pipeline_mode = #tpu.pipeline_mode<synchronous>, transform_indices = @transform_5, window_bounds = array<i64: 1, 512>}, {transform_indices = @transform_6, window_bounds = array<i64: 8, 8, 128>}, {transform_indices = @transform_7, window_bounds = array<i64: 8, 128>}, {transform_indices = @transform_8, window_bounds = array<i64: 8, 128>}]} {
    %c0_i32 = arith.constant 0 : i32
    %0 = arith.cmpi eq, %arg1, %c0_i32 : i32
    %1 = arith.extui %0 : i1 to i32
    %c0_i32_0 = arith.constant 0 : i32
    %2 = arith.cmpi ne, %1, %c0_i32_0 : i32
    scf.if %2 {
      %c0_89 = arith.constant 0 : index
      %c0_90 = arith.constant 0 : index
      %291 = vector.load %arg3[%c0_89, %c0_90] : memref<8x128xf32, #tpu.memory_space<vmem>>, vector<8x128xf32>
      %c0_91 = arith.constant 0 : index
      %c0_92 = arith.constant 0 : index
      %292 = vector.load %arg11[%c0_91, %c0_92] : memref<8x128xf32, #tpu.memory_space<vmem>>, vector<8x128xf32>
      tpu.vector_store %arg11[%c0_91, %c0_92], %291 {strides = array<i32>} : memref<8x128xf32, #tpu.memory_space<vmem>>, vector<8x128xf32>,
      %c0_93 = arith.constant 0 : index
      %c0_94 = arith.constant 0 : index
      %293 = vector.load %arg4[%c0_93, %c0_94] : memref<8x128xf32, #tpu.memory_space<vmem>>, vector<8x128xf32>
      %c0_95 = arith.constant 0 : index
      %c0_96 = arith.constant 0 : index
      %294 = vector.load %arg12[%c0_95, %c0_96] : memref<8x128xf32, #tpu.memory_space<vmem>>, vector<8x128xf32>
      tpu.vector_store %arg12[%c0_95, %c0_96], %293 {strides = array<i32>} : memref<8x128xf32, #tpu.memory_space<vmem>>, vector<8x128xf32>,
    } else {
    }
    %c0 = arith.constant 0 : index
    %c0_1 = arith.constant 0 : index
    %c0_2 = arith.constant 0 : index
    %3 = vector.load %arg2[%c0, %c0_1, %c0_2] : memref<8x8x128xf32, #tpu.memory_space<vmem>>, vector<8x8x128xf32>
    %4 = vector.shape_cast %3 : vector<8x8x128xf32> to vector<64x128xf32>
    %c0_3 = arith.constant 0 : index
    %c0_4 = arith.constant 0 : index
    %5 = vector.load %arg5[%c0_3, %c0_4] : memref<128x512xf32, #tpu.memory_space<vmem>>, vector<128x512xf32>
    %cst = arith.constant dense<0.000000e+00> : vector<64x512xf32>
    %6 = tpu.matmul %4, %5, %cst {dimension_numbers = #tpu.dot_dimension_numbers<[1], [0], [0], [1], [0, 0, 1, 1], [], []>} : vector<64x128xf32>, vector<128x512xf32>, vector<64x512xf32> -> vector<64x512xf32>
    %c0_5 = arith.constant 0 : index
    %c0_6 = arith.constant 0 : index
    %7 = vector.load %arg7[%c0_5, %c0_6] : memref<1x512xf32, #tpu.memory_space<vmem>>, vector<1x512xf32>
    %8 = vector.broadcast %7 : vector<1x512xf32> to vector<64x512xf32>
    %9 = arith.addf %6, %8 : vector<64x512xf32>
    %10 = vector.shape_cast %9 : vector<64x512xf32> to vector<8x8x512xf32>
    %c0_7 = arith.constant 0 : index
    %c0_8 = arith.constant 0 : index
    %c0_9 = arith.constant 0 : index
    %11 = vector.load %arg13[%c0_7, %c0_8, %c0_9] : memref<8x8x512xf32, #tpu.memory_space<vmem>>, vector<8x8x512xf32>
    tpu.vector_store %arg13[%c0_7, %c0_8, %c0_9], %10 {strides = array<i32>} : memref<8x8x512xf32, #tpu.memory_space<vmem>>, vector<8x8x512xf32>,
    %c0_10 = arith.constant 0 : index
    %c0_11 = arith.constant 0 : index
    %12 = vector.load %arg6[%c0_10, %c0_11] : memref<128x512xf32, #tpu.memory_space<vmem>>, vector<128x512xf32>
    %c0_12 = arith.constant 0 : index
    %c0_13 = arith.constant 0 : index
    %13 = vector.load %arg11[%c0_12, %c0_13] : memref<8x128xf32, #tpu.memory_space<vmem>>, vector<8x128xf32>
    %c0_14 = arith.constant 0 : index
    %c0_15 = arith.constant 0 : index
    %14 = vector.load %arg12[%c0_14, %c0_15] : memref<8x128xf32, #tpu.memory_space<vmem>>, vector<8x128xf32>
    %c0_i32_16 = arith.constant 0 : i32
    %15 = arith.index_cast %c0_i32_16 : i32 to index
    %c0_17 = arith.constant 0 : index
    %c0_18 = arith.constant 0 : index
    %16 = vector.load %arg13[%15, %c0_17, %c0_18] : memref<8x8x512xf32, #tpu.memory_space<vmem>>, vector<1x8x512xf32>
    %17 = vector.shape_cast %16 : vector<1x8x512xf32> to vector<8x512xf32>
    %cst_19 = arith.constant dense<0.000000e+00> : vector<8x512xf32>
    %18 = tpu.matmul %13, %12, %cst_19 {dimension_numbers = #tpu.dot_dimension_numbers<[1], [0], [0], [1], [0, 0, 1, 1], [], []>} : vector<8x128xf32>, vector<128x512xf32>, vector<8x512xf32> -> vector<8x512xf32>
    %19 = arith.addf %17, %18 : vector<8x512xf32>
    %20 = vector.extract_strided_slice %19 {offsets = [0, 0], sizes = [8, 128], strides = [1, 1]} : vector<8x512xf32> to vector<8x128xf32>
    %21 = arith.negf %20 : vector<8x128xf32>
    %22 = math.exp %21 : vector<8x128xf32>
    %cst_20 = arith.constant 1.000000e+00 : f32
    %23 = vector.broadcast %cst_20 : f32 to vector<8x128xf32>
    %24 = arith.addf %23, %22 : vector<8x128xf32>
    %25 = arith.divf %23, %24 : vector<8x128xf32>
    %26 = vector.extract_strided_slice %19 {offsets = [0, 128], sizes = [8, 128], strides = [1, 1]} : vector<8x512xf32> to vector<8x128xf32>
    %27 = arith.negf %26 : vector<8x128xf32>
    %28 = math.exp %27 : vector<8x128xf32>
    %cst_21 = arith.constant 1.000000e+00 : f32
    %29 = vector.broadcast %cst_21 : f32 to vector<8x128xf32>
    %30 = arith.addf %29, %28 : vector<8x128xf32>
    %31 = arith.divf %29, %30 : vector<8x128xf32>
    %32 = vector.extract_strided_slice %19 {offsets = [0, 256], sizes = [8, 128], strides = [1, 1]} : vector<8x512xf32> to vector<8x128xf32>
    %33 = math.tanh %32 : vector<8x128xf32>
    %34 = vector.extract_strided_slice %19 {offsets = [0, 384], sizes = [8, 128], strides = [1, 1]} : vector<8x512xf32> to vector<8x128xf32>
    %35 = arith.negf %34 : vector<8x128xf32>
    %36 = math.exp %35 : vector<8x128xf32>
    %cst_22 = arith.constant 1.000000e+00 : f32
    %37 = vector.broadcast %cst_22 : f32 to vector<8x128xf32>
    %38 = arith.addf %37, %36 : vector<8x128xf32>
    %39 = arith.divf %37, %38 : vector<8x128xf32>
    %40 = arith.mulf %31, %14 : vector<8x128xf32>
    %41 = arith.mulf %25, %33 : vector<8x128xf32>
    %42 = arith.addf %40, %41 : vector<8x128xf32>
    %43 = math.tanh %42 : vector<8x128xf32>
    %44 = arith.mulf %39, %43 : vector<8x128xf32>
    %45 = arith.index_cast %c0_i32_16 : i32 to index
    %c0_23 = arith.constant 0 : index
    %c0_24 = arith.constant 0 : index
    %46 = vector.load %arg8[%45, %c0_23, %c0_24] : memref<8x8x128xf32, #tpu.memory_space<vmem>>, vector<1x8x128xf32>
    %47 = vector.shape_cast %46 : vector<1x8x128xf32> to vector<8x128xf32>
    %48 = vector.shape_cast %44 : vector<8x128xf32> to vector<1x8x128xf32>
    tpu.vector_store %arg8[%45, %c0_23, %c0_24], %48 {strides = array<i32>} : memref<8x8x128xf32, #tpu.memory_space<vmem>>, vector<1x8x128xf32>,
    %c1_i32 = arith.constant 1 : i32
    %49 = arith.index_cast %c1_i32 : i32 to index
    %c0_25 = arith.constant 0 : index
    %c0_26 = arith.constant 0 : index
    %50 = vector.load %arg13[%49, %c0_25, %c0_26] : memref<8x8x512xf32, #tpu.memory_space<vmem>>, vector<1x8x512xf32>
    %51 = vector.shape_cast %50 : vector<1x8x512xf32> to vector<8x512xf32>
    %cst_27 = arith.constant dense<0.000000e+00> : vector<8x512xf32>
    %52 = tpu.matmul %44, %12, %cst_27 {dimension_numbers = #tpu.dot_dimension_numbers<[1], [0], [0], [1], [0, 0, 1, 1], [], []>} : vector<8x128xf32>, vector<128x512xf32>, vector<8x512xf32> -> vector<8x512xf32>
    %53 = arith.addf %51, %52 : vector<8x512xf32>
    %54 = vector.extract_strided_slice %53 {offsets = [0, 0], sizes = [8, 128], strides = [1, 1]} : vector<8x512xf32> to vector<8x128xf32>
    %55 = arith.negf %54 : vector<8x128xf32>
    %56 = math.exp %55 : vector<8x128xf32>
    %cst_28 = arith.constant 1.000000e+00 : f32
    %57 = vector.broadcast %cst_28 : f32 to vector<8x128xf32>
    %58 = arith.addf %57, %56 : vector<8x128xf32>
    %59 = arith.divf %57, %58 : vector<8x128xf32>
    %60 = vector.extract_strided_slice %53 {offsets = [0, 128], sizes = [8, 128], strides = [1, 1]} : vector<8x512xf32> to vector<8x128xf32>
    %61 = arith.negf %60 : vector<8x128xf32>
    %62 = math.exp %61 : vector<8x128xf32>
    %cst_29 = arith.constant 1.000000e+00 : f32
    %63 = vector.broadcast %cst_29 : f32 to vector<8x128xf32>
    %64 = arith.addf %63, %62 : vector<8x128xf32>
    %65 = arith.divf %63, %64 : vector<8x128xf32>
    %66 = vector.extract_strided_slice %53 {offsets = [0, 256], sizes = [8, 128], strides = [1, 1]} : vector<8x512xf32> to vector<8x128xf32>
    %67 = math.tanh %66 : vector<8x128xf32>
    %68 = vector.extract_strided_slice %53 {offsets = [0, 384], sizes = [8, 128], strides = [1, 1]} : vector<8x512xf32> to vector<8x128xf32>
    %69 = arith.negf %68 : vector<8x128xf32>
    %70 = math.exp %69 : vector<8x128xf32>
    %cst_30 = arith.constant 1.000000e+00 : f32
    %71 = vector.broadcast %cst_30 : f32 to vector<8x128xf32>
    %72 = arith.addf %71, %70 : vector<8x128xf32>
    %73 = arith.divf %71, %72 : vector<8x128xf32>
    %74 = arith.mulf %65, %42 : vector<8x128xf32>
    %75 = arith.mulf %59, %67 : vector<8x128xf32>
    %76 = arith.addf %74, %75 : vector<8x128xf32>
    %77 = math.tanh %76 : vector<8x128xf32>
    %78 = arith.mulf %73, %77 : vector<8x128xf32>
    %79 = arith.index_cast %c1_i32 : i32 to index
    %c0_31 = arith.constant 0 : index
    %c0_32 = arith.constant 0 : index
    %80 = vector.load %arg8[%79, %c0_31, %c0_32] : memref<8x8x128xf32, #tpu.memory_space<vmem>>, vector<1x8x128xf32>
    %81 = vector.shape_cast %80 : vector<1x8x128xf32> to vector<8x128xf32>
    %82 = vector.shape_cast %78 : vector<8x128xf32> to vector<1x8x128xf32>
    tpu.vector_store %arg8[%79, %c0_31, %c0_32], %82 {strides = array<i32>} : memref<8x8x128xf32, #tpu.memory_space<vmem>>, vector<1x8x128xf32>,
    %c2_i32 = arith.constant 2 : i32
    %83 = arith.index_cast %c2_i32 : i32 to index
    %c0_33 = arith.constant 0 : index
    %c0_34 = arith.constant 0 : index
    %84 = vector.load %arg13[%83, %c0_33, %c0_34] : memref<8x8x512xf32, #tpu.memory_space<vmem>>, vector<1x8x512xf32>
    %85 = vector.shape_cast %84 : vector<1x8x512xf32> to vector<8x512xf32>
    %cst_35 = arith.constant dense<0.000000e+00> : vector<8x512xf32>
    %86 = tpu.matmul %78, %12, %cst_35 {dimension_numbers = #tpu.dot_dimension_numbers<[1], [0], [0], [1], [0, 0, 1, 1], [], []>} : vector<8x128xf32>, vector<128x512xf32>, vector<8x512xf32> -> vector<8x512xf32>
    %87 = arith.addf %85, %86 : vector<8x512xf32>
    %88 = vector.extract_strided_slice %87 {offsets = [0, 0], sizes = [8, 128], strides = [1, 1]} : vector<8x512xf32> to vector<8x128xf32>
    %89 = arith.negf %88 : vector<8x128xf32>
    %90 = math.exp %89 : vector<8x128xf32>
    %cst_36 = arith.constant 1.000000e+00 : f32
    %91 = vector.broadcast %cst_36 : f32 to vector<8x128xf32>
    %92 = arith.addf %91, %90 : vector<8x128xf32>
    %93 = arith.divf %91, %92 : vector<8x128xf32>
    %94 = vector.extract_strided_slice %87 {offsets = [0, 128], sizes = [8, 128], strides = [1, 1]} : vector<8x512xf32> to vector<8x128xf32>
    %95 = arith.negf %94 : vector<8x128xf32>
    %96 = math.exp %95 : vector<8x128xf32>
    %cst_37 = arith.constant 1.000000e+00 : f32
    %97 = vector.broadcast %cst_37 : f32 to vector<8x128xf32>
    %98 = arith.addf %97, %96 : vector<8x128xf32>
    %99 = arith.divf %97, %98 : vector<8x128xf32>
    %100 = vector.extract_strided_slice %87 {offsets = [0, 256], sizes = [8, 128], strides = [1, 1]} : vector<8x512xf32> to vector<8x128xf32>
    %101 = math.tanh %100 : vector<8x128xf32>
    %102 = vector.extract_strided_slice %87 {offsets = [0, 384], sizes = [8, 128], strides = [1, 1]} : vector<8x512xf32> to vector<8x128xf32>
    %103 = arith.negf %102 : vector<8x128xf32>
    %104 = math.exp %103 : vector<8x128xf32>
    %cst_38 = arith.constant 1.000000e+00 : f32
    %105 = vector.broadcast %cst_38 : f32 to vector<8x128xf32>
    %106 = arith.addf %105, %104 : vector<8x128xf32>
    %107 = arith.divf %105, %106 : vector<8x128xf32>
    %108 = arith.mulf %99, %76 : vector<8x128xf32>
    %109 = arith.mulf %93, %101 : vector<8x128xf32>
    %110 = arith.addf %108, %109 : vector<8x128xf32>
    %111 = math.tanh %110 : vector<8x128xf32>
    %112 = arith.mulf %107, %111 : vector<8x128xf32>
    %113 = arith.index_cast %c2_i32 : i32 to index
    %c0_39 = arith.constant 0 : index
    %c0_40 = arith.constant 0 : index
    %114 = vector.load %arg8[%113, %c0_39, %c0_40] : memref<8x8x128xf32, #tpu.memory_space<vmem>>, vector<1x8x128xf32>
    %115 = vector.shape_cast %114 : vector<1x8x128xf32> to vector<8x128xf32>
    %116 = vector.shape_cast %112 : vector<8x128xf32> to vector<1x8x128xf32>
    tpu.vector_store %arg8[%113, %c0_39, %c0_40], %116 {strides = array<i32>} : memref<8x8x128xf32, #tpu.memory_space<vmem>>, vector<1x8x128xf32>,
    %c3_i32 = arith.constant 3 : i32
    %117 = arith.index_cast %c3_i32 : i32 to index
    %c0_41 = arith.constant 0 : index
    %c0_42 = arith.constant 0 : index
    %118 = vector.load %arg13[%117, %c0_41, %c0_42] : memref<8x8x512xf32, #tpu.memory_space<vmem>>, vector<1x8x512xf32>
    %119 = vector.shape_cast %118 : vector<1x8x512xf32> to vector<8x512xf32>
    %cst_43 = arith.constant dense<0.000000e+00> : vector<8x512xf32>
    %120 = tpu.matmul %112, %12, %cst_43 {dimension_numbers = #tpu.dot_dimension_numbers<[1], [0], [0], [1], [0, 0, 1, 1], [], []>} : vector<8x128xf32>, vector<128x512xf32>, vector<8x512xf32> -> vector<8x512xf32>
    %121 = arith.addf %119, %120 : vector<8x512xf32>
    %122 = vector.extract_strided_slice %121 {offsets = [0, 0], sizes = [8, 128], strides = [1, 1]} : vector<8x512xf32> to vector<8x128xf32>
    %123 = arith.negf %122 : vector<8x128xf32>
    %124 = math.exp %123 : vector<8x128xf32>
    %cst_44 = arith.constant 1.000000e+00 : f32
    %125 = vector.broadcast %cst_44 : f32 to vector<8x128xf32>
    %126 = arith.addf %125, %124 : vector<8x128xf32>
    %127 = arith.divf %125, %126 : vector<8x128xf32>
    %128 = vector.extract_strided_slice %121 {offsets = [0, 128], sizes = [8, 128], strides = [1, 1]} : vector<8x512xf32> to vector<8x128xf32>
    %129 = arith.negf %128 : vector<8x128xf32>
    %130 = math.exp %129 : vector<8x128xf32>
    %cst_45 = arith.constant 1.000000e+00 : f32
    %131 = vector.broadcast %cst_45 : f32 to vector<8x128xf32>
    %132 = arith.addf %131, %130 : vector<8x128xf32>
    %133 = arith.divf %131, %132 : vector<8x128xf32>
    %134 = vector.extract_strided_slice %121 {offsets = [0, 256], sizes = [8, 128], strides = [1, 1]} : vector<8x512xf32> to vector<8x128xf32>
    %135 = math.tanh %134 : vector<8x128xf32>
    %136 = vector.extract_strided_slice %121 {offsets = [0, 384], sizes = [8, 128], strides = [1, 1]} : vector<8x512xf32> to vector<8x128xf32>
    %137 = arith.negf %136 : vector<8x128xf32>
    %138 = math.exp %137 : vector<8x128xf32>
    %cst_46 = arith.constant 1.000000e+00 : f32
    %139 = vector.broadcast %cst_46 : f32 to vector<8x128xf32>
    %140 = arith.addf %139, %138 : vector<8x128xf32>
    %141 = arith.divf %139, %140 : vector<8x128xf32>
    %142 = arith.mulf %133, %110 : vector<8x128xf32>
    %143 = arith.mulf %127, %135 : vector<8x128xf32>
    %144 = arith.addf %142, %143 : vector<8x128xf32>
    %145 = math.tanh %144 : vector<8x128xf32>
    %146 = arith.mulf %141, %145 : vector<8x128xf32>
    %147 = arith.index_cast %c3_i32 : i32 to index
    %c0_47 = arith.constant 0 : index
    %c0_48 = arith.constant 0 : index
    %148 = vector.load %arg8[%147, %c0_47, %c0_48] : memref<8x8x128xf32, #tpu.memory_space<vmem>>, vector<1x8x128xf32>
    %149 = vector.shape_cast %148 : vector<1x8x128xf32> to vector<8x128xf32>
    %150 = vector.shape_cast %146 : vector<8x128xf32> to vector<1x8x128xf32>
    tpu.vector_store %arg8[%147, %c0_47, %c0_48], %150 {strides = array<i32>} : memref<8x8x128xf32, #tpu.memory_space<vmem>>, vector<1x8x128xf32>,
    %c4_i32 = arith.constant 4 : i32
    %151 = arith.index_cast %c4_i32 : i32 to index
    %c0_49 = arith.constant 0 : index
    %c0_50 = arith.constant 0 : index
    %152 = vector.load %arg13[%151, %c0_49, %c0_50] : memref<8x8x512xf32, #tpu.memory_space<vmem>>, vector<1x8x512xf32>
    %153 = vector.shape_cast %152 : vector<1x8x512xf32> to vector<8x512xf32>
    %cst_51 = arith.constant dense<0.000000e+00> : vector<8x512xf32>
    %154 = tpu.matmul %146, %12, %cst_51 {dimension_numbers = #tpu.dot_dimension_numbers<[1], [0], [0], [1], [0, 0, 1, 1], [], []>} : vector<8x128xf32>, vector<128x512xf32>, vector<8x512xf32> -> vector<8x512xf32>
    %155 = arith.addf %153, %154 : vector<8x512xf32>
    %156 = vector.extract_strided_slice %155 {offsets = [0, 0], sizes = [8, 128], strides = [1, 1]} : vector<8x512xf32> to vector<8x128xf32>
    %157 = arith.negf %156 : vector<8x128xf32>
    %158 = math.exp %157 : vector<8x128xf32>
    %cst_52 = arith.constant 1.000000e+00 : f32
    %159 = vector.broadcast %cst_52 : f32 to vector<8x128xf32>
    %160 = arith.addf %159, %158 : vector<8x128xf32>
    %161 = arith.divf %159, %160 : vector<8x128xf32>
    %162 = vector.extract_strided_slice %155 {offsets = [0, 128], sizes = [8, 128], strides = [1, 1]} : vector<8x512xf32> to vector<8x128xf32>
    %163 = arith.negf %162 : vector<8x128xf32>
    %164 = math.exp %163 : vector<8x128xf32>
    %cst_53 = arith.constant 1.000000e+00 : f32
    %165 = vector.broadcast %cst_53 : f32 to vector<8x128xf32>
    %166 = arith.addf %165, %164 : vector<8x128xf32>
    %167 = arith.divf %165, %166 : vector<8x128xf32>
    %168 = vector.extract_strided_slice %155 {offsets = [0, 256], sizes = [8, 128], strides = [1, 1]} : vector<8x512xf32> to vector<8x128xf32>
    %169 = math.tanh %168 : vector<8x128xf32>
    %170 = vector.extract_strided_slice %155 {offsets = [0, 384], sizes = [8, 128], strides = [1, 1]} : vector<8x512xf32> to vector<8x128xf32>
    %171 = arith.negf %170 : vector<8x128xf32>
    %172 = math.exp %171 : vector<8x128xf32>
    %cst_54 = arith.constant 1.000000e+00 : f32
    %173 = vector.broadcast %cst_54 : f32 to vector<8x128xf32>
    %174 = arith.addf %173, %172 : vector<8x128xf32>
    %175 = arith.divf %173, %174 : vector<8x128xf32>
    %176 = arith.mulf %167, %144 : vector<8x128xf32>
    %177 = arith.mulf %161, %169 : vector<8x128xf32>
    %178 = arith.addf %176, %177 : vector<8x128xf32>
    %179 = math.tanh %178 : vector<8x128xf32>
    %180 = arith.mulf %175, %179 : vector<8x128xf32>
    %181 = arith.index_cast %c4_i32 : i32 to index
    %c0_55 = arith.constant 0 : index
    %c0_56 = arith.constant 0 : index
    %182 = vector.load %arg8[%181, %c0_55, %c0_56] : memref<8x8x128xf32, #tpu.memory_space<vmem>>, vector<1x8x128xf32>
    %183 = vector.shape_cast %182 : vector<1x8x128xf32> to vector<8x128xf32>
    %184 = vector.shape_cast %180 : vector<8x128xf32> to vector<1x8x128xf32>
    tpu.vector_store %arg8[%181, %c0_55, %c0_56], %184 {strides = array<i32>} : memref<8x8x128xf32, #tpu.memory_space<vmem>>, vector<1x8x128xf32>,
    %c5_i32 = arith.constant 5 : i32
    %185 = arith.index_cast %c5_i32 : i32 to index
    %c0_57 = arith.constant 0 : index
    %c0_58 = arith.constant 0 : index
    %186 = vector.load %arg13[%185, %c0_57, %c0_58] : memref<8x8x512xf32, #tpu.memory_space<vmem>>, vector<1x8x512xf32>
    %187 = vector.shape_cast %186 : vector<1x8x512xf32> to vector<8x512xf32>
    %cst_59 = arith.constant dense<0.000000e+00> : vector<8x512xf32>
    %188 = tpu.matmul %180, %12, %cst_59 {dimension_numbers = #tpu.dot_dimension_numbers<[1], [0], [0], [1], [0, 0, 1, 1], [], []>} : vector<8x128xf32>, vector<128x512xf32>, vector<8x512xf32> -> vector<8x512xf32>
    %189 = arith.addf %187, %188 : vector<8x512xf32>
    %190 = vector.extract_strided_slice %189 {offsets = [0, 0], sizes = [8, 128], strides = [1, 1]} : vector<8x512xf32> to vector<8x128xf32>
    %191 = arith.negf %190 : vector<8x128xf32>
    %192 = math.exp %191 : vector<8x128xf32>
    %cst_60 = arith.constant 1.000000e+00 : f32
    %193 = vector.broadcast %cst_60 : f32 to vector<8x128xf32>
    %194 = arith.addf %193, %192 : vector<8x128xf32>
    %195 = arith.divf %193, %194 : vector<8x128xf32>
    %196 = vector.extract_strided_slice %189 {offsets = [0, 128], sizes = [8, 128], strides = [1, 1]} : vector<8x512xf32> to vector<8x128xf32>
    %197 = arith.negf %196 : vector<8x128xf32>
    %198 = math.exp %197 : vector<8x128xf32>
    %cst_61 = arith.constant 1.000000e+00 : f32
    %199 = vector.broadcast %cst_61 : f32 to vector<8x128xf32>
    %200 = arith.addf %199, %198 : vector<8x128xf32>
    %201 = arith.divf %199, %200 : vector<8x128xf32>
    %202 = vector.extract_strided_slice %189 {offsets = [0, 256], sizes = [8, 128], strides = [1, 1]} : vector<8x512xf32> to vector<8x128xf32>
    %203 = math.tanh %202 : vector<8x128xf32>
    %204 = vector.extract_strided_slice %189 {offsets = [0, 384], sizes = [8, 128], strides = [1, 1]} : vector<8x512xf32> to vector<8x128xf32>
    %205 = arith.negf %204 : vector<8x128xf32>
    %206 = math.exp %205 : vector<8x128xf32>
    %cst_62 = arith.constant 1.000000e+00 : f32
    %207 = vector.broadcast %cst_62 : f32 to vector<8x128xf32>
    %208 = arith.addf %207, %206 : vector<8x128xf32>
    %209 = arith.divf %207, %208 : vector<8x128xf32>
    %210 = arith.mulf %201, %178 : vector<8x128xf32>
    %211 = arith.mulf %195, %203 : vector<8x128xf32>
    %212 = arith.addf %210, %211 : vector<8x128xf32>
    %213 = math.tanh %212 : vector<8x128xf32>
    %214 = arith.mulf %209, %213 : vector<8x128xf32>
    %215 = arith.index_cast %c5_i32 : i32 to index
    %c0_63 = arith.constant 0 : index
    %c0_64 = arith.constant 0 : index
    %216 = vector.load %arg8[%215, %c0_63, %c0_64] : memref<8x8x128xf32, #tpu.memory_space<vmem>>, vector<1x8x128xf32>
    %217 = vector.shape_cast %216 : vector<1x8x128xf32> to vector<8x128xf32>
    %218 = vector.shape_cast %214 : vector<8x128xf32> to vector<1x8x128xf32>
    tpu.vector_store %arg8[%215, %c0_63, %c0_64], %218 {strides = array<i32>} : memref<8x8x128xf32, #tpu.memory_space<vmem>>, vector<1x8x128xf32>,
    %c6_i32 = arith.constant 6 : i32
    %219 = arith.index_cast %c6_i32 : i32 to index
    %c0_65 = arith.constant 0 : index
    %c0_66 = arith.constant 0 : index
    %220 = vector.load %arg13[%219, %c0_65, %c0_66] : memref<8x8x512xf32, #tpu.memory_space<vmem>>, vector<1x8x512xf32>
    %221 = vector.shape_cast %220 : vector<1x8x512xf32> to vector<8x512xf32>
    %cst_67 = arith.constant dense<0.000000e+00> : vector<8x512xf32>
    %222 = tpu.matmul %214, %12, %cst_67 {dimension_numbers = #tpu.dot_dimension_numbers<[1], [0], [0], [1], [0, 0, 1, 1], [], []>} : vector<8x128xf32>, vector<128x512xf32>, vector<8x512xf32> -> vector<8x512xf32>
    %223 = arith.addf %221, %222 : vector<8x512xf32>
    %224 = vector.extract_strided_slice %223 {offsets = [0, 0], sizes = [8, 128], strides = [1, 1]} : vector<8x512xf32> to vector<8x128xf32>
    %225 = arith.negf %224 : vector<8x128xf32>
    %226 = math.exp %225 : vector<8x128xf32>
    %cst_68 = arith.constant 1.000000e+00 : f32
    %227 = vector.broadcast %cst_68 : f32 to vector<8x128xf32>
    %228 = arith.addf %227, %226 : vector<8x128xf32>
    %229 = arith.divf %227, %228 : vector<8x128xf32>
    %230 = vector.extract_strided_slice %223 {offsets = [0, 128], sizes = [8, 128], strides = [1, 1]} : vector<8x512xf32> to vector<8x128xf32>
    %231 = arith.negf %230 : vector<8x128xf32>
    %232 = math.exp %231 : vector<8x128xf32>
    %cst_69 = arith.constant 1.000000e+00 : f32
    %233 = vector.broadcast %cst_69 : f32 to vector<8x128xf32>
    %234 = arith.addf %233, %232 : vector<8x128xf32>
    %235 = arith.divf %233, %234 : vector<8x128xf32>
    %236 = vector.extract_strided_slice %223 {offsets = [0, 256], sizes = [8, 128], strides = [1, 1]} : vector<8x512xf32> to vector<8x128xf32>
    %237 = math.tanh %236 : vector<8x128xf32>
    %238 = vector.extract_strided_slice %223 {offsets = [0, 384], sizes = [8, 128], strides = [1, 1]} : vector<8x512xf32> to vector<8x128xf32>
    %239 = arith.negf %238 : vector<8x128xf32>
    %240 = math.exp %239 : vector<8x128xf32>
    %cst_70 = arith.constant 1.000000e+00 : f32
    %241 = vector.broadcast %cst_70 : f32 to vector<8x128xf32>
    %242 = arith.addf %241, %240 : vector<8x128xf32>
    %243 = arith.divf %241, %242 : vector<8x128xf32>
    %244 = arith.mulf %235, %212 : vector<8x128xf32>
    %245 = arith.mulf %229, %237 : vector<8x128xf32>
    %246 = arith.addf %244, %245 : vector<8x128xf32>
    %247 = math.tanh %246 : vector<8x128xf32>
    %248 = arith.mulf %243, %247 : vector<8x128xf32>
    %249 = arith.index_cast %c6_i32 : i32 to index
    %c0_71 = arith.constant 0 : index
    %c0_72 = arith.constant 0 : index
    %250 = vector.load %arg8[%249, %c0_71, %c0_72] : memref<8x8x128xf32, #tpu.memory_space<vmem>>, vector<1x8x128xf32>
    %251 = vector.shape_cast %250 : vector<1x8x128xf32> to vector<8x128xf32>
    %252 = vector.shape_cast %248 : vector<8x128xf32> to vector<1x8x128xf32>
    tpu.vector_store %arg8[%249, %c0_71, %c0_72], %252 {strides = array<i32>} : memref<8x8x128xf32, #tpu.memory_space<vmem>>, vector<1x8x128xf32>,
    %c7_i32 = arith.constant 7 : i32
    %253 = arith.index_cast %c7_i32 : i32 to index
    %c0_73 = arith.constant 0 : index
    %c0_74 = arith.constant 0 : index
    %254 = vector.load %arg13[%253, %c0_73, %c0_74] : memref<8x8x512xf32, #tpu.memory_space<vmem>>, vector<1x8x512xf32>
    %255 = vector.shape_cast %254 : vector<1x8x512xf32> to vector<8x512xf32>
    %cst_75 = arith.constant dense<0.000000e+00> : vector<8x512xf32>
    %256 = tpu.matmul %248, %12, %cst_75 {dimension_numbers = #tpu.dot_dimension_numbers<[1], [0], [0], [1], [0, 0, 1, 1], [], []>} : vector<8x128xf32>, vector<128x512xf32>, vector<8x512xf32> -> vector<8x512xf32>
    %257 = arith.addf %255, %256 : vector<8x512xf32>
    %258 = vector.extract_strided_slice %257 {offsets = [0, 0], sizes = [8, 128], strides = [1, 1]} : vector<8x512xf32> to vector<8x128xf32>
    %259 = arith.negf %258 : vector<8x128xf32>
    %260 = math.exp %259 : vector<8x128xf32>
    %cst_76 = arith.constant 1.000000e+00 : f32
    %261 = vector.broadcast %cst_76 : f32 to vector<8x128xf32>
    %262 = arith.addf %261, %260 : vector<8x128xf32>
    %263 = arith.divf %261, %262 : vector<8x128xf32>
    %264 = vector.extract_strided_slice %257 {offsets = [0, 128], sizes = [8, 128], strides = [1, 1]} : vector<8x512xf32> to vector<8x128xf32>
    %265 = arith.negf %264 : vector<8x128xf32>
    %266 = math.exp %265 : vector<8x128xf32>
    %cst_77 = arith.constant 1.000000e+00 : f32
    %267 = vector.broadcast %cst_77 : f32 to vector<8x128xf32>
    %268 = arith.addf %267, %266 : vector<8x128xf32>
    %269 = arith.divf %267, %268 : vector<8x128xf32>
    %270 = vector.extract_strided_slice %257 {offsets = [0, 256], sizes = [8, 128], strides = [1, 1]} : vector<8x512xf32> to vector<8x128xf32>
    %271 = math.tanh %270 : vector<8x128xf32>
    %272 = vector.extract_strided_slice %257 {offsets = [0, 384], sizes = [8, 128], strides = [1, 1]} : vector<8x512xf32> to vector<8x128xf32>
    %273 = arith.negf %272 : vector<8x128xf32>
    %274 = math.exp %273 : vector<8x128xf32>
    %cst_78 = arith.constant 1.000000e+00 : f32
    %275 = vector.broadcast %cst_78 : f32 to vector<8x128xf32>
    %276 = arith.addf %275, %274 : vector<8x128xf32>
    %277 = arith.divf %275, %276 : vector<8x128xf32>
    %278 = arith.mulf %269, %246 : vector<8x128xf32>
    %279 = arith.mulf %263, %271 : vector<8x128xf32>
    %280 = arith.addf %278, %279 : vector<8x128xf32>
    %281 = math.tanh %280 : vector<8x128xf32>
    %282 = arith.mulf %277, %281 : vector<8x128xf32>
    %283 = arith.index_cast %c7_i32 : i32 to index
    %c0_79 = arith.constant 0 : index
    %c0_80 = arith.constant 0 : index
    %284 = vector.load %arg8[%283, %c0_79, %c0_80] : memref<8x8x128xf32, #tpu.memory_space<vmem>>, vector<1x8x128xf32>
    %285 = vector.shape_cast %284 : vector<1x8x128xf32> to vector<8x128xf32>
    %286 = vector.shape_cast %282 : vector<8x128xf32> to vector<1x8x128xf32>
    tpu.vector_store %arg8[%283, %c0_79, %c0_80], %286 {strides = array<i32>} : memref<8x8x128xf32, #tpu.memory_space<vmem>>, vector<1x8x128xf32>,
    %c8_i32 = arith.constant 8 : i32
    %c0_81 = arith.constant 0 : index
    %c0_82 = arith.constant 0 : index
    %287 = vector.load %arg11[%c0_81, %c0_82] : memref<8x128xf32, #tpu.memory_space<vmem>>, vector<8x128xf32>
    tpu.vector_store %arg11[%c0_81, %c0_82], %282 {strides = array<i32>} : memref<8x128xf32, #tpu.memory_space<vmem>>, vector<8x128xf32>,
    %c0_83 = arith.constant 0 : index
    %c0_84 = arith.constant 0 : index
    %288 = vector.load %arg12[%c0_83, %c0_84] : memref<8x128xf32, #tpu.memory_space<vmem>>, vector<8x128xf32>
    tpu.vector_store %arg12[%c0_83, %c0_84], %280 {strides = array<i32>} : memref<8x128xf32, #tpu.memory_space<vmem>>, vector<8x128xf32>,
    %c0_85 = arith.constant 0 : index
    %c0_86 = arith.constant 0 : index
    %289 = vector.load %arg9[%c0_85, %c0_86] : memref<8x128xf32, #tpu.memory_space<vmem>>, vector<8x128xf32>
    tpu.vector_store %arg9[%c0_85, %c0_86], %282 {strides = array<i32>} : memref<8x128xf32, #tpu.memory_space<vmem>>, vector<8x128xf32>,
    %c0_87 = arith.constant 0 : index
    %c0_88 = arith.constant 0 : index
    %290 = vector.load %arg10[%c0_87, %c0_88] : memref<8x128xf32, #tpu.memory_space<vmem>>, vector<8x128xf32>
    tpu.vector_store %arg10[%c0_87, %c0_88], %280 {strides = array<i32>} : memref<8x128xf32, #tpu.memory_space<vmem>>, vector<8x128xf32>,
    return
  }
  func.func @transform_0(%arg0: i32, %arg1: i32) -> (i32, i32, i32) {
    %c0_i32 = arith.constant 0 : i32
    %c0_i32_0 = arith.constant 0 : i32
    return %arg1, %arg0, %c0_i32 : i32, i32, i32
  }
  func.func @transform_1(%arg0: i32, %arg1: i32) -> (i32, i32) {
    %c0_i32 = arith.constant 0 : i32
    %c0_i32_0 = arith.constant 0 : i32
    return %arg0, %c0_i32 : i32, i32
  }
  func.func @transform_2(%arg0: i32, %arg1: i32) -> (i32, i32) {
    %c0_i32 = arith.constant 0 : i32
    %c0_i32_0 = arith.constant 0 : i32
    return %arg0, %c0_i32 : i32, i32
  }
  func.func @transform_3(%arg0: i32, %arg1: i32) -> (i32, i32) {
    %c0_i32 = arith.constant 0 : i32
    %c0_i32_0 = arith.constant 0 : i32
    %c0_i32_1 = arith.constant 0 : i32
    return %c0_i32, %c0_i32_0 : i32, i32
  }
  func.func @transform_4(%arg0: i32, %arg1: i32) -> (i32, i32) {
    %c0_i32 = arith.constant 0 : i32
    %c0_i32_0 = arith.constant 0 : i32
    %c0_i32_1 = arith.constant 0 : i32
    return %c0_i32, %c0_i32_0 : i32, i32
  }
  func.func @transform_5(%arg0: i32, %arg1: i32) -> (i32, i32) {
    %c0_i32 = arith.constant 0 : i32
    %c0_i32_0 = arith.constant 0 : i32
    %c0_i32_1 = arith.constant 0 : i32
    return %c0_i32, %c0_i32_0 : i32, i32
  }
  func.func @transform_6(%arg0: i32, %arg1: i32) -> (i32, i32, i32) {
    %c0_i32 = arith.constant 0 : i32
    %c0_i32_0 = arith.constant 0 : i32
    return %arg1, %arg0, %c0_i32 : i32, i32, i32
  }
  func.func @transform_7(%arg0: i32, %arg1: i32) -> (i32, i32) {
    %c0_i32 = arith.constant 0 : i32
    %c0_i32_0 = arith.constant 0 : i32
    return %arg0, %c0_i32 : i32, i32
  }
  func.func @transform_8(%arg0: i32, %arg1: i32) -> (i32, i32) {
    %c0_i32 = arith.constant 0 : i32
    %c0_i32_0 = arith.constant 0 : i32
    return %arg0, %c0_i32 : i32, i32
  }
}

</mosaic_0001>

<llo_original>
// kernel: _lambda_.5
$region0: #{_lambda_.5}
  #allocation0 [shape = 'u32[]', space=smem, size = 0x4, offset = 0x4, fixed_abs, tag = 'smem constant byte address 0x4 - core index']
  #allocation1 [shape = 'u32[144,128]{1,0:T(1,128)}', space=vmem, size = 0x12000, scoped, tag = 'internal scratch']
  %s0 = inlined_call_operand.vmem [shape: f32[64,128], index: 0, kind: input, shape index: {}]
  %s1 = inlined_call_operand.vmem [shape: f32[128,128], index: 1, kind: input, shape index: {}]
  %s2 = inlined_call_operand.vmem [shape: f32[1,128], index: 2, kind: input, shape index: {}]
  %s3 = inlined_call_operand.vmem [shape: f32[64,128], index: 3, kind: output, shape index: {}]
  %s4 = sld [smem:[#allocation0]]
  $region22: #{_lambda_.5} parent=0
    _
  %s6 = ssub.s32 1, %s4
  %s7 = scalar_select 0, %s6, %s4
  // Predicated region
  $region2: #{_lambda_.5} parent=0 // pred_check
    _
  $region3: #{_lambda_.5} parent=0 // pred_check_branch
    %9 = sbr.rel (0) target = $region5
  $region4: #{_lambda_.5} parent=0 // pred_region
    _
  $region5: #{_lambda_.5} parent=0 // pred_fallthru
    _
  // Predicated region
  $region6: #{_lambda_.5} parent=0 // pred_check
    _
  $region7: #{_lambda_.5} parent=0 // pred_check_branch
    %11 = sbr.rel (0) target = $region9
  $region8: #{_lambda_.5} parent=0 // pred_region
    _
  $region9: #{_lambda_.5} parent=0 // pred_fallthru
    _
  // Predicated region
  $region10: #{_lambda_.5} parent=0 // pred_check
    _
  $region11: #{_lambda_.5} parent=0 // pred_check_branch
    %13 = sbr.rel (0) target = $region13
  $region12: #{_lambda_.5} parent=0 // pred_region
    _
  $region13: #{_lambda_.5} parent=0 // pred_fallthru
    _
  %v14 = vld [vmem:[%s0] sm:$0xff]
  %v15 = vld [vmem:[%s0 + $0x8] sm:$0xff]
  %v16 = vld [vmem:[%s0 + $0x10] sm:$0xff]
  %v17 = vld [vmem:[%s0 + $0x18] sm:$0xff]
  %v18 = vld [vmem:[%s0 + $0x20] sm:$0xff]
  %v19 = vld [vmem:[%s0 + $0x28] sm:$0xff]
  %v20 = vld [vmem:[%s0 + $0x30] sm:$0xff]
  %v21 = vld [vmem:[%s0 + $0x38] sm:$0xff]
  %v22 = vld [vmem:[%s1] sm:$0xff]
  %v23 = vld [vmem:[%s1 + $0x8] sm:$0xff]
  %v24 = vld [vmem:[%s1 + $0x10] sm:$0xff]
  %v25 = vld [vmem:[%s1 + $0x18] sm:$0xff]
  %v26 = vld [vmem:[%s1 + $0x20] sm:$0xff]
  %v27 = vld [vmem:[%s1 + $0x28] sm:$0xff]
  %v28 = vld [vmem:[%s1 + $0x30] sm:$0xff]
  %v29 = vld [vmem:[%s1 + $0x38] sm:$0xff]
  %v30 = vld [vmem:[%s1 + $0x40] sm:$0xff]
  %v31 = vld [vmem:[%s1 + $0x48] sm:$0xff]
  %v32 = vld [vmem:[%s1 + $0x50] sm:$0xff]
  %v33 = vld [vmem:[%s1 + $0x58] sm:$0xff]
  %v34 = vld [vmem:[%s1 + $0x60] sm:$0xff]
  %v35 = vld [vmem:[%s1 + $0x68] sm:$0xff]
  %v36 = vld [vmem:[%s1 + $0x70] sm:$0xff]
  %v37 = vld [vmem:[%s1 + $0x78] sm:$0xff]
  %v38 = vld [vmem:[%s2] sm:$0x1]
  %v40 = vlaneseq
  %v41 = vshrl.u32 %v40, 7
  %v42 = vsub.s32 0, %v41
  %v43 = vrot.slane %v38, %v42
  %45 = vmatprep.subr.mxu0 0.0
  %46 = vmatpush1.msra.mxu0 %v37
  %47 = vmatprep.subr.mxu0 0.0
  %48 = vmatpush1.msra.mxu0 %v36
  %49 = vmatprep.subr.mxu0 0.0
  %50 = vmatpush1.msra.mxu0 %v35
  %51 = vmatprep.subr.mxu0 0.0
  %52 = vmatpush1.msra.mxu0 %v34
  %53 = vmatprep.subr.mxu0 0.0
  %54 = vmatpush1.msra.mxu0 %v33
  %55 = vmatprep.subr.mxu0 0.0
  %56 = vmatpush1.msra.mxu0 %v32
  %57 = vmatprep.subr.mxu0 0.0
  %58 = vmatpush1.msra.mxu0 %v31
  %59 = vmatprep.subr.mxu0 0.0
  %60 = vmatpush1.msra.mxu0 %v30
  %61 = vmatprep.subr.mxu0 0.0
  %62 = vmatpush1.msra.mxu0 %v29
  %63 = vmatprep.subr.mxu0 0.0
  %64 = vmatpush1.msra.mxu0 %v28
  %65 = vmatprep.subr.mxu0 0.0
  %66 = vmatpush1.msra.mxu0 %v27
  %67 = vmatprep.subr.mxu0 0.0
  %68 = vmatpush1.msra.mxu0 %v26
  %69 = vmatprep.subr.mxu0 0.0
  %70 = vmatpush1.msra.mxu0 %v25
  %71 = vmatprep.subr.mxu0 0.0
  %72 = vmatpush1.msra.mxu0 %v24
  %73 = vmatprep.subr.mxu0 0.0
  %74 = vmatpush1.msra.mxu0 %v23
  %75 = vmatprep.subr.mxu0 0.0
  %76 = vmatpush1.msra.mxu0 %v22
  %77 = vmatprep.subr.mxu0 0.0
  %78 = vmatpush2.msra.mxu0 0.0
  %79 = vmatprep.subr.mxu0 0.0
  %80 = vmatpush2.msra.mxu0 0.0
  %81 = vmatprep.subr.mxu0 0.0
  %82 = vmatpush2.msra.mxu0 0.0
  %83 = vmatprep.subr.mxu0 0.0
  %84 = vmatpush2.msra.mxu0 0.0
  %85 = vmatprep.subr.mxu0 0.0
  %86 = vmatpush2.msra.mxu0 0.0
  %87 = vmatprep.subr.mxu0 0.0
  %88 = vmatpush2.msra.mxu0 0.0
  %89 = vmatprep.subr.mxu0 0.0
  %90 = vmatpush2.msra.mxu0 0.0
  %91 = vmatprep.subr.mxu0 0.0
  %92 = vmatpush2.msra.mxu0 0.0
  %93 = vmatprep.subr.mxu0 0.0
  %94 = vmatpush2.msra.mxu0 0.0
  %95 = vmatprep.subr.mxu0 0.0
  %96 = vmatpush2.msra.mxu0 0.0
  %97 = vmatprep.subr.mxu0 0.0
  %98 = vmatpush2.msra.mxu0 0.0
  %99 = vmatprep.subr.mxu0 0.0
  %100 = vmatpush2.msra.mxu0 0.0
  %101 = vmatprep.subr.mxu0 0.0
  %102 = vmatpush2.msra.mxu0 0.0
  %103 = vmatprep.subr.mxu0 0.0
  %104 = vmatpush2.msra.mxu0 0.0
  %105 = vmatprep.subr.mxu0 0.0
  %106 = vmatpush2.msra.mxu0 0.0
  %107 = vmatprep.subr.mxu0 0.0
  %108 = vmatpush2.msra.mxu0 0.0
  %109 = vmatprep.mubr.f32.mxu0 0.0
  %110 = vmatmul.mubr.f32.gmra.mxu0 %v14
  %v111 = vpop.f32.mrf.mxu0
  %v112 = vadd.f32 %v43, %v111
  %v113 = vpop.f32.mrf.mxu0
  %114 = vmatprep.mubr.f32.mxu0 0.0
  %115 = vmatmul.mubr.f32.gmra.mxu0 %v15
  %v116 = vpop.f32.mrf.mxu0
  %v117 = vadd.f32 %v43, %v116
  %v118 = vpop.f32.mrf.mxu0
  %119 = vmatprep.mubr.f32.mxu0 0.0
  %120 = vmatmul.mubr.f32.gmra.mxu0 %v16
  %v121 = vpop.f32.mrf.mxu0
  %v122 = vadd.f32 %v43, %v121
  %v123 = vpop.f32.mrf.mxu0
  %124 = vmatprep.mubr.f32.mxu0 0.0
  %125 = vmatmul.mubr.f32.gmra.mxu0 %v17
  %v126 = vpop.f32.mrf.mxu0
  %v127 = vadd.f32 %v43, %v126
  %v128 = vpop.f32.mrf.mxu0
  %129 = vmatprep.mubr.f32.mxu0 0.0
  %130 = vmatmul.mubr.f32.gmra.mxu0 %v18
  %v131 = vpop.f32.mrf.mxu0
  %v132 = vadd.f32 %v43, %v131
  %v133 = vpop.f32.mrf.mxu0
  %134 = vmatprep.mubr.f32.mxu0 0.0
  %135 = vmatmul.mubr.f32.gmra.mxu0 %v19
  %v136 = vpop.f32.mrf.mxu0
  %v137 = vadd.f32 %v43, %v136
  %v138 = vpop.f32.mrf.mxu0
  %139 = vmatprep.mubr.f32.mxu0 0.0
  %140 = vmatmul.mubr.f32.gmra.mxu0 %v20
  %v141 = vpop.f32.mrf.mxu0
  %v142 = vadd.f32 %v43, %v141
  %v143 = vpop.f32.mrf.mxu0
  %144 = vmatprep.mubr.f32.mxu0 0.0
  %145 = vmatmul.mubr.f32.gmra.mxu0 %v21
  %v146 = vpop.f32.mrf.mxu0
  %v147 = vadd.f32 %v43, %v146
  %v148 = vpop.f32.mrf.mxu0
  %149 = vdwg.mxu0
  %150 = vst [vmem:[%s3] sm:$0xff] %v112
  %151 = vst [vmem:[%s3 + $0x8] sm:$0xff] %v117
  %152 = vst [vmem:[%s3 + $0x10] sm:$0xff] %v122
  %153 = vst [vmem:[%s3 + $0x18] sm:$0xff] %v127
  %154 = vst [vmem:[%s3 + $0x20] sm:$0xff] %v132
  %155 = vst [vmem:[%s3 + $0x28] sm:$0xff] %v137
  %156 = vst [vmem:[%s3 + $0x30] sm:$0xff] %v142
  %157 = vst [vmem:[%s3 + $0x38] sm:$0xff] %v147
  // Predicated region
  $region14: #{_lambda_.5} parent=0 // pred_check
    _
  $region15: #{_lambda_.5} parent=0 // pred_check_branch
    %159 = sbr.rel (0) target = $region17
  $region16: #{_lambda_.5} parent=0 // pred_region
    _
  $region17: #{_lambda_.5} parent=0 // pred_fallthru
    _
  // Predicated region
  $region18: #{_lambda_.5} parent=0 // pred_check
    _
  $region19: #{_lambda_.5} parent=0 // pred_check_branch
    %161 = sbr.rel (0) target = $region21
  $region20: #{_lambda_.5} parent=0 // pred_region
    _
  $region21: #{_lambda_.5} parent=0 // pred_fallthru
    _

// kernel: _lambda_.3
$region0: #{_lambda_.3}
  #allocation0 [shape = 'u32[]', space=smem, size = 0x4, offset = 0x4, fixed_abs, tag = 'smem constant byte address 0x4 - core index']
  #allocation1 [shape = 'u32[144,128]{1,0:T(1,128)}', space=vmem, size = 0x12000, scoped, tag = 'internal scratch']
  #allocation2 [shape = 'f32[8,128]{1,0:T(8,128)}', space=vmem, size = 0x1000, scoped, tag = 'scratch operand']
  #allocation3 [shape = 'f32[8,128]{1,0:T(8,128)}', space=vmem, size = 0x1000, scoped, tag = 'scratch operand']
  #allocation4 [shape = 'f32[8,8,512]{2,1,0:T(8,128)}', space=vmem, size = 0x20000, scoped, tag = 'scratch operand']
  %s0 = inlined_call_operand.vmem [shape: f32[8,8,128], index: 0, kind: input, shape index: {}]
  %s1 = inlined_call_operand.vmem [shape: f32[8,128], index: 1, kind: input, shape index: {}]
  %s2 = inlined_call_operand.vmem [shape: f32[8,128], index: 2, kind: input, shape index: {}]
  %s3 = inlined_call_operand.vmem [shape: f32[128,512], index: 3, kind: input, shape index: {}]
  %s4 = inlined_call_operand.hbm [shape: f32[128,512], index: 4, kind: input, shape index: {}]
  %s5 = inlined_call_operand.vmem [shape: f32[1,512], index: 5, kind: input, shape index: {}]
  %s6 = inlined_call_operand.vmem [shape: f32[8,8,128], index: 6, kind: output, shape index: {0}]
  %s7 = inlined_call_operand.vmem [shape: f32[8,128], index: 7, kind: output, shape index: {1}]
  %s8 = inlined_call_operand.vmem [shape: f32[8,128], index: 8, kind: output, shape index: {2}]
  %9 = xla_tuple %s6, %s7, %s8
  %s10 = sld [smem:[#allocation0]]
  $region58: #{_lambda_.3} parent=0
    _
  %s12 = ssub.s32 1, %s10
  %s13 = scalar_select 0, %s12, %s10
  $region1: #{_lambda_.3} parent=0
    #allocation5 [shape = 'u8[262144]{0}', space=vmem, size = 0x40000, scoped, tag = 'input window, operand 4, single buffered']
    #allocation6 [shape = 's32[1]{0}', space=sflag, size = 0x4, scoped, tag = 'scoped memory for _lambda_.3']
    %14 = vsyncpa [#allocation6], 0
    // Predicated region
    $region2: #{_lambda_.3} parent=1 // pred_check
      _
    $region3: #{_lambda_.3} parent=1 // pred_check_branch
      %16 = sbr.rel (0) target = $region5
    $region4: #{_lambda_.3} parent=1 // pred_region
      _
    $region5: #{_lambda_.3} parent=1 // pred_fallthru
      _
    // Predicated region
    $region6: #{_lambda_.3} parent=1 // pred_check
      _
    $region7: #{_lambda_.3} parent=1 // pred_check_branch
      %18 = sbr.rel (0) target = $region9
    $region8: #{_lambda_.3} parent=1 // pred_region
      _
    $region9: #{_lambda_.3} parent=1 // pred_fallthru
      _
    // Predicated region
    $region10: #{_lambda_.3} parent=1 // pred_check
      _
    $region11: #{_lambda_.3} parent=1 // pred_check_branch
      %20 = sbr.rel (0) target = $region13
    $region12: #{_lambda_.3} parent=1 // pred_region
      _
    $region13: #{_lambda_.3} parent=1 // pred_fallthru
      _
    // Predicated region
    $region14: #{_lambda_.3} parent=1 // pred_check
      _
    $region15: #{_lambda_.3} parent=1 // pred_check_branch
      %22 = sbr.rel (0) target = $region17
    $region16: #{_lambda_.3} parent=1 // pred_region
      _
    $region17: #{_lambda_.3} parent=1 // pred_fallthru
      _
    // Predicated region
    $region18: #{_lambda_.3} parent=1 // pred_check
      _
    $region19: #{_lambda_.3} parent=1 // pred_check_branch
      %24 = sbr.rel (0) target = $region21
    $region20: #{_lambda_.3} parent=1 // pred_region
      %s26 = ssub.s32 8192, 8192
      %27 = vsyncadd [#allocation6], %s26
      %s28 = sshll.u32 [#allocation5], 4
      %s29 = int_to_ptr.vmem [resolvable:$true] %s28
      %34 = dma.hbm_to_vmem [thread:$0]  %s4, 8192, %s29, [#allocation6], 512, 512, 32
    $region21: #{_lambda_.3} parent=1 // pred_fallthru
      _
    // Predicated region
    $region22: #{_lambda_.3} parent=1 // pred_check
      _
    $region23: #{_lambda_.3} parent=1 // pred_check_branch
      %36 = sbr.rel (0) target = $region25
    $region24: #{_lambda_.3} parent=1 // pred_region
      _
    $region25: #{_lambda_.3} parent=1 // pred_fallthru
      _
    // Predicated region
    $region26: #{_lambda_.3} parent=1 // pred_check
      _
    $region27: #{_lambda_.3} parent=1 // pred_check_branch
      %38 = sbr.rel (0) target = $region29
    $region28: #{_lambda_.3} parent=1 // pred_region
      %39 = dma.done [#allocation6], 8192
    $region29: #{_lambda_.3} parent=1 // pred_fallthru
      _
    %p40 = scmp.eq.s32.totalorder 0, 0
    // Predicated region
    $region30: #{_lambda_.3} parent=1 // pred_check
      %p41 = pneg %p40
    $region31: #{_lambda_.3} parent=1 // pred_check_branch
      %43 = sbr.rel (%p41) target = $region33
    $region32: #{_lambda_.3} parent=1 // pred_region
      %v44 = vld [vmem:[%s1] sm:$0xff]
      %45 = vst [vmem:[#allocation2] sm:$0xff] %v44
      %v46 = vld [vmem:[%s2] sm:$0xff]
      %47 = vst [vmem:[#allocation3] sm:$0xff] %v46
    $region33: #{_lambda_.3} parent=1 // pred_fallthru
      _
    %v48 = vld [vmem:[%s0] sm:$0xff]
    %v49 = vld [vmem:[%s0 + $0x8] sm:$0xff]
    %v50 = vld [vmem:[%s0 + $0x10] sm:$0xff]
    %v51 = vld [vmem:[%s0 + $0x18] sm:$0xff]
    %v52 = vld [vmem:[%s0 + $0x20] sm:$0xff]
    %v53 = vld [vmem:[%s0 + $0x28] sm:$0xff]
    %v54 = vld [vmem:[%s0 + $0x30] sm:$0xff]
    %v55 = vld [vmem:[%s0 + $0x38] sm:$0xff]
    %v56 = vld [vmem:[%s3] sm:$0xff]
    %v57 = vld [vmem:[%s3 + $0x8] sm:$0xff]
    %v58 = vld [vmem:[%s3 + $0x10] sm:$0xff]
    %v59 = vld [vmem:[%s3 + $0x18] sm:$0xff]
    %v60 = vld [vmem:[%s3 + $0x20] sm:$0xff]
    %v61 = vld [vmem:[%s3 + $0x28] sm:$0xff]
    %v62 = vld [vmem:[%s3 + $0x30] sm:$0xff]
    %v63 = vld [vmem:[%s3 + $0x38] sm:$0xff]
    %v64 = vld [vmem:[%s3 + $0x40] sm:$0xff]
    %v65 = vld [vmem:[%s3 + $0x48] sm:$0xff]
    %v66 = vld [vmem:[%s3 + $0x50] sm:$0xff]
    %v67 = vld [vmem:[%s3 + $0x58] sm:$0xff]
    %v68 = vld [vmem:[%s3 + $0x60] sm:$0xff]
    %v69 = vld [vmem:[%s3 + $0x68] sm:$0xff]
    %v70 = vld [vmem:[%s3 + $0x70] sm:$0xff]
    %v71 = vld [vmem:[%s3 + $0x78] sm:$0xff]
    %v72 = vld [vmem:[%s3 + $0x80] sm:$0xff]
    %v73 = vld [vmem:[%s3 + $0x88] sm:$0xff]
    %v74 = vld [vmem:[%s3 + $0x90] sm:$0xff]
    %v75 = vld [vmem:[%s3 + $0x98] sm:$0xff]
    %v76 = vld [vmem:[%s3 + $0xa0] sm:$0xff]
    %v77 = vld [vmem:[%s3 + $0xa8] sm:$0xff]
    %v78 = vld [vmem:[%s3 + $0xb0] sm:$0xff]
    %v79 = vld [vmem:[%s3 + $0xb8] sm:$0xff]
    %v80 = vld [vmem:[%s3 + $0xc0] sm:$0xff]
    %v81 = vld [vmem:[%s3 + $0xc8] sm:$0xff]
    %v82 = vld [vmem:[%s3 + $0xd0] sm:$0xff]
    %v83 = vld [vmem:[%s3 + $0xd8] sm:$0xff]
    %v84 = vld [vmem:[%s3 + $0xe0] sm:$0xff]
    %v85 = vld [vmem:[%s3 + $0xe8] sm:$0xff]
    %v86 = vld [vmem:[%s3 + $0xf0] sm:$0xff]
    %v87 = vld [vmem:[%s3 + $0xf8] sm:$0xff]
    %v88 = vld [vmem:[%s3 + $0x100] sm:$0xff]
    %v89 = vld [vmem:[%s3 + $0x108] sm:$0xff]
    %v90 = vld [vmem:[%s3 + $0x110] sm:$0xff]
    %v91 = vld [vmem:[%s3 + $0x118] sm:$0xff]
    %v92 = vld [vmem:[%s3 + $0x120] sm:$0xff]
    %v93 = vld [vmem:[%s3 + $0x128] sm:$0xff]
    %v94 = vld [vmem:[%s3 + $0x130] sm:$0xff]
    %v95 = vld [vmem:[%s3 + $0x138] sm:$0xff]
    %v96 = vld [vmem:[%s3 + $0x140] sm:$0xff]
    %v97 = vld [vmem:[%s3 + $0x148] sm:$0xff]
    %v98 = vld [vmem:[%s3 + $0x150] sm:$0xff]
    %v99 = vld [vmem:[%s3 + $0x158] sm:$0xff]
    %v100 = vld [vmem:[%s3 + $0x160] sm:$0xff]
    %v101 = vld [vmem:[%s3 + $0x168] sm:$0xff]
    %v102 = vld [vmem:[%s3 + $0x170] sm:$0xff]
    %v103 = vld [vmem:[%s3 + $0x178] sm:$0xff]
    %v104 = vld [vmem:[%s3 + $0x180] sm:$0xff]
    %v105 = vld [vmem:[%s3 + $0x188] sm:$0xff]
    %v106 = vld [vmem:[%s3 + $0x190] sm:$0xff]
    %v107 = vld [vmem:[%s3 + $0x198] sm:$0xff]
    %v108 = vld [vmem:[%s3 + $0x1a0] sm:$0xff]
    %v109 = vld [vmem:[%s3 + $0x1a8] sm:$0xff]
    %v110 = vld [vmem:[%s3 + $0x1b0] sm:$0xff]
    %v111 = vld [vmem:[%s3 + $0x1b8] sm:$0xff]
    %v112 = vld [vmem:[%s3 + $0x1c0] sm:$0xff]
    %v113 = vld [vmem:[%s3 + $0x1c8] sm:$0xff]
    %v114 = vld [vmem:[%s3 + $0x1d0] sm:$0xff]
    %v115 = vld [vmem:[%s3 + $0x1d8] sm:$0xff]
    %v116 = vld [vmem:[%s3 + $0x1e0] sm:$0xff]
    %v117 = vld [vmem:[%s3 + $0x1e8] sm:$0xff]
    %v118 = vld [vmem:[%s3 + $0x1f0] sm:$0xff]
    %v119 = vld [vmem:[%s3 + $0x1f8] sm:$0xff]
    %v120 = vld [vmem:[%s5] sm:$0xf]
    %v122 = vlaneseq
    %v123 = vshrl.u32 %v122, 7
    %v124 = vsub.s32 0, %v123
    %v125 = vrot.slane %v120, %v124
    %v126 = vlaneseq
    %v127 = vshrl.u32 %v126, 7
    %v128 = vsub.s32 1, %v127
    %v129 = vrot.slane %v120, %v128
    %v130 = vlaneseq
    %v131 = vshrl.u32 %v130, 7
    %v132 = vsub.s32 2, %v131
    %v133 = vrot.slane %v120, %v132
    %v134 = vlaneseq
    %v135 = vshrl.u32 %v134, 7
    %v136 = vsub.s32 3, %v135
    %v137 = vrot.slane %v120, %v136
    %142 = vmatprep.subr.mxu0 %v117
    %143 = vmatpush1.msra.mxu0 %v116
    %144 = vmatprep.subr.mxu0 %v113
    %145 = vmatpush1.msra.mxu0 %v112
    %146 = vmatprep.subr.mxu0 %v109
    %147 = vmatpush1.msra.mxu0 %v108
    %148 = vmatprep.subr.mxu0 %v105
    %149 = vmatpush1.msra.mxu0 %v104
    %150 = vmatprep.subr.mxu0 %v101
    %151 = vmatpush1.msra.mxu0 %v100
    %152 = vmatprep.subr.mxu0 %v97
    %153 = vmatpush1.msra.mxu0 %v96
    %154 = vmatprep.subr.mxu0 %v93
    %155 = vmatpush1.msra.mxu0 %v92
    %156 = vmatprep.subr.mxu0 %v89
    %157 = vmatpush1.msra.mxu0 %v88
    %158 = vmatprep.subr.mxu0 %v85
    %159 = vmatpush1.msra.mxu0 %v84
    %160 = vmatprep.subr.mxu0 %v81
    %161 = vmatpush1.msra.mxu0 %v80
    %162 = vmatprep.subr.mxu0 %v77
    %163 = vmatpush1.msra.mxu0 %v76
    %164 = vmatprep.subr.mxu0 %v73
    %165 = vmatpush1.msra.mxu0 %v72
    %166 = vmatprep.subr.mxu0 %v69
    %167 = vmatpush1.msra.mxu0 %v68
    %168 = vmatprep.subr.mxu0 %v65
    %169 = vmatpush1.msra.mxu0 %v64
    %170 = vmatprep.subr.mxu0 %v61
    %171 = vmatpush1.msra.mxu0 %v60
    %172 = vmatprep.subr.mxu0 %v57
    %173 = vmatpush1.msra.mxu0 %v56
    %174 = vmatprep.subr.mxu0 0.0
    %175 = vmatpush2.msra.mxu0 0.0
    %176 = vmatprep.subr.mxu0 0.0
    %177 = vmatpush2.msra.mxu0 0.0
    %178 = vmatprep.subr.mxu0 0.0
    %179 = vmatpush2.msra.mxu0 0.0
    %180 = vmatprep.subr.mxu0 0.0
    %181 = vmatpush2.msra.mxu0 0.0
    %182 = vmatprep.subr.mxu0 0.0
    %183 = vmatpush2.msra.mxu0 0.0
    %184 = vmatprep.subr.mxu0 0.0
    %185 = vmatpush2.msra.mxu0 0.0
    %186 = vmatprep.subr.mxu0 0.0
    %187 = vmatpush2.msra.mxu0 0.0
    %188 = vmatprep.subr.mxu0 0.0
    %189 = vmatpush2.msra.mxu0 0.0
    %190 = vmatprep.subr.mxu0 0.0
    %191 = vmatpush2.msra.mxu0 0.0
    %192 = vmatprep.subr.mxu0 0.0
    %193 = vmatpush2.msra.mxu0 0.0
    %194 = vmatprep.subr.mxu0 0.0
    %195 = vmatpush2.msra.mxu0 0.0
    %196 = vmatprep.subr.mxu0 0.0
    %197 = vmatpush2.msra.mxu0 0.0
    %198 = vmatprep.subr.mxu0 0.0
    %199 = vmatpush2.msra.mxu0 0.0
    %200 = vmatprep.subr.mxu0 0.0
    %201 = vmatpush2.msra.mxu0 0.0
    %202 = vmatprep.subr.mxu0 0.0
    %203 = vmatpush2.msra.mxu0 0.0
    %204 = vmatprep.subr.mxu0 0.0
    %205 = vmatpush2.msra.mxu0 0.0
    %206 = vmatprep.mubr.f32.mxu0 0.0
    %207 = vmatmul.mubr.f32.gmra.mxu0 %v48
    %v208 = vpop.f32.mrf.mxu0
    %v209 = vadd.f32 %v125, %v208
    %v210 = vpop.f32.mrf.mxu0
    %v211 = vadd.f32 %v129, %v210
    %212 = vmatprep.mubr.f32.mxu0 0.0
    %213 = vmatmul.mubr.f32.gmra.mxu0 %v49
    %v214 = vpop.f32.mrf.mxu0
    %v215 = vadd.f32 %v125, %v214
    %v216 = vpop.f32.mrf.mxu0
    %v217 = vadd.f32 %v129, %v216
    %218 = vmatprep.mubr.f32.mxu0 0.0
    %219 = vmatmul.mubr.f32.gmra.mxu0 %v50
    %v220 = vpop.f32.mrf.mxu0
    %v221 = vadd.f32 %v125, %v220
    %v222 = vpop.f32.mrf.mxu0
    %v223 = vadd.f32 %v129, %v222
    %224 = vmatprep.mubr.f32.mxu0 0.0
    %225 = vmatmul.mubr.f32.gmra.mxu0 %v51
    %v226 = vpop.f32.mrf.mxu0
    %v227 = vadd.f32 %v125, %v226
    %v228 = vpop.f32.mrf.mxu0
    %v229 = vadd.f32 %v129, %v228
    %230 = vmatprep.mubr.f32.mxu0 0.0
    %231 = vmatmul.mubr.f32.gmra.mxu0 %v52
    %v232 = vpop.f32.mrf.mxu0
    %v233 = vadd.f32 %v125, %v232
    %v234 = vpop.f32.mrf.mxu0
    %v235 = vadd.f32 %v129, %v234
    %236 = vmatprep.mubr.f32.mxu0 0.0
    %237 = vmatmul.mubr.f32.gmra.mxu0 %v53
    %v238 = vpop.f32.mrf.mxu0
    %v239 = vadd.f32 %v125, %v238
    %v240 = vpop.f32.mrf.mxu0
    %v241 = vadd.f32 %v129, %v240
    %242 = vmatprep.mubr.f32.mxu0 0.0
    %243 = vmatmul.mubr.f32.gmra.mxu0 %v54
    %v244 = vpop.f32.mrf.mxu0
    %v245 = vadd.f32 %v125, %v244
    %v246 = vpop.f32.mrf.mxu0
    %v247 = vadd.f32 %v129, %v246
    %248 = vmatprep.mubr.f32.mxu0 0.0
    %249 = vmatmul.mubr.f32.gmra.mxu0 %v55
    %v250 = vpop.f32.mrf.mxu0
    %v251 = vadd.f32 %v125, %v250
    %v252 = vpop.f32.mrf.mxu0
    %v253 = vadd.f32 %v129, %v252
    %254 = vdwg.mxu0
    %255 = vmatprep.subr.mxu0 %v119
    %256 = vmatpush1.msra.mxu0 %v118
    %257 = vmatprep.subr.mxu0 %v115
    %258 = vmatpush1.msra.mxu0 %v114
    %259 = vmatprep.subr.mxu0 %v111
    %260 = vmatpush1.msra.mxu0 %v110
    %261 = vmatprep.subr.mxu0 %v107
    %262 = vmatpush1.msra.mxu0 %v106
    %263 = vmatprep.subr.mxu0 %v103
    %264 = vmatpush1.msra.mxu0 %v102
    %265 = vmatprep.subr.mxu0 %v99
    %266 = vmatpush1.msra.mxu0 %v98
    %267 = vmatprep.subr.mxu0 %v95
    %268 = vmatpush1.msra.mxu0 %v94
    %269 = vmatprep.subr.mxu0 %v91
    %270 = vmatpush1.msra.mxu0 %v90
    %271 = vmatprep.subr.mxu0 %v87
    %272 = vmatpush1.msra.mxu0 %v86
    %273 = vmatprep.subr.mxu0 %v83
    %274 = vmatpush1.msra.mxu0 %v82
    %275 = vmatprep.subr.mxu0 %v79
    %276 = vmatpush1.msra.mxu0 %v78
    %277 = vmatprep.subr.mxu0 %v75
    %278 = vmatpush1.msra.mxu0 %v74
    %279 = vmatprep.subr.mxu0 %v71
    %280 = vmatpush1.msra.mxu0 %v70
    %281 = vmatprep.subr.mxu0 %v67
    %282 = vmatpush1.msra.mxu0 %v66
    %283 = vmatprep.subr.mxu0 %v63
    %284 = vmatpush1.msra.mxu0 %v62
    %285 = vmatprep.subr.mxu0 %v59
    %286 = vmatpush1.msra.mxu0 %v58
    %287 = vmatprep.subr.mxu0 0.0
    %288 = vmatpush2.msra.mxu0 0.0
    %289 = vmatprep.subr.mxu0 0.0
    %290 = vmatpush2.msra.mxu0 0.0
    %291 = vmatprep.subr.mxu0 0.0
    %292 = vmatpush2.msra.mxu0 0.0
    %293 = vmatprep.subr.mxu0 0.0
    %294 = vmatpush2.msra.mxu0 0.0
    %295 = vmatprep.subr.mxu0 0.0
    %296 = vmatpush2.msra.mxu0 0.0
    %297 = vmatprep.subr.mxu0 0.0
    %298 = vmatpush2.msra.mxu0 0.0
    %299 = vmatprep.subr.mxu0 0.0
    %300 = vmatpush2.msra.mxu0 0.0
    %301 = vmatprep.subr.mxu0 0.0
    %302 = vmatpush2.msra.mxu0 0.0
    %303 = vmatprep.subr.mxu0 0.0
    %304 = vmatpush2.msra.mxu0 0.0
    %305 = vmatprep.subr.mxu0 0.0
    %306 = vmatpush2.msra.mxu0 0.0
    %307 = vmatprep.subr.mxu0 0.0
    %308 = vmatpush2.msra.mxu0 0.0
    %309 = vmatprep.subr.mxu0 0.0
    %310 = vmatpush2.msra.mxu0 0.0
    %311 = vmatprep.subr.mxu0 0.0
    %312 = vmatpush2.msra.mxu0 0.0
    %313 = vmatprep.subr.mxu0 0.0
    %314 = vmatpush2.msra.mxu0 0.0
    %315 = vmatprep.subr.mxu0 0.0
    %316 = vmatpush2.msra.mxu0 0.0
    %317 = vmatprep.subr.mxu0 0.0
    %318 = vmatpush2.msra.mxu0 0.0
    %319 = vmatprep.mubr.f32.mxu0 0.0
    %320 = vmatmul.mubr.f32.gmra.mxu0 %v48
    %v321 = vpop.f32.mrf.mxu0
    %v322 = vadd.f32 %v133, %v321
    %v323 = vpop.f32.mrf.mxu0
    %v324 = vadd.f32 %v137, %v323
    %325 = vmatprep.mubr.f32.mxu0 0.0
    %326 = vmatmul.mubr.f32.gmra.mxu0 %v49
    %v327 = vpop.f32.mrf.mxu0
    %v328 = vadd.f32 %v133, %v327
    %v329 = vpop.f32.mrf.mxu0
    %v330 = vadd.f32 %v137, %v329
    %331 = vmatprep.mubr.f32.mxu0 0.0
    %332 = vmatmul.mubr.f32.gmra.mxu0 %v50
    %v333 = vpop.f32.mrf.mxu0
    %v334 = vadd.f32 %v133, %v333
    %v335 = vpop.f32.mrf.mxu0
    %v336 = vadd.f32 %v137, %v335
    %337 = vmatprep.mubr.f32.mxu0 0.0
    %338 = vmatmul.mubr.f32.gmra.mxu0 %v51
    %v339 = vpop.f32.mrf.mxu0
    %v340 = vadd.f32 %v133, %v339
    %v341 = vpop.f32.mrf.mxu0
    %v342 = vadd.f32 %v137, %v341
    %343 = vmatprep.mubr.f32.mxu0 0.0
    %344 = vmatmul.mubr.f32.gmra.mxu0 %v52
    %v345 = vpop.f32.mrf.mxu0
    %v346 = vadd.f32 %v133, %v345
    %v347 = vpop.f32.mrf.mxu0
    %v348 = vadd.f32 %v137, %v347
    %349 = vmatprep.mubr.f32.mxu0 0.0
    %350 = vmatmul.mubr.f32.gmra.mxu0 %v53
    %v351 = vpop.f32.mrf.mxu0
    %v352 = vadd.f32 %v133, %v351
    %v353 = vpop.f32.mrf.mxu0
    %v354 = vadd.f32 %v137, %v353
    %355 = vmatprep.mubr.f32.mxu0 0.0
    %356 = vmatmul.mubr.f32.gmra.mxu0 %v54
    %v357 = vpop.f32.mrf.mxu0
    %v358 = vadd.f32 %v133, %v357
    %v359 = vpop.f32.mrf.mxu0
    %v360 = vadd.f32 %v137, %v359
    %361 = vmatprep.mubr.f32.mxu0 0.0
    %362 = vmatmul.mubr.f32.gmra.mxu0 %v55
    %v363 = vpop.f32.mrf.mxu0
    %v364 = vadd.f32 %v133, %v363
    %v365 = vpop.f32.mrf.mxu0
    %v366 = vadd.f32 %v137, %v365
    %367 = vdwg.mxu0
    %368 = vst [vmem:[#allocation4] sm:$0xff] %v209
    %369 = vst [vmem:[#allocation4 + $0x8] sm:$0xff] %v211
    %370 = vst [vmem:[#allocation4 + $0x10] sm:$0xff] %v322
    %371 = vst [vmem:[#allocation4 + $0x18] sm:$0xff] %v324
    %372 = vst [vmem:[#allocation4 + $0x20] sm:$0xff] %v215
    %373 = vst [vmem:[#allocation4 + $0x28] sm:$0xff] %v217
    %374 = vst [vmem:[#allocation4 + $0x30] sm:$0xff] %v328
    %375 = vst [vmem:[#allocation4 + $0x38] sm:$0xff] %v330
    %376 = vst [vmem:[#allocation4 + $0x40] sm:$0xff] %v221
    %377 = vst [vmem:[#allocation4 + $0x48] sm:$0xff] %v223
    %378 = vst [vmem:[#allocation4 + $0x50] sm:$0xff] %v334
    %379 = vst [vmem:[#allocation4 + $0x58] sm:$0xff] %v336
    %380 = vst [vmem:[#allocation4 + $0x60] sm:$0xff] %v227
    %381 = vst [vmem:[#allocation4 + $0x68] sm:$0xff] %v229
    %382 = vst [vmem:[#allocation4 + $0x70] sm:$0xff] %v340
    %383 = vst [vmem:[#allocation4 + $0x78] sm:$0xff] %v342
    %384 = vst [vmem:[#allocation4 + $0x80] sm:$0xff] %v233
    %385 = vst [vmem:[#allocation4 + $0x88] sm:$0xff] %v235
    %386 = vst [vmem:[#allocation4 + $0x90] sm:$0xff] %v346
    %387 = vst [vmem:[#allocation4 + $0x98] sm:$0xff] %v348
    %388 = vst [vmem:[#allocation4 + $0xa0] sm:$0xff] %v239
    %389 = vst [vmem:[#allocation4 + $0xa8] sm:$0xff] %v241
    %390 = vst [vmem:[#allocation4 + $0xb0] sm:$0xff] %v352
    %391 = vst [vmem:[#allocation4 + $0xb8] sm:$0xff] %v354
    %392 = vst [vmem:[#allocation4 + $0xc0] sm:$0xff] %v245
    %393 = vst [vmem:[#allocation4 + $0xc8] sm:$0xff] %v247
    %394 = vst [vmem:[#allocation4 + $0xd0] sm:$0xff] %v358
    %395 = vst [vmem:[#allocation4 + $0xd8] sm:$0xff] %v360
    %396 = vst [vmem:[#allocation4 + $0xe0] sm:$0xff] %v251
    %397 = vst [vmem:[#allocation4 + $0xe8] sm:$0xff] %v253
    %398 = vst [vmem:[#allocation4 + $0xf0] sm:$0xff] %v364
    %399 = vst [vmem:[#allocation4 + $0xf8] sm:$0xff] %v366
    %v400 = vld [vmem:[#allocation5] sm:$0xff]
    %v401 = vld [vmem:[#allocation5 + $0x8] sm:$0xff]
    %v402 = vld [vmem:[#allocation5 + $0x10] sm:$0xff]
    %v403 = vld [vmem:[#allocation5 + $0x18] sm:$0xff]
    %v404 = vld [vmem:[#allocation5 + $0x20] sm:$0xff]
    %v405 = vld [vmem:[#allocation5 + $0x28] sm:$0xff]
    %v406 = vld [vmem:[#allocation5 + $0x30] sm:$0xff]
    %v407 = vld [vmem:[#allocation5 + $0x38] sm:$0xff]
    %v408 = vld [vmem:[#allocation5 + $0x40] sm:$0xff]
    %v409 = vld [vmem:[#allocation5 + $0x48] sm:$0xff]
    %v410 = vld [vmem:[#allocation5 + $0x50] sm:$0xff]
    %v411 = vld [vmem:[#allocation5 + $0x58] sm:$0xff]
    %v412 = vld [vmem:[#allocation5 + $0x60] sm:$0xff]
    %v413 = vld [vmem:[#allocation5 + $0x68] sm:$0xff]
    %v414 = vld [vmem:[#allocation5 + $0x70] sm:$0xff]
    %v415 = vld [vmem:[#allocation5 + $0x78] sm:$0xff]
    %v416 = vld [vmem:[#allocation5 + $0x80] sm:$0xff]
    %v417 = vld [vmem:[#allocation5 + $0x88] sm:$0xff]
    %v418 = vld [vmem:[#allocation5 + $0x90] sm:$0xff]
    %v419 = vld [vmem:[#allocation5 + $0x98] sm:$0xff]
    %v420 = vld [vmem:[#allocation5 + $0xa0] sm:$0xff]
    %v421 = vld [vmem:[#allocation5 + $0xa8] sm:$0xff]
    %v422 = vld [vmem:[#allocation5 + $0xb0] sm:$0xff]
    %v423 = vld [vmem:[#allocation5 + $0xb8] sm:$0xff]
    %v424 = vld [vmem:[#allocation5 + $0xc0] sm:$0xff]
    %v425 = vld [vmem:[#allocation5 + $0xc8] sm:$0xff]
    %v426 = vld [vmem:[#allocation5 + $0xd0] sm:$0xff]
    %v427 = vld [vmem:[#allocation5 + $0xd8] sm:$0xff]
    %v428 = vld [vmem:[#allocation5 + $0xe0] sm:$0xff]
    %v429 = vld [vmem:[#allocation5 + $0xe8] sm:$0xff]
    %v430 = vld [vmem:[#allocation5 + $0xf0] sm:$0xff]
    %v431 = vld [vmem:[#allocation5 + $0xf8] sm:$0xff]
    %v432 = vld [vmem:[#allocation5 + $0x100] sm:$0xff]
    %v433 = vld [vmem:[#allocation5 + $0x108] sm:$0xff]
    %v434 = vld [vmem:[#allocation5 + $0x110] sm:$0xff]
    %v435 = vld [vmem:[#allocation5 + $0x118] sm:$0xff]
    %v436 = vld [vmem:[#allocation5 + $0x120] sm:$0xff]
    %v437 = vld [vmem:[#allocation5 + $0x128] sm:$0xff]
    %v438 = vld [vmem:[#allocation5 + $0x130] sm:$0xff]
    %v439 = vld [vmem:[#allocation5 + $0x138] sm:$0xff]
    %v440 = vld [vmem:[#allocation5 + $0x140] sm:$0xff]
    %v441 = vld [vmem:[#allocation5 + $0x148] sm:$0xff]
    %v442 = vld [vmem:[#allocation5 + $0x150] sm:$0xff]
    %v443 = vld [vmem:[#allocation5 + $0x158] sm:$0xff]
    %v444 = vld [vmem:[#allocation5 + $0x160] sm:$0xff]
    %v445 = vld [vmem:[#allocation5 + $0x168] sm:$0xff]
    %v446 = vld [vmem:[#allocation5 + $0x170] sm:$0xff]
    %v447 = vld [vmem:[#allocation5 + $0x178] sm:$0xff]
    %v448 = vld [vmem:[#allocation5 + $0x180] sm:$0xff]
    %v449 = vld [vmem:[#allocation5 + $0x188] sm:$0xff]
    %v450 = vld [vmem:[#allocation5 + $0x190] sm:$0xff]
    %v451 = vld [vmem:[#allocation5 + $0x198] sm:$0xff]
    %v452 = vld [vmem:[#allocation5 + $0x1a0] sm:$0xff]
    %v453 = vld [vmem:[#allocation5 + $0x1a8] sm:$0xff]
    %v454 = vld [vmem:[#allocation5 + $0x1b0] sm:$0xff]
    %v455 = vld [vmem:[#allocation5 + $0x1b8] sm:$0xff]
    %v456 = vld [vmem:[#allocation5 + $0x1c0] sm:$0xff]
    %v457 = vld [vmem:[#allocation5 + $0x1c8] sm:$0xff]
    %v458 = vld [vmem:[#allocation5 + $0x1d0] sm:$0xff]
    %v459 = vld [vmem:[#allocation5 + $0x1d8] sm:$0xff]
    %v460 = vld [vmem:[#allocation5 + $0x1e0] sm:$0xff]
    %v461 = vld [vmem:[#allocation5 + $0x1e8] sm:$0xff]
    %v462 = vld [vmem:[#allocation5 + $0x1f0] sm:$0xff]
    %v463 = vld [vmem:[#allocation5 + $0x1f8] sm:$0xff]
    %v464 = vld [vmem:[#allocation2] sm:$0xff]
    %v465 = vld [vmem:[#allocation3] sm:$0xff]
    %v466 = vld [vmem:[#allocation4] sm:$0xff]
    %v467 = vld [vmem:[#allocation4 + $0x8] sm:$0xff]
    %v468 = vld [vmem:[#allocation4 + $0x10] sm:$0xff]
    %v469 = vld [vmem:[#allocation4 + $0x18] sm:$0xff]
    %470 = vmatprep.subr.mxu0 %v461
    %471 = vmatpush1.msra.mxu0 %v460
    %472 = vmatprep.subr.mxu0 %v457
    %473 = vmatpush1.msra.mxu0 %v456
    %474 = vmatprep.subr.mxu0 %v453
    %475 = vmatpush1.msra.mxu0 %v452
    %476 = vmatprep.subr.mxu0 %v449
    %477 = vmatpush1.msra.mxu0 %v448
    %478 = vmatprep.subr.mxu0 %v445
    %479 = vmatpush1.msra.mxu0 %v444
    %480 = vmatprep.subr.mxu0 %v441
    %481 = vmatpush1.msra.mxu0 %v440
    %482 = vmatprep.subr.mxu0 %v437
    %483 = vmatpush1.msra.mxu0 %v436
    %484 = vmatprep.subr.mxu0 %v433
    %485 = vmatpush1.msra.mxu0 %v432
    %486 = vmatprep.subr.mxu0 %v429
    %487 = vmatpush1.msra.mxu0 %v428
    %488 = vmatprep.subr.mxu0 %v425
    %489 = vmatpush1.msra.mxu0 %v424
    %490 = vmatprep.subr.mxu0 %v421
    %491 = vmatpush1.msra.mxu0 %v420
    %492 = vmatprep.subr.mxu0 %v417
    %493 = vmatpush1.msra.mxu0 %v416
    %494 = vmatprep.subr.mxu0 %v413
    %495 = vmatpush1.msra.mxu0 %v412
    %496 = vmatprep.subr.mxu0 %v409
    %497 = vmatpush1.msra.mxu0 %v408
    %498 = vmatprep.subr.mxu0 %v405
    %499 = vmatpush1.msra.mxu0 %v404
    %500 = vmatprep.subr.mxu0 %v401
    %501 = vmatpush1.msra.mxu0 %v400
    %502 = vmatprep.subr.mxu0 0.0
    %503 = vmatpush2.msra.mxu0 0.0
    %504 = vmatprep.subr.mxu0 0.0
    %505 = vmatpush2.msra.mxu0 0.0
    %506 = vmatprep.subr.mxu0 0.0
    %507 = vmatpush2.msra.mxu0 0.0
    %508 = vmatprep.subr.mxu0 0.0
    %509 = vmatpush2.msra.mxu0 0.0
    %510 = vmatprep.subr.mxu0 0.0
    %511 = vmatpush2.msra.mxu0 0.0
    %512 = vmatprep.subr.mxu0 0.0
    %513 = vmatpush2.msra.mxu0 0.0
    %514 = vmatprep.subr.mxu0 0.0
    %515 = vmatpush2.msra.mxu0 0.0
    %516 = vmatprep.subr.mxu0 0.0
    %517 = vmatpush2.msra.mxu0 0.0
    %518 = vmatprep.subr.mxu0 0.0
    %519 = vmatpush2.msra.mxu0 0.0
    %520 = vmatprep.subr.mxu0 0.0
    %521 = vmatpush2.msra.mxu0 0.0
    %522 = vmatprep.subr.mxu0 0.0
    %523 = vmatpush2.msra.mxu0 0.0
    %524 = vmatprep.subr.mxu0 0.0
    %525 = vmatpush2.msra.mxu0 0.0
    %526 = vmatprep.subr.mxu0 0.0
    %527 = vmatpush2.msra.mxu0 0.0
    %528 = vmatprep.subr.mxu0 0.0
    %529 = vmatpush2.msra.mxu0 0.0
    %530 = vmatprep.subr.mxu0 0.0
    %531 = vmatpush2.msra.mxu0 0.0
    %532 = vmatprep.subr.mxu0 0.0
    %533 = vmatpush2.msra.mxu0 0.0
    %534 = vmatprep.mubr.f32.mxu0 0.0
    %535 = vmatmul.mubr.f32.gmra.mxu0 %v464
    %v536 = vpop.f32.mrf.mxu0
    %v537 = vadd.f32 0.0, %v536
    %v538 = vpop.f32.mrf.mxu0
    %v539 = vadd.f32 0.0, %v538
    %540 = vdwg.mxu0
    %541 = vmatprep.subr.mxu0 %v463
    %542 = vmatpush1.msra.mxu0 %v462
    %543 = vmatprep.subr.mxu0 %v459
    %544 = vmatpush1.msra.mxu0 %v458
    %545 = vmatprep.subr.mxu0 %v455
    %546 = vmatpush1.msra.mxu0 %v454
    %547 = vmatprep.subr.mxu0 %v451
    %548 = vmatpush1.msra.mxu0 %v450
    %549 = vmatprep.subr.mxu0 %v447
    %550 = vmatpush1.msra.mxu0 %v446
    %551 = vmatprep.subr.mxu0 %v443
    %552 = vmatpush1.msra.mxu0 %v442
    %553 = vmatprep.subr.mxu0 %v439
    %554 = vmatpush1.msra.mxu0 %v438
    %555 = vmatprep.subr.mxu0 %v435
    %556 = vmatpush1.msra.mxu0 %v434
    %557 = vmatprep.subr.mxu0 %v431
    %558 = vmatpush1.msra.mxu0 %v430
    %559 = vmatprep.subr.mxu0 %v427
    %560 = vmatpush1.msra.mxu0 %v426
    %561 = vmatprep.subr.mxu0 %v423
    %562 = vmatpush1.msra.mxu0 %v422
    %563 = vmatprep.subr.mxu0 %v419
    %564 = vmatpush1.msra.mxu0 %v418
    %565 = vmatprep.subr.mxu0 %v415
    %566 = vmatpush1.msra.mxu0 %v414
    %567 = vmatprep.subr.mxu0 %v411
    %568 = vmatpush1.msra.mxu0 %v410
    %569 = vmatprep.subr.mxu0 %v407
    %570 = vmatpush1.msra.mxu0 %v406
    %571 = vmatprep.subr.mxu0 %v403
    %572 = vmatpush1.msra.mxu0 %v402
    %573 = vmatprep.subr.mxu0 0.0
    %574 = vmatpush2.msra.mxu0 0.0
    %575 = vmatprep.subr.mxu0 0.0
    %576 = vmatpush2.msra.mxu0 0.0
    %577 = vmatprep.subr.mxu0 0.0
    %578 = vmatpush2.msra.mxu0 0.0
    %579 = vmatprep.subr.mxu0 0.0
    %580 = vmatpush2.msra.mxu0 0.0
    %581 = vmatprep.subr.mxu0 0.0
    %582 = vmatpush2.msra.mxu0 0.0
    %583 = vmatprep.subr.mxu0 0.0
    %584 = vmatpush2.msra.mxu0 0.0
    %585 = vmatprep.subr.mxu0 0.0
    %586 = vmatpush2.msra.mxu0 0.0
    %587 = vmatprep.subr.mxu0 0.0
    %588 = vmatpush2.msra.mxu0 0.0
    %589 = vmatprep.subr.mxu0 0.0
    %590 = vmatpush2.msra.mxu0 0.0
    %591 = vmatprep.subr.mxu0 0.0
    %592 = vmatpush2.msra.mxu0 0.0
    %593 = vmatprep.subr.mxu0 0.0
    %594 = vmatpush2.msra.mxu0 0.0
    %595 = vmatprep.subr.mxu0 0.0
    %596 = vmatpush2.msra.mxu0 0.0
    %597 = vmatprep.subr.mxu0 0.0
    %598 = vmatpush2.msra.mxu0 0.0
    %599 = vmatprep.subr.mxu0 0.0
    %600 = vmatpush2.msra.mxu0 0.0
    %601 = vmatprep.subr.mxu0 0.0
    %602 = vmatpush2.msra.mxu0 0.0
    %603 = vmatprep.subr.mxu0 0.0
    %604 = vmatpush2.msra.mxu0 0.0
    %605 = vmatprep.mubr.f32.mxu0 0.0
    %606 = vmatmul.mubr.f32.gmra.mxu0 %v464
    %v607 = vpop.f32.mrf.mxu0
    %v608 = vadd.f32 0.0, %v607
    %v609 = vpop.f32.mrf.mxu0
    %v610 = vadd.f32 0.0, %v609
    %611 = vdwg.mxu0
    %v612 = vadd.f32 %v466, %v537
    %v613 = vadd.f32 %v467, %v539
    %v614 = vadd.f32 %v468, %v608
    %v615 = vadd.f32 %v469, %v610
    %v616 = vxor.u32 %v612, 2147483648
    %v617 = vmul.f32 %v616, 1.442695
    %v618 = vpow.pop %v617
    %v619 = vadd.f32 %v618, 1.0
    %v620 = vrcp.pop %v619
    %v621 = vmul.f32 1.0, %v620
    %v622 = vxor.u32 %v613, 2147483648
    %v623 = vmul.f32 %v622, 1.442695
    %v624 = vpow.pop %v623
    %v625 = vadd.f32 %v624, 1.0
    %v626 = vrcp.pop %v625
    %v627 = vmul.f32 1.0, %v626
    %v628 = vtanh.pop %v614
    %v629 = vxor.u32 %v615, 2147483648
    %v630 = vmul.f32 %v629, 1.442695
    %v631 = vpow.pop %v630
    %v632 = vadd.f32 %v631, 1.0
    %v633 = vrcp.pop %v632
    %v634 = vmul.f32 1.0, %v633
    %v635 = vmul.f32 %v627, %v465
    %v636 = vmul.f32 %v621, %v628
    %v637 = vadd.f32 %v635, %v636
    %v638 = vtanh.pop %v637
    %v639 = vmul.f32 %v634, %v638
    %640 = vst [vmem:[%s6] sm:$0xff] %v639
    %s641 = scalar_lea.vmem [#allocation4], 32
    %v642 = vld [vmem:[%s641] sm:$0xff]
    %v643 = vld [vmem:[%s641 + $0x8] sm:$0xff]
    %v644 = vld [vmem:[%s641 + $0x10] sm:$0xff]
    %v645 = vld [vmem:[%s641 + $0x18] sm:$0xff]
    %646 = vmatprep.subr.mxu0 %v461
    %647 = vmatpush1.msra.mxu0 %v460
    %648 = vmatprep.subr.mxu0 %v457
    %649 = vmatpush1.msra.mxu0 %v456
    %650 = vmatprep.subr.mxu0 %v453
    %651 = vmatpush1.msra.mxu0 %v452
    %652 = vmatprep.subr.mxu0 %v449
    %653 = vmatpush1.msra.mxu0 %v448
    %654 = vmatprep.subr.mxu0 %v445
    %655 = vmatpush1.msra.mxu0 %v444
    %656 = vmatprep.subr.mxu0 %v441
    %657 = vmatpush1.msra.mxu0 %v440
    %658 = vmatprep.subr.mxu0 %v437
    %659 = vmatpush1.msra.mxu0 %v436
    %660 = vmatprep.subr.mxu0 %v433
    %661 = vmatpush1.msra.mxu0 %v432
    %662 = vmatprep.subr.mxu0 %v429
    %663 = vmatpush1.msra.mxu0 %v428
    %664 = vmatprep.subr.mxu0 %v425
    %665 = vmatpush1.msra.mxu0 %v424
    %666 = vmatprep.subr.mxu0 %v421
    %667 = vmatpush1.msra.mxu0 %v420
    %668 = vmatprep.subr.mxu0 %v417
    %669 = vmatpush1.msra.mxu0 %v416
    %670 = vmatprep.subr.mxu0 %v413
    %671 = vmatpush1.msra.mxu0 %v412
    %672 = vmatprep.subr.mxu0 %v409
    %673 = vmatpush1.msra.mxu0 %v408
    %674 = vmatprep.subr.mxu0 %v405
    %675 = vmatpush1.msra.mxu0 %v404
    %676 = vmatprep.subr.mxu0 %v401
    %677 = vmatpush1.msra.mxu0 %v400
    %678 = vmatprep.subr.mxu0 0.0
    %679 = vmatpush2.msra.mxu0 0.0
    %680 = vmatprep.subr.mxu0 0.0
    %681 = vmatpush2.msra.mxu0 0.0
    %682 = vmatprep.subr.mxu0 0.0
    %683 = vmatpush2.msra.mxu0 0.0
    %684 = vmatprep.subr.mxu0 0.0
    %685 = vmatpush2.msra.mxu0 0.0
    %686 = vmatprep.subr.mxu0 0.0
    %687 = vmatpush2.msra.mxu0 0.0
    %688 = vmatprep.subr.mxu0 0.0
    %689 = vmatpush2.msra.mxu0 0.0
    %690 = vmatprep.subr.mxu0 0.0
    %691 = vmatpush2.msra.mxu0 0.0
    %692 = vmatprep.subr.mxu0 0.0
    %693 = vmatpush2.msra.mxu0 0.0
    %694 = vmatprep.subr.mxu0 0.0
    %695 = vmatpush2.msra.mxu0 0.0
    %696 = vmatprep.subr.mxu0 0.0
    %697 = vmatpush2.msra.mxu0 0.0
    %698 = vmatprep.subr.mxu0 0.0
    %699 = vmatpush2.msra.mxu0 0.0
    %700 = vmatprep.subr.mxu0 0.0
    %701 = vmatpush2.msra.mxu0 0.0
    %702 = vmatprep.subr.mxu0 0.0
    %703 = vmatpush2.msra.mxu0 0.0
    %704 = vmatprep.subr.mxu0 0.0
    %705 = vmatpush2.msra.mxu0 0.0
    %706 = vmatprep.subr.mxu0 0.0
    %707 = vmatpush2.msra.mxu0 0.0
    %708 = vmatprep.subr.mxu0 0.0
    %709 = vmatpush2.msra.mxu0 0.0
    %710 = vmatprep.mubr.f32.mxu0 0.0
    %711 = vmatmul.mubr.f32.gmra.mxu0 %v639
    %v712 = vpop.f32.mrf.mxu0
    %v713 = vadd.f32 0.0, %v712
    %v714 = vpop.f32.mrf.mxu0
    %v715 = vadd.f32 0.0, %v714
    %716 = vdwg.mxu0
    %717 = vmatprep.subr.mxu0 %v463
    %718 = vmatpush1.msra.mxu0 %v462
    %719 = vmatprep.subr.mxu0 %v459
    %720 = vmatpush1.msra.mxu0 %v458
    %721 = vmatprep.subr.mxu0 %v455
    %722 = vmatpush1.msra.mxu0 %v454
    %723 = vmatprep.subr.mxu0 %v451
    %724 = vmatpush1.msra.mxu0 %v450
    %725 = vmatprep.subr.mxu0 %v447
    %726 = vmatpush1.msra.mxu0 %v446
    %727 = vmatprep.subr.mxu0 %v443
    %728 = vmatpush1.msra.mxu0 %v442
    %729 = vmatprep.subr.mxu0 %v439
    %730 = vmatpush1.msra.mxu0 %v438
    %731 = vmatprep.subr.mxu0 %v435
    %732 = vmatpush1.msra.mxu0 %v434
    %733 = vmatprep.subr.mxu0 %v431
    %734 = vmatpush1.msra.mxu0 %v430
    %735 = vmatprep.subr.mxu0 %v427
    %736 = vmatpush1.msra.mxu0 %v426
    %737 = vmatprep.subr.mxu0 %v423
    %738 = vmatpush1.msra.mxu0 %v422
    %739 = vmatprep.subr.mxu0 %v419
    %740 = vmatpush1.msra.mxu0 %v418
    %741 = vmatprep.subr.mxu0 %v415
    %742 = vmatpush1.msra.mxu0 %v414
    %743 = vmatprep.subr.mxu0 %v411
    %744 = vmatpush1.msra.mxu0 %v410
    %745 = vmatprep.subr.mxu0 %v407
    %746 = vmatpush1.msra.mxu0 %v406
    %747 = vmatprep.subr.mxu0 %v403
    %748 = vmatpush1.msra.mxu0 %v402
    %749 = vmatprep.subr.mxu0 0.0
    %750 = vmatpush2.msra.mxu0 0.0
    %751 = vmatprep.subr.mxu0 0.0
    %752 = vmatpush2.msra.mxu0 0.0
    %753 = vmatprep.subr.mxu0 0.0
    %754 = vmatpush2.msra.mxu0 0.0
    %755 = vmatprep.subr.mxu0 0.0
    %756 = vmatpush2.msra.mxu0 0.0
    %757 = vmatprep.subr.mxu0 0.0
    %758 = vmatpush2.msra.mxu0 0.0
    %759 = vmatprep.subr.mxu0 0.0
    %760 = vmatpush2.msra.mxu0 0.0
    %761 = vmatprep.subr.mxu0 0.0
    %762 = vmatpush2.msra.mxu0 0.0
    %763 = vmatprep.subr.mxu0 0.0
    %764 = vmatpush2.msra.mxu0 0.0
    %765 = vmatprep.subr.mxu0 0.0
    %766 = vmatpush2.msra.mxu0 0.0
    %767 = vmatprep.subr.mxu0 0.0
    %768 = vmatpush2.msra.mxu0 0.0
    %769 = vmatprep.subr.mxu0 0.0
    %770 = vmatpush2.msra.mxu0 0.0
    %771 = vmatprep.subr.mxu0 0.0
    %772 = vmatpush2.msra.mxu0 0.0
    %773 = vmatprep.subr.mxu0 0.0
    %774 = vmatpush2.msra.mxu0 0.0
    %775 = vmatprep.subr.mxu0 0.0
    %776 = vmatpush2.msra.mxu0 0.0
    %777 = vmatprep.subr.mxu0 0.0
    %778 = vmatpush2.msra.mxu0 0.0
    %779 = vmatprep.subr.mxu0 0.0
    %780 = vmatpush2.msra.mxu0 0.0
    %781 = vmatprep.mubr.f32.mxu0 0.0
    %782 = vmatmul.mubr.f32.gmra.mxu0 %v639
    %v783 = vpop.f32.mrf.mxu0
    %v784 = vadd.f32 0.0, %v783
    %v785 = vpop.f32.mrf.mxu0
    %v786 = vadd.f32 0.0, %v785
    %787 = vdwg.mxu0
    %v788 = vadd.f32 %v642, %v713
    %v789 = vadd.f32 %v643, %v715
    %v790 = vadd.f32 %v644, %v784
    %v791 = vadd.f32 %v645, %v786
    %v792 = vxor.u32 %v788, 2147483648
    %v793 = vmul.f32 %v792, 1.442695
    %v794 = vpow.pop %v793
    %v795 = vadd.f32 %v794, 1.0
    %v796 = vrcp.pop %v795
    %v797 = vmul.f32 1.0, %v796
    %v798 = vxor.u32 %v789, 2147483648
    %v799 = vmul.f32 %v798, 1.442695
    %v800 = vpow.pop %v799
    %v801 = vadd.f32 %v800, 1.0
    %v802 = vrcp.pop %v801
    %v803 = vmul.f32 1.0, %v802
    %v804 = vtanh.pop %v790
    %v805 = vxor.u32 %v791, 2147483648
    %v806 = vmul.f32 %v805, 1.442695
    %v807 = vpow.pop %v806
    %v808 = vadd.f32 %v807, 1.0
    %v809 = vrcp.pop %v808
    %v810 = vmul.f32 1.0, %v809
    %v811 = vmul.f32 %v803, %v637
    %v812 = vmul.f32 %v797, %v804
    %v813 = vadd.f32 %v811, %v812
    %v814 = vtanh.pop %v813
    %v815 = vmul.f32 %v810, %v814
    %s816 = scalar_lea.vmem %s6, 8
    %817 = vst [vmem:[%s816] sm:$0xff] %v815
    %s818 = scalar_lea.vmem [#allocation4], 64
    %v819 = vld [vmem:[%s818] sm:$0xff]
    %v820 = vld [vmem:[%s818 + $0x8] sm:$0xff]
    %v821 = vld [vmem:[%s818 + $0x10] sm:$0xff]
    %v822 = vld [vmem:[%s818 + $0x18] sm:$0xff]
    %823 = vmatprep.subr.mxu0 %v461
    %824 = vmatpush1.msra.mxu0 %v460
    %825 = vmatprep.subr.mxu0 %v457
    %826 = vmatpush1.msra.mxu0 %v456
    %827 = vmatprep.subr.mxu0 %v453
    %828 = vmatpush1.msra.mxu0 %v452
    %829 = vmatprep.subr.mxu0 %v449
    %830 = vmatpush1.msra.mxu0 %v448
    %831 = vmatprep.subr.mxu0 %v445
    %832 = vmatpush1.msra.mxu0 %v444
    %833 = vmatprep.subr.mxu0 %v441
    %834 = vmatpush1.msra.mxu0 %v440
    %835 = vmatprep.subr.mxu0 %v437
    %836 = vmatpush1.msra.mxu0 %v436
    %837 = vmatprep.subr.mxu0 %v433
    %838 = vmatpush1.msra.mxu0 %v432
    %839 = vmatprep.subr.mxu0 %v429
    %840 = vmatpush1.msra.mxu0 %v428
    %841 = vmatprep.subr.mxu0 %v425
    %842 = vmatpush1.msra.mxu0 %v424
    %843 = vmatprep.subr.mxu0 %v421
    %844 = vmatpush1.msra.mxu0 %v420
    %845 = vmatprep.subr.mxu0 %v417
    %846 = vmatpush1.msra.mxu0 %v416
    %847 = vmatprep.subr.mxu0 %v413
    %848 = vmatpush1.msra.mxu0 %v412
    %849 = vmatprep.subr.mxu0 %v409
    %850 = vmatpush1.msra.mxu0 %v408
    %851 = vmatprep.subr.mxu0 %v405
    %852 = vmatpush1.msra.mxu0 %v404
    %853 = vmatprep.subr.mxu0 %v401
    %854 = vmatpush1.msra.mxu0 %v400
    %855 = vmatprep.subr.mxu0 0.0
    %856 = vmatpush2.msra.mxu0 0.0
    %857 = vmatprep.subr.mxu0 0.0
    %858 = vmatpush2.msra.mxu0 0.0
    %859 = vmatprep.subr.mxu0 0.0
    %860 = vmatpush2.msra.mxu0 0.0
    %861 = vmatprep.subr.mxu0 0.0
    %862 = vmatpush2.msra.mxu0 0.0
    %863 = vmatprep.subr.mxu0 0.0
    %864 = vmatpush2.msra.mxu0 0.0
    %865 = vmatprep.subr.mxu0 0.0
    %866 = vmatpush2.msra.mxu0 0.0
    %867 = vmatprep.subr.mxu0 0.0
    %868 = vmatpush2.msra.mxu0 0.0
    %869 = vmatprep.subr.mxu0 0.0
    %870 = vmatpush2.msra.mxu0 0.0
    %871 = vmatprep.subr.mxu0 0.0
    %872 = vmatpush2.msra.mxu0 0.0
    %873 = vmatprep.subr.mxu0 0.0
    %874 = vmatpush2.msra.mxu0 0.0
    %875 = vmatprep.subr.mxu0 0.0
    %876 = vmatpush2.msra.mxu0 0.0
    %877 = vmatprep.subr.mxu0 0.0
    %878 = vmatpush2.msra.mxu0 0.0
    %879 = vmatprep.subr.mxu0 0.0
    %880 = vmatpush2.msra.mxu0 0.0
    %881 = vmatprep.subr.mxu0 0.0
    %882 = vmatpush2.msra.mxu0 0.0
    %883 = vmatprep.subr.mxu0 0.0
    %884 = vmatpush2.msra.mxu0 0.0
    %885 = vmatprep.subr.mxu0 0.0
    %886 = vmatpush2.msra.mxu0 0.0
    %887 = vmatprep.mubr.f32.mxu0 0.0
    %888 = vmatmul.mubr.f32.gmra.mxu0 %v815
    %v889 = vpop.f32.mrf.mxu0
    %v890 = vadd.f32 0.0, %v889
    %v891 = vpop.f32.mrf.mxu0
    %v892 = vadd.f32 0.0, %v891
    %893 = vdwg.mxu0
    %894 = vmatprep.subr.mxu0 %v463
    %895 = vmatpush1.msra.mxu0 %v462
    %896 = vmatprep.subr.mxu0 %v459
    %897 = vmatpush1.msra.mxu0 %v458
    %898 = vmatprep.subr.mxu0 %v455
    %899 = vmatpush1.msra.mxu0 %v454
    %900 = vmatprep.subr.mxu0 %v451
    %901 = vmatpush1.msra.mxu0 %v450
    %902 = vmatprep.subr.mxu0 %v447
    %903 = vmatpush1.msra.mxu0 %v446
    %904 = vmatprep.subr.mxu0 %v443
    %905 = vmatpush1.msra.mxu0 %v442
    %906 = vmatprep.subr.mxu0 %v439
    %907 = vmatpush1.msra.mxu0 %v438
    %908 = vmatprep.subr.mxu0 %v435
    %909 = vmatpush1.msra.mxu0 %v434
    %910 = vmatprep.subr.mxu0 %v431
    %911 = vmatpush1.msra.mxu0 %v430
    %912 = vmatprep.subr.mxu0 %v427
    %913 = vmatpush1.msra.mxu0 %v426
    %914 = vmatprep.subr.mxu0 %v423
    %915 = vmatpush1.msra.mxu0 %v422
    %916 = vmatprep.subr.mxu0 %v419
    %917 = vmatpush1.msra.mxu0 %v418
    %918 = vmatprep.subr.mxu0 %v415
    %919 = vmatpush1.msra.mxu0 %v414
    %920 = vmatprep.subr.mxu0 %v411
    %921 = vmatpush1.msra.mxu0 %v410
    %922 = vmatprep.subr.mxu0 %v407
    %923 = vmatpush1.msra.mxu0 %v406
    %924 = vmatprep.subr.mxu0 %v403
    %925 = vmatpush1.msra.mxu0 %v402
    %926 = vmatprep.subr.mxu0 0.0
    %927 = vmatpush2.msra.mxu0 0.0
    %928 = vmatprep.subr.mxu0 0.0
    %929 = vmatpush2.msra.mxu0 0.0
    %930 = vmatprep.subr.mxu0 0.0
    %931 = vmatpush2.msra.mxu0 0.0
    %932 = vmatprep.subr.mxu0 0.0
    %933 = vmatpush2.msra.mxu0 0.0
    %934 = vmatprep.subr.mxu0 0.0
    %935 = vmatpush2.msra.mxu0 0.0
    %936 = vmatprep.subr.mxu0 0.0
    %937 = vmatpush2.msra.mxu0 0.0
    %938 = vmatprep.subr.mxu0 0.0
    %939 = vmatpush2.msra.mxu0 0.0
    %940 = vmatprep.subr.mxu0 0.0
    %941 = vmatpush2.msra.mxu0 0.0
    %942 = vmatprep.subr.mxu0 0.0
    %943 = vmatpush2.msra.mxu0 0.0
    %944 = vmatprep.subr.mxu0 0.0
    %945 = vmatpush2.msra.mxu0 0.0
    %946 = vmatprep.subr.mxu0 0.0
    %947 = vmatpush2.msra.mxu0 0.0
    %948 = vmatprep.subr.mxu0 0.0
    %949 = vmatpush2.msra.mxu0 0.0
    %950 = vmatprep.subr.mxu0 0.0
    %951 = vmatpush2.msra.mxu0 0.0
    %952 = vmatprep.subr.mxu0 0.0
    %953 = vmatpush2.msra.mxu0 0.0
    %954 = vmatprep.subr.mxu0 0.0
    %955 = vmatpush2.msra.mxu0 0.0
    %956 = vmatprep.subr.mxu0 0.0
    %957 = vmatpush2.msra.mxu0 0.0
    %958 = vmatprep.mubr.f32.mxu0 0.0
    %959 = vmatmul.mubr.f32.gmra.mxu0 %v815
    %v960 = vpop.f32.mrf.mxu0
    %v961 = vadd.f32 0.0, %v960
    %v962 = vpop.f32.mrf.mxu0
    %v963 = vadd.f32 0.0, %v962
    %964 = vdwg.mxu0
    %v965 = vadd.f32 %v819, %v890
    %v966 = vadd.f32 %v820, %v892
    %v967 = vadd.f32 %v821, %v961
    %v968 = vadd.f32 %v822, %v963
    %v969 = vxor.u32 %v965, 2147483648
    %v970 = vmul.f32 %v969, 1.442695
    %v971 = vpow.pop %v970
    %v972 = vadd.f32 %v971, 1.0
    %v973 = vrcp.pop %v972
    %v974 = vmul.f32 1.0, %v973
    %v975 = vxor.u32 %v966, 2147483648
    %v976 = vmul.f32 %v975, 1.442695
    %v977 = vpow.pop %v976
    %v978 = vadd.f32 %v977, 1.0
    %v979 = vrcp.pop %v978
    %v980 = vmul.f32 1.0, %v979
    %v981 = vtanh.pop %v967
    %v982 = vxor.u32 %v968, 2147483648
    %v983 = vmul.f32 %v982, 1.442695
    %v984 = vpow.pop %v983
    %v985 = vadd.f32 %v984, 1.0
    %v986 = vrcp.pop %v985
    %v987 = vmul.f32 1.0, %v986
    %v988 = vmul.f32 %v980, %v813
    %v989 = vmul.f32 %v974, %v981
    %v990 = vadd.f32 %v988, %v989
    %v991 = vtanh.pop %v990
    %v992 = vmul.f32 %v987, %v991
    %s993 = scalar_lea.vmem %s6, 16
    %994 = vst [vmem:[%s993] sm:$0xff] %v992
    %s995 = scalar_lea.vmem [#allocation4], 96
    %v996 = vld [vmem:[%s995] sm:$0xff]
    %v997 = vld [vmem:[%s995 + $0x8] sm:$0xff]
    %v998 = vld [vmem:[%s995 + $0x10] sm:$0xff]
    %v999 = vld [vmem:[%s995 + $0x18] sm:$0xff]
    %1000 = vmatprep.subr.mxu0 %v461
    %1001 = vmatpush1.msra.mxu0 %v460
    %1002 = vmatprep.subr.mxu0 %v457
    %1003 = vmatpush1.msra.mxu0 %v456
    %1004 = vmatprep.subr.mxu0 %v453
    %1005 = vmatpush1.msra.mxu0 %v452
    %1006 = vmatprep.subr.mxu0 %v449
    %1007 = vmatpush1.msra.mxu0 %v448
    %1008 = vmatprep.subr.mxu0 %v445
    %1009 = vmatpush1.msra.mxu0 %v444
    %1010 = vmatprep.subr.mxu0 %v441
    %1011 = vmatpush1.msra.mxu0 %v440
    %1012 = vmatprep.subr.mxu0 %v437
    %1013 = vmatpush1.msra.mxu0 %v436
    %1014 = vmatprep.subr.mxu0 %v433
    %1015 = vmatpush1.msra.mxu0 %v432
    %1016 = vmatprep.subr.mxu0 %v429
    %1017 = vmatpush1.msra.mxu0 %v428
    %1018 = vmatprep.subr.mxu0 %v425
    %1019 = vmatpush1.msra.mxu0 %v424
    %1020 = vmatprep.subr.mxu0 %v421
    %1021 = vmatpush1.msra.mxu0 %v420
    %1022 = vmatprep.subr.mxu0 %v417
    %1023 = vmatpush1.msra.mxu0 %v416
    %1024 = vmatprep.subr.mxu0 %v413
    %1025 = vmatpush1.msra.mxu0 %v412
    %1026 = vmatprep.subr.mxu0 %v409
    %1027 = vmatpush1.msra.mxu0 %v408
    %1028 = vmatprep.subr.mxu0 %v405
    %1029 = vmatpush1.msra.mxu0 %v404
    %1030 = vmatprep.subr.mxu0 %v401
    %1031 = vmatpush1.msra.mxu0 %v400
    %1032 = vmatprep.subr.mxu0 0.0
    %1033 = vmatpush2.msra.mxu0 0.0
    %1034 = vmatprep.subr.mxu0 0.0
    %1035 = vmatpush2.msra.mxu0 0.0
    %1036 = vmatprep.subr.mxu0 0.0
    %1037 = vmatpush2.msra.mxu0 0.0
    %1038 = vmatprep.subr.mxu0 0.0
    %1039 = vmatpush2.msra.mxu0 0.0
    %1040 = vmatprep.subr.mxu0 0.0
    %1041 = vmatpush2.msra.mxu0 0.0
    %1042 = vmatprep.subr.mxu0 0.0
    %1043 = vmatpush2.msra.mxu0 0.0
    %1044 = vmatprep.subr.mxu0 0.0
    %1045 = vmatpush2.msra.mxu0 0.0
    %1046 = vmatprep.subr.mxu0 0.0
    %1047 = vmatpush2.msra.mxu0 0.0
    %1048 = vmatprep.subr.mxu0 0.0
    %1049 = vmatpush2.msra.mxu0 0.0
    %1050 = vmatprep.subr.mxu0 0.0
    %1051 = vmatpush2.msra.mxu0 0.0
    %1052 = vmatprep.subr.mxu0 0.0
    %1053 = vmatpush2.msra.mxu0 0.0
    %1054 = vmatprep.subr.mxu0 0.0
    %1055 = vmatpush2.msra.mxu0 0.0
    %1056 = vmatprep.subr.mxu0 0.0
    %1057 = vmatpush2.msra.mxu0 0.0
    %1058 = vmatprep.subr.mxu0 0.0
    %1059 = vmatpush2.msra.mxu0 0.0
    %1060 = vmatprep.subr.mxu0 0.0
    %1061 = vmatpush2.msra.mxu0 0.0
    %1062 = vmatprep.subr.mxu0 0.0
    %1063 = vmatpush2.msra.mxu0 0.0
    %1064 = vmatprep.mubr.f32.mxu0 0.0
    %1065 = vmatmul.mubr.f32.gmra.mxu0 %v992
    %v1066 = vpop.f32.mrf.mxu0
    %v1067 = vadd.f32 0.0, %v1066
    %v1068 = vpop.f32.mrf.mxu0
    %v1069 = vadd.f32 0.0, %v1068
    %1070 = vdwg.mxu0
    %1071 = vmatprep.subr.mxu0 %v463
    %1072 = vmatpush1.msra.mxu0 %v462
    %1073 = vmatprep.subr.mxu0 %v459
    %1074 = vmatpush1.msra.mxu0 %v458
    %1075 = vmatprep.subr.mxu0 %v455
    %1076 = vmatpush1.msra.mxu0 %v454
    %1077 = vmatprep.subr.mxu0 %v451
    %1078 = vmatpush1.msra.mxu0 %v450
    %1079 = vmatprep.subr.mxu0 %v447
    %1080 = vmatpush1.msra.mxu0 %v446
    %1081 = vmatprep.subr.mxu0 %v443
    %1082 = vmatpush1.msra.mxu0 %v442
    %1083 = vmatprep.subr.mxu0 %v439
    %1084 = vmatpush1.msra.mxu0 %v438
    %1085 = vmatprep.subr.mxu0 %v435
    %1086 = vmatpush1.msra.mxu0 %v434
    %1087 = vmatprep.subr.mxu0 %v431
    %1088 = vmatpush1.msra.mxu0 %v430
    %1089 = vmatprep.subr.mxu0 %v427
    %1090 = vmatpush1.msra.mxu0 %v426
    %1091 = vmatprep.subr.mxu0 %v423
    %1092 = vmatpush1.msra.mxu0 %v422
    %1093 = vmatprep.subr.mxu0 %v419
    %1094 = vmatpush1.msra.mxu0 %v418
    %1095 = vmatprep.subr.mxu0 %v415
    %1096 = vmatpush1.msra.mxu0 %v414
    %1097 = vmatprep.subr.mxu0 %v411
    %1098 = vmatpush1.msra.mxu0 %v410
    %1099 = vmatprep.subr.mxu0 %v407
    %1100 = vmatpush1.msra.mxu0 %v406
    %1101 = vmatprep.subr.mxu0 %v403
    %1102 = vmatpush1.msra.mxu0 %v402
    %1103 = vmatprep.subr.mxu0 0.0
    %1104 = vmatpush2.msra.mxu0 0.0
    %1105 = vmatprep.subr.mxu0 0.0
    %1106 = vmatpush2.msra.mxu0 0.0
    %1107 = vmatprep.subr.mxu0 0.0
    %1108 = vmatpush2.msra.mxu0 0.0
    %1109 = vmatprep.subr.mxu0 0.0
    %1110 = vmatpush2.msra.mxu0 0.0
    %1111 = vmatprep.subr.mxu0 0.0
    %1112 = vmatpush2.msra.mxu0 0.0
    %1113 = vmatprep.subr.mxu0 0.0
    %1114 = vmatpush2.msra.mxu0 0.0
    %1115 = vmatprep.subr.mxu0 0.0
    %1116 = vmatpush2.msra.mxu0 0.0
    %1117 = vmatprep.subr.mxu0 0.0
    %1118 = vmatpush2.msra.mxu0 0.0
    %1119 = vmatprep.subr.mxu0 0.0
    %1120 = vmatpush2.msra.mxu0 0.0
    %1121 = vmatprep.subr.mxu0 0.0
    %1122 = vmatpush2.msra.mxu0 0.0
    %1123 = vmatprep.subr.mxu0 0.0
    %1124 = vmatpush2.msra.mxu0 0.0
    %1125 = vmatprep.subr.mxu0 0.0
    %1126 = vmatpush2.msra.mxu0 0.0
    %1127 = vmatprep.subr.mxu0 0.0
    %1128 = vmatpush2.msra.mxu0 0.0
    %1129 = vmatprep.subr.mxu0 0.0
    %1130 = vmatpush2.msra.mxu0 0.0
    %1131 = vmatprep.subr.mxu0 0.0
    %1132 = vmatpush2.msra.mxu0 0.0
    %1133 = vmatprep.subr.mxu0 0.0
    %1134 = vmatpush2.msra.mxu0 0.0
    %1135 = vmatprep.mubr.f32.mxu0 0.0
    %1136 = vmatmul.mubr.f32.gmra.mxu0 %v992
    %v1137 = vpop.f32.mrf.mxu0
    %v1138 = vadd.f32 0.0, %v1137
    %v1139 = vpop.f32.mrf.mxu0
    %v1140 = vadd.f32 0.0, %v1139
    %1141 = vdwg.mxu0
    %v1142 = vadd.f32 %v996, %v1067
    %v1143 = vadd.f32 %v997, %v1069
    %v1144 = vadd.f32 %v998, %v1138
    %v1145 = vadd.f32 %v999, %v1140
    %v1146 = vxor.u32 %v1142, 2147483648
    %v1147 = vmul.f32 %v1146, 1.442695
    %v1148 = vpow.pop %v1147
    %v1149 = vadd.f32 %v1148, 1.0
    %v1150 = vrcp.pop %v1149
    %v1151 = vmul.f32 1.0, %v1150
    %v1152 = vxor.u32 %v1143, 2147483648
    %v1153 = vmul.f32 %v1152, 1.442695
    %v1154 = vpow.pop %v1153
    %v1155 = vadd.f32 %v1154, 1.0
    %v1156 = vrcp.pop %v1155
    %v1157 = vmul.f32 1.0, %v1156
    %v1158 = vtanh.pop %v1144
    %v1159 = vxor.u32 %v1145, 2147483648
    %v1160 = vmul.f32 %v1159, 1.442695
    %v1161 = vpow.pop %v1160
    %v1162 = vadd.f32 %v1161, 1.0
    %v1163 = vrcp.pop %v1162
    %v1164 = vmul.f32 1.0, %v1163
    %v1165 = vmul.f32 %v1157, %v990
    %v1166 = vmul.f32 %v1151, %v1158
    %v1167 = vadd.f32 %v1165, %v1166
    %v1168 = vtanh.pop %v1167
    %v1169 = vmul.f32 %v1164, %v1168
    %s1170 = scalar_lea.vmem %s6, 24
    %1171 = vst [vmem:[%s1170] sm:$0xff] %v1169
    %s1172 = scalar_lea.vmem [#allocation4], 128
    %v1173 = vld [vmem:[%s1172] sm:$0xff]
    %v1174 = vld [vmem:[%s1172 + $0x8] sm:$0xff]
    %v1175 = vld [vmem:[%s1172 + $0x10] sm:$0xff]
    %v1176 = vld [vmem:[%s1172 + $0x18] sm:$0xff]
    %1177 = vmatprep.subr.mxu0 %v461
    %1178 = vmatpush1.msra.mxu0 %v460
    %1179 = vmatprep.subr.mxu0 %v457
    %1180 = vmatpush1.msra.mxu0 %v456
    %1181 = vmatprep.subr.mxu0 %v453
    %1182 = vmatpush1.msra.mxu0 %v452
    %1183 = vmatprep.subr.mxu0 %v449
    %1184 = vmatpush1.msra.mxu0 %v448
    %1185 = vmatprep.subr.mxu0 %v445
    %1186 = vmatpush1.msra.mxu0 %v444
    %1187 = vmatprep.subr.mxu0 %v441
    %1188 = vmatpush1.msra.mxu0 %v440
    %1189 = vmatprep.subr.mxu0 %v437
    %1190 = vmatpush1.msra.mxu0 %v436
    %1191 = vmatprep.subr.mxu0 %v433
    %1192 = vmatpush1.msra.mxu0 %v432
    %1193 = vmatprep.subr.mxu0 %v429
    %1194 = vmatpush1.msra.mxu0 %v428
    %1195 = vmatprep.subr.mxu0 %v425
    %1196 = vmatpush1.msra.mxu0 %v424
    %1197 = vmatprep.subr.mxu0 %v421
    %1198 = vmatpush1.msra.mxu0 %v420
    %1199 = vmatprep.subr.mxu0 %v417
    %1200 = vmatpush1.msra.mxu0 %v416
    %1201 = vmatprep.subr.mxu0 %v413
    %1202 = vmatpush1.msra.mxu0 %v412
    %1203 = vmatprep.subr.mxu0 %v409
    %1204 = vmatpush1.msra.mxu0 %v408
    %1205 = vmatprep.subr.mxu0 %v405
    %1206 = vmatpush1.msra.mxu0 %v404
    %1207 = vmatprep.subr.mxu0 %v401
    %1208 = vmatpush1.msra.mxu0 %v400
    %1209 = vmatprep.subr.mxu0 0.0
    %1210 = vmatpush2.msra.mxu0 0.0
    %1211 = vmatprep.subr.mxu0 0.0
    %1212 = vmatpush2.msra.mxu0 0.0
    %1213 = vmatprep.subr.mxu0 0.0
    %1214 = vmatpush2.msra.mxu0 0.0
    %1215 = vmatprep.subr.mxu0 0.0
    %1216 = vmatpush2.msra.mxu0 0.0
    %1217 = vmatprep.subr.mxu0 0.0
    %1218 = vmatpush2.msra.mxu0 0.0
    %1219 = vmatprep.subr.mxu0 0.0
    %1220 = vmatpush2.msra.mxu0 0.0
    %1221 = vmatprep.subr.mxu0 0.0
    %1222 = vmatpush2.msra.mxu0 0.0
    %1223 = vmatprep.subr.mxu0 0.0
    %1224 = vmatpush2.msra.mxu0 0.0
    %1225 = vmatprep.subr.mxu0 0.0
    %1226 = vmatpush2.msra.mxu0 0.0
    %1227 = vmatprep.subr.mxu0 0.0
    %1228 = vmatpush2.msra.mxu0 0.0
    %1229 = vmatprep.subr.mxu0 0.0
    %1230 = vmatpush2.msra.mxu0 0.0
    %1231 = vmatprep.subr.mxu0 0.0
    %1232 = vmatpush2.msra.mxu0 0.0
    %1233 = vmatprep.subr.mxu0 0.0
    %1234 = vmatpush2.msra.mxu0 0.0
    %1235 = vmatprep.subr.mxu0 0.0
    %1236 = vmatpush2.msra.mxu0 0.0
    %1237 = vmatprep.subr.mxu0 0.0
    %1238 = vmatpush2.msra.mxu0 0.0
    %1239 = vmatprep.subr.mxu0 0.0
    %1240 = vmatpush2.msra.mxu0 0.0
    %1241 = vmatprep.mubr.f32.mxu0 0.0
    %1242 = vmatmul.mubr.f32.gmra.mxu0 %v1169
    %v1243 = vpop.f32.mrf.mxu0
    %v1244 = vadd.f32 0.0, %v1243
    %v1245 = vpop.f32.mrf.mxu0
    %v1246 = vadd.f32 0.0, %v1245
    %1247 = vdwg.mxu0
    %1248 = vmatprep.subr.mxu0 %v463
    %1249 = vmatpush1.msra.mxu0 %v462
    %1250 = vmatprep.subr.mxu0 %v459
    %1251 = vmatpush1.msra.mxu0 %v458
    %1252 = vmatprep.subr.mxu0 %v455
    %1253 = vmatpush1.msra.mxu0 %v454
    %1254 = vmatprep.subr.mxu0 %v451
    %1255 = vmatpush1.msra.mxu0 %v450
    %1256 = vmatprep.subr.mxu0 %v447
    %1257 = vmatpush1.msra.mxu0 %v446
    %1258 = vmatprep.subr.mxu0 %v443
    %1259 = vmatpush1.msra.mxu0 %v442
    %1260 = vmatprep.subr.mxu0 %v439
    %1261 = vmatpush1.msra.mxu0 %v438
    %1262 = vmatprep.subr.mxu0 %v435
    %1263 = vmatpush1.msra.mxu0 %v434
    %1264 = vmatprep.subr.mxu0 %v431
    %1265 = vmatpush1.msra.mxu0 %v430
    %1266 = vmatprep.subr.mxu0 %v427
    %1267 = vmatpush1.msra.mxu0 %v426
    %1268 = vmatprep.subr.mxu0 %v423
    %1269 = vmatpush1.msra.mxu0 %v422
    %1270 = vmatprep.subr.mxu0 %v419
    %1271 = vmatpush1.msra.mxu0 %v418
    %1272 = vmatprep.subr.mxu0 %v415
    %1273 = vmatpush1.msra.mxu0 %v414
    %1274 = vmatprep.subr.mxu0 %v411
    %1275 = vmatpush1.msra.mxu0 %v410
    %1276 = vmatprep.subr.mxu0 %v407
    %1277 = vmatpush1.msra.mxu0 %v406
    %1278 = vmatprep.subr.mxu0 %v403
    %1279 = vmatpush1.msra.mxu0 %v402
    %1280 = vmatprep.subr.mxu0 0.0
    %1281 = vmatpush2.msra.mxu0 0.0
    %1282 = vmatprep.subr.mxu0 0.0
    %1283 = vmatpush2.msra.mxu0 0.0
    %1284 = vmatprep.subr.mxu0 0.0
    %1285 = vmatpush2.msra.mxu0 0.0
    %1286 = vmatprep.subr.mxu0 0.0
    %1287 = vmatpush2.msra.mxu0 0.0
    %1288 = vmatprep.subr.mxu0 0.0
    %1289 = vmatpush2.msra.mxu0 0.0
    %1290 = vmatprep.subr.mxu0 0.0
    %1291 = vmatpush2.msra.mxu0 0.0
    %1292 = vmatprep.subr.mxu0 0.0
    %1293 = vmatpush2.msra.mxu0 0.0
    %1294 = vmatprep.subr.mxu0 0.0
    %1295 = vmatpush2.msra.mxu0 0.0
    %1296 = vmatprep.subr.mxu0 0.0
    %1297 = vmatpush2.msra.mxu0 0.0
    %1298 = vmatprep.subr.mxu0 0.0
    %1299 = vmatpush2.msra.mxu0 0.0
    %1300 = vmatprep.subr.mxu0 0.0
    %1301 = vmatpush2.msra.mxu0 0.0
    %1302 = vmatprep.subr.mxu0 0.0
    %1303 = vmatpush2.msra.mxu0 0.0
    %1304 = vmatprep.subr.mxu0 0.0
    %1305 = vmatpush2.msra.mxu0 0.0
    %1306 = vmatprep.subr.mxu0 0.0
    %1307 = vmatpush2.msra.mxu0 0.0
    %1308 = vmatprep.subr.mxu0 0.0
    %1309 = vmatpush2.msra.mxu0 0.0
    %1310 = vmatprep.subr.mxu0 0.0
    %1311 = vmatpush2.msra.mxu0 0.0
    %1312 = vmatprep.mubr.f32.mxu0 0.0
    %1313 = vmatmul.mubr.f32.gmra.mxu0 %v1169
    %v1314 = vpop.f32.mrf.mxu0
    %v1315 = vadd.f32 0.0, %v1314
    %v1316 = vpop.f32.mrf.mxu0
    %v1317 = vadd.f32 0.0, %v1316
    %1318 = vdwg.mxu0
    %v1319 = vadd.f32 %v1173, %v1244
    %v1320 = vadd.f32 %v1174, %v1246
    %v1321 = vadd.f32 %v1175, %v1315
    %v1322 = vadd.f32 %v1176, %v1317
    %v1323 = vxor.u32 %v1319, 2147483648
    %v1324 = vmul.f32 %v1323, 1.442695
    %v1325 = vpow.pop %v1324
    %v1326 = vadd.f32 %v1325, 1.0
    %v1327 = vrcp.pop %v1326
    %v1328 = vmul.f32 1.0, %v1327
    %v1329 = vxor.u32 %v1320, 2147483648
    %v1330 = vmul.f32 %v1329, 1.442695
    %v1331 = vpow.pop %v1330
    %v1332 = vadd.f32 %v1331, 1.0
    %v1333 = vrcp.pop %v1332
    %v1334 = vmul.f32 1.0, %v1333
    %v1335 = vtanh.pop %v1321
    %v1336 = vxor.u32 %v1322, 2147483648
    %v1337 = vmul.f32 %v1336, 1.442695
    %v1338 = vpow.pop %v1337
    %v1339 = vadd.f32 %v1338, 1.0
    %v1340 = vrcp.pop %v1339
    %v1341 = vmul.f32 1.0, %v1340
    %v1342 = vmul.f32 %v1334, %v1167
    %v1343 = vmul.f32 %v1328, %v1335
    %v1344 = vadd.f32 %v1342, %v1343
    %v1345 = vtanh.pop %v1344
    %v1346 = vmul.f32 %v1341, %v1345
    %s1347 = scalar_lea.vmem %s6, 32
    %1348 = vst [vmem:[%s1347] sm:$0xff] %v1346
    %s1349 = scalar_lea.vmem [#allocation4], 160
    %v1350 = vld [vmem:[%s1349] sm:$0xff]
    %v1351 = vld [vmem:[%s1349 + $0x8] sm:$0xff]
    %v1352 = vld [vmem:[%s1349 + $0x10] sm:$0xff]
    %v1353 = vld [vmem:[%s1349 + $0x18] sm:$0xff]
    %1354 = vmatprep.subr.mxu0 %v461
    %1355 = vmatpush1.msra.mxu0 %v460
    %1356 = vmatprep.subr.mxu0 %v457
    %1357 = vmatpush1.msra.mxu0 %v456
    %1358 = vmatprep.subr.mxu0 %v453
    %1359 = vmatpush1.msra.mxu0 %v452
    %1360 = vmatprep.subr.mxu0 %v449
    %1361 = vmatpush1.msra.mxu0 %v448
    %1362 = vmatprep.subr.mxu0 %v445
    %1363 = vmatpush1.msra.mxu0 %v444
    %1364 = vmatprep.subr.mxu0 %v441
    %1365 = vmatpush1.msra.mxu0 %v440
    %1366 = vmatprep.subr.mxu0 %v437
    %1367 = vmatpush1.msra.mxu0 %v436
    %1368 = vmatprep.subr.mxu0 %v433
    %1369 = vmatpush1.msra.mxu0 %v432
    %1370 = vmatprep.subr.mxu0 %v429
    %1371 = vmatpush1.msra.mxu0 %v428
    %1372 = vmatprep.subr.mxu0 %v425
    %1373 = vmatpush1.msra.mxu0 %v424
    %1374 = vmatprep.subr.mxu0 %v421
    %1375 = vmatpush1.msra.mxu0 %v420
    %1376 = vmatprep.subr.mxu0 %v417
    %1377 = vmatpush1.msra.mxu0 %v416
    %1378 = vmatprep.subr.mxu0 %v413
    %1379 = vmatpush1.msra.mxu0 %v412
    %1380 = vmatprep.subr.mxu0 %v409
    %1381 = vmatpush1.msra.mxu0 %v408
    %1382 = vmatprep.subr.mxu0 %v405
    %1383 = vmatpush1.msra.mxu0 %v404
    %1384 = vmatprep.subr.mxu0 %v401
    %1385 = vmatpush1.msra.mxu0 %v400
    %1386 = vmatprep.subr.mxu0 0.0
    %1387 = vmatpush2.msra.mxu0 0.0
    %1388 = vmatprep.subr.mxu0 0.0
    %1389 = vmatpush2.msra.mxu0 0.0
    %1390 = vmatprep.subr.mxu0 0.0
    %1391 = vmatpush2.msra.mxu0 0.0
    %1392 = vmatprep.subr.mxu0 0.0
    %1393 = vmatpush2.msra.mxu0 0.0
    %1394 = vmatprep.subr.mxu0 0.0
    %1395 = vmatpush2.msra.mxu0 0.0
    %1396 = vmatprep.subr.mxu0 0.0
    %1397 = vmatpush2.msra.mxu0 0.0
    %1398 = vmatprep.subr.mxu0 0.0
    %1399 = vmatpush2.msra.mxu0 0.0
    %1400 = vmatprep.subr.mxu0 0.0
    %1401 = vmatpush2.msra.mxu0 0.0
    %1402 = vmatprep.subr.mxu0 0.0
    %1403 = vmatpush2.msra.mxu0 0.0
    %1404 = vmatprep.subr.mxu0 0.0
    %1405 = vmatpush2.msra.mxu0 0.0
    %1406 = vmatprep.subr.mxu0 0.0
    %1407 = vmatpush2.msra.mxu0 0.0
    %1408 = vmatprep.subr.mxu0 0.0
    %1409 = vmatpush2.msra.mxu0 0.0
    %1410 = vmatprep.subr.mxu0 0.0
    %1411 = vmatpush2.msra.mxu0 0.0
    %1412 = vmatprep.subr.mxu0 0.0
    %1413 = vmatpush2.msra.mxu0 0.0
    %1414 = vmatprep.subr.mxu0 0.0
    %1415 = vmatpush2.msra.mxu0 0.0
    %1416 = vmatprep.subr.mxu0 0.0
    %1417 = vmatpush2.msra.mxu0 0.0
    %1418 = vmatprep.mubr.f32.mxu0 0.0
    %1419 = vmatmul.mubr.f32.gmra.mxu0 %v1346
    %v1420 = vpop.f32.mrf.mxu0
    %v1421 = vadd.f32 0.0, %v1420
    %v1422 = vpop.f32.mrf.mxu0
    %v1423 = vadd.f32 0.0, %v1422
    %1424 = vdwg.mxu0
    %1425 = vmatprep.subr.mxu0 %v463
    %1426 = vmatpush1.msra.mxu0 %v462
    %1427 = vmatprep.subr.mxu0 %v459
    %1428 = vmatpush1.msra.mxu0 %v458
    %1429 = vmatprep.subr.mxu0 %v455
    %1430 = vmatpush1.msra.mxu0 %v454
    %1431 = vmatprep.subr.mxu0 %v451
    %1432 = vmatpush1.msra.mxu0 %v450
    %1433 = vmatprep.subr.mxu0 %v447
    %1434 = vmatpush1.msra.mxu0 %v446
    %1435 = vmatprep.subr.mxu0 %v443
    %1436 = vmatpush1.msra.mxu0 %v442
    %1437 = vmatprep.subr.mxu0 %v439
    %1438 = vmatpush1.msra.mxu0 %v438
    %1439 = vmatprep.subr.mxu0 %v435
    %1440 = vmatpush1.msra.mxu0 %v434
    %1441 = vmatprep.subr.mxu0 %v431
    %1442 = vmatpush1.msra.mxu0 %v430
    %1443 = vmatprep.subr.mxu0 %v427
    %1444 = vmatpush1.msra.mxu0 %v426
    %1445 = vmatprep.subr.mxu0 %v423
    %1446 = vmatpush1.msra.mxu0 %v422
    %1447 = vmatprep.subr.mxu0 %v419
    %1448 = vmatpush1.msra.mxu0 %v418
    %1449 = vmatprep.subr.mxu0 %v415
    %1450 = vmatpush1.msra.mxu0 %v414
    %1451 = vmatprep.subr.mxu0 %v411
    %1452 = vmatpush1.msra.mxu0 %v410
    %1453 = vmatprep.subr.mxu0 %v407
    %1454 = vmatpush1.msra.mxu0 %v406
    %1455 = vmatprep.subr.mxu0 %v403
    %1456 = vmatpush1.msra.mxu0 %v402
    %1457 = vmatprep.subr.mxu0 0.0
    %1458 = vmatpush2.msra.mxu0 0.0
    %1459 = vmatprep.subr.mxu0 0.0
    %1460 = vmatpush2.msra.mxu0 0.0
    %1461 = vmatprep.subr.mxu0 0.0
    %1462 = vmatpush2.msra.mxu0 0.0
    %1463 = vmatprep.subr.mxu0 0.0
    %1464 = vmatpush2.msra.mxu0 0.0
    %1465 = vmatprep.subr.mxu0 0.0
    %1466 = vmatpush2.msra.mxu0 0.0
    %1467 = vmatprep.subr.mxu0 0.0
    %1468 = vmatpush2.msra.mxu0 0.0
    %1469 = vmatprep.subr.mxu0 0.0
    %1470 = vmatpush2.msra.mxu0 0.0
    %1471 = vmatprep.subr.mxu0 0.0
    %1472 = vmatpush2.msra.mxu0 0.0
    %1473 = vmatprep.subr.mxu0 0.0
    %1474 = vmatpush2.msra.mxu0 0.0
    %1475 = vmatprep.subr.mxu0 0.0
    %1476 = vmatpush2.msra.mxu0 0.0
    %1477 = vmatprep.subr.mxu0 0.0
    %1478 = vmatpush2.msra.mxu0 0.0
    %1479 = vmatprep.subr.mxu0 0.0
    %1480 = vmatpush2.msra.mxu0 0.0
    %1481 = vmatprep.subr.mxu0 0.0
    %1482 = vmatpush2.msra.mxu0 0.0
    %1483 = vmatprep.subr.mxu0 0.0
    %1484 = vmatpush2.msra.mxu0 0.0
    %1485 = vmatprep.subr.mxu0 0.0
    %1486 = vmatpush2.msra.mxu0 0.0
    %1487 = vmatprep.subr.mxu0 0.0
    %1488 = vmatpush2.msra.mxu0 0.0
    %1489 = vmatprep.mubr.f32.mxu0 0.0
    %1490 = vmatmul.mubr.f32.gmra.mxu0 %v1346
    %v1491 = vpop.f32.mrf.mxu0
    %v1492 = vadd.f32 0.0, %v1491
    %v1493 = vpop.f32.mrf.mxu0
    %v1494 = vadd.f32 0.0, %v1493
    %1495 = vdwg.mxu0
    %v1496 = vadd.f32 %v1350, %v1421
    %v1497 = vadd.f32 %v1351, %v1423
    %v1498 = vadd.f32 %v1352, %v1492
    %v1499 = vadd.f32 %v1353, %v1494
    %v1500 = vxor.u32 %v1496, 2147483648
    %v1501 = vmul.f32 %v1500, 1.442695
    %v1502 = vpow.pop %v1501
    %v1503 = vadd.f32 %v1502, 1.0
    %v1504 = vrcp.pop %v1503
    %v1505 = vmul.f32 1.0, %v1504
    %v1506 = vxor.u32 %v1497, 2147483648
    %v1507 = vmul.f32 %v1506, 1.442695
    %v1508 = vpow.pop %v1507
    %v1509 = vadd.f32 %v1508, 1.0
    %v1510 = vrcp.pop %v1509
    %v1511 = vmul.f32 1.0, %v1510
    %v1512 = vtanh.pop %v1498
    %v1513 = vxor.u32 %v1499, 2147483648
    %v1514 = vmul.f32 %v1513, 1.442695
    %v1515 = vpow.pop %v1514
    %v1516 = vadd.f32 %v1515, 1.0
    %v1517 = vrcp.pop %v1516
    %v1518 = vmul.f32 1.0, %v1517
    %v1519 = vmul.f32 %v1511, %v1344
    %v1520 = vmul.f32 %v1505, %v1512
    %v1521 = vadd.f32 %v1519, %v1520
    %v1522 = vtanh.pop %v1521
    %v1523 = vmul.f32 %v1518, %v1522
    %s1524 = scalar_lea.vmem %s6, 40
    %1525 = vst [vmem:[%s1524] sm:$0xff] %v1523
    %s1526 = scalar_lea.vmem [#allocation4], 192
    %v1527 = vld [vmem:[%s1526] sm:$0xff]
    %v1528 = vld [vmem:[%s1526 + $0x8] sm:$0xff]
    %v1529 = vld [vmem:[%s1526 + $0x10] sm:$0xff]
    %v1530 = vld [vmem:[%s1526 + $0x18] sm:$0xff]
    %1531 = vmatprep.subr.mxu0 %v461
    %1532 = vmatpush1.msra.mxu0 %v460
    %1533 = vmatprep.subr.mxu0 %v457
    %1534 = vmatpush1.msra.mxu0 %v456
    %1535 = vmatprep.subr.mxu0 %v453
    %1536 = vmatpush1.msra.mxu0 %v452
    %1537 = vmatprep.subr.mxu0 %v449
    %1538 = vmatpush1.msra.mxu0 %v448
    %1539 = vmatprep.subr.mxu0 %v445
    %1540 = vmatpush1.msra.mxu0 %v444
    %1541 = vmatprep.subr.mxu0 %v441
    %1542 = vmatpush1.msra.mxu0 %v440
    %1543 = vmatprep.subr.mxu0 %v437
    %1544 = vmatpush1.msra.mxu0 %v436
    %1545 = vmatprep.subr.mxu0 %v433
    %1546 = vmatpush1.msra.mxu0 %v432
    %1547 = vmatprep.subr.mxu0 %v429
    %1548 = vmatpush1.msra.mxu0 %v428
    %1549 = vmatprep.subr.mxu0 %v425
    %1550 = vmatpush1.msra.mxu0 %v424
    %1551 = vmatprep.subr.mxu0 %v421
    %1552 = vmatpush1.msra.mxu0 %v420
    %1553 = vmatprep.subr.mxu0 %v417
    %1554 = vmatpush1.msra.mxu0 %v416
    %1555 = vmatprep.subr.mxu0 %v413
    %1556 = vmatpush1.msra.mxu0 %v412
    %1557 = vmatprep.subr.mxu0 %v409
    %1558 = vmatpush1.msra.mxu0 %v408
    %1559 = vmatprep.subr.mxu0 %v405
    %1560 = vmatpush1.msra.mxu0 %v404
    %1561 = vmatprep.subr.mxu0 %v401
    %1562 = vmatpush1.msra.mxu0 %v400
    %1563 = vmatprep.subr.mxu0 0.0
    %1564 = vmatpush2.msra.mxu0 0.0
    %1565 = vmatprep.subr.mxu0 0.0
    %1566 = vmatpush2.msra.mxu0 0.0
    %1567 = vmatprep.subr.mxu0 0.0
    %1568 = vmatpush2.msra.mxu0 0.0
    %1569 = vmatprep.subr.mxu0 0.0
    %1570 = vmatpush2.msra.mxu0 0.0
    %1571 = vmatprep.subr.mxu0 0.0
    %1572 = vmatpush2.msra.mxu0 0.0
    %1573 = vmatprep.subr.mxu0 0.0
    %1574 = vmatpush2.msra.mxu0 0.0
    %1575 = vmatprep.subr.mxu0 0.0
    %1576 = vmatpush2.msra.mxu0 0.0
    %1577 = vmatprep.subr.mxu0 0.0
    %1578 = vmatpush2.msra.mxu0 0.0
    %1579 = vmatprep.subr.mxu0 0.0
    %1580 = vmatpush2.msra.mxu0 0.0
    %1581 = vmatprep.subr.mxu0 0.0
    %1582 = vmatpush2.msra.mxu0 0.0
    %1583 = vmatprep.subr.mxu0 0.0
    %1584 = vmatpush2.msra.mxu0 0.0
    %1585 = vmatprep.subr.mxu0 0.0
    %1586 = vmatpush2.msra.mxu0 0.0
    %1587 = vmatprep.subr.mxu0 0.0
    %1588 = vmatpush2.msra.mxu0 0.0
    %1589 = vmatprep.subr.mxu0 0.0
    %1590 = vmatpush2.msra.mxu0 0.0
    %1591 = vmatprep.subr.mxu0 0.0
    %1592 = vmatpush2.msra.mxu0 0.0
    %1593 = vmatprep.subr.mxu0 0.0
    %1594 = vmatpush2.msra.mxu0 0.0
    %1595 = vmatprep.mubr.f32.mxu0 0.0
    %1596 = vmatmul.mubr.f32.gmra.mxu0 %v1523
    %v1597 = vpop.f32.mrf.mxu0
    %v1598 = vadd.f32 0.0, %v1597
    %v1599 = vpop.f32.mrf.mxu0
    %v1600 = vadd.f32 0.0, %v1599
    %1601 = vdwg.mxu0
    %1602 = vmatprep.subr.mxu0 %v463
    %1603 = vmatpush1.msra.mxu0 %v462
    %1604 = vmatprep.subr.mxu0 %v459
    %1605 = vmatpush1.msra.mxu0 %v458
    %1606 = vmatprep.subr.mxu0 %v455
    %1607 = vmatpush1.msra.mxu0 %v454
    %1608 = vmatprep.subr.mxu0 %v451
    %1609 = vmatpush1.msra.mxu0 %v450
    %1610 = vmatprep.subr.mxu0 %v447
    %1611 = vmatpush1.msra.mxu0 %v446
    %1612 = vmatprep.subr.mxu0 %v443
    %1613 = vmatpush1.msra.mxu0 %v442
    %1614 = vmatprep.subr.mxu0 %v439
    %1615 = vmatpush1.msra.mxu0 %v438
    %1616 = vmatprep.subr.mxu0 %v435
    %1617 = vmatpush1.msra.mxu0 %v434
    %1618 = vmatprep.subr.mxu0 %v431
    %1619 = vmatpush1.msra.mxu0 %v430
    %1620 = vmatprep.subr.mxu0 %v427
    %1621 = vmatpush1.msra.mxu0 %v426
    %1622 = vmatprep.subr.mxu0 %v423
    %1623 = vmatpush1.msra.mxu0 %v422
    %1624 = vmatprep.subr.mxu0 %v419
    %1625 = vmatpush1.msra.mxu0 %v418
    %1626 = vmatprep.subr.mxu0 %v415
    %1627 = vmatpush1.msra.mxu0 %v414
    %1628 = vmatprep.subr.mxu0 %v411
    %1629 = vmatpush1.msra.mxu0 %v410
    %1630 = vmatprep.subr.mxu0 %v407
    %1631 = vmatpush1.msra.mxu0 %v406
    %1632 = vmatprep.subr.mxu0 %v403
    %1633 = vmatpush1.msra.mxu0 %v402
    %1634 = vmatprep.subr.mxu0 0.0
    %1635 = vmatpush2.msra.mxu0 0.0
    %1636 = vmatprep.subr.mxu0 0.0
    %1637 = vmatpush2.msra.mxu0 0.0
    %1638 = vmatprep.subr.mxu0 0.0
    %1639 = vmatpush2.msra.mxu0 0.0
    %1640 = vmatprep.subr.mxu0 0.0
    %1641 = vmatpush2.msra.mxu0 0.0
    %1642 = vmatprep.subr.mxu0 0.0
    %1643 = vmatpush2.msra.mxu0 0.0
    %1644 = vmatprep.subr.mxu0 0.0
    %1645 = vmatpush2.msra.mxu0 0.0
    %1646 = vmatprep.subr.mxu0 0.0
    %1647 = vmatpush2.msra.mxu0 0.0
    %1648 = vmatprep.subr.mxu0 0.0
    %1649 = vmatpush2.msra.mxu0 0.0
    %1650 = vmatprep.subr.mxu0 0.0
    %1651 = vmatpush2.msra.mxu0 0.0
    %1652 = vmatprep.subr.mxu0 0.0
    %1653 = vmatpush2.msra.mxu0 0.0
    %1654 = vmatprep.subr.mxu0 0.0
    %1655 = vmatpush2.msra.mxu0 0.0
    %1656 = vmatprep.subr.mxu0 0.0
    %1657 = vmatpush2.msra.mxu0 0.0
    %1658 = vmatprep.subr.mxu0 0.0
    %1659 = vmatpush2.msra.mxu0 0.0
    %1660 = vmatprep.subr.mxu0 0.0
    %1661 = vmatpush2.msra.mxu0 0.0
    %1662 = vmatprep.subr.mxu0 0.0
    %1663 = vmatpush2.msra.mxu0 0.0
    %1664 = vmatprep.subr.mxu0 0.0
    %1665 = vmatpush2.msra.mxu0 0.0
    %1666 = vmatprep.mubr.f32.mxu0 0.0
    %1667 = vmatmul.mubr.f32.gmra.mxu0 %v1523
    %v1668 = vpop.f32.mrf.mxu0
    %v1669 = vadd.f32 0.0, %v1668
    %v1670 = vpop.f32.mrf.mxu0
    %v1671 = vadd.f32 0.0, %v1670
    %1672 = vdwg.mxu0
    %v1673 = vadd.f32 %v1527, %v1598
    %v1674 = vadd.f32 %v1528, %v1600
    %v1675 = vadd.f32 %v1529, %v1669
    %v1676 = vadd.f32 %v1530, %v1671
    %v1677 = vxor.u32 %v1673, 2147483648
    %v1678 = vmul.f32 %v1677, 1.442695
    %v1679 = vpow.pop %v1678
    %v1680 = vadd.f32 %v1679, 1.0
    %v1681 = vrcp.pop %v1680
    %v1682 = vmul.f32 1.0, %v1681
    %v1683 = vxor.u32 %v1674, 2147483648
    %v1684 = vmul.f32 %v1683, 1.442695
    %v1685 = vpow.pop %v1684
    %v1686 = vadd.f32 %v1685, 1.0
    %v1687 = vrcp.pop %v1686
    %v1688 = vmul.f32 1.0, %v1687
    %v1689 = vtanh.pop %v1675
    %v1690 = vxor.u32 %v1676, 2147483648
    %v1691 = vmul.f32 %v1690, 1.442695
    %v1692 = vpow.pop %v1691
    %v1693 = vadd.f32 %v1692, 1.0
    %v1694 = vrcp.pop %v1693
    %v1695 = vmul.f32 1.0, %v1694
    %v1696 = vmul.f32 %v1688, %v1521
    %v1697 = vmul.f32 %v1682, %v1689
    %v1698 = vadd.f32 %v1696, %v1697
    %v1699 = vtanh.pop %v1698
    %v1700 = vmul.f32 %v1695, %v1699
    %s1701 = scalar_lea.vmem %s6, 48
    %1702 = vst [vmem:[%s1701] sm:$0xff] %v1700
    %s1703 = scalar_lea.vmem [#allocation4], 224
    %v1704 = vld [vmem:[%s1703] sm:$0xff]
    %v1705 = vld [vmem:[%s1703 + $0x8] sm:$0xff]
    %v1706 = vld [vmem:[%s1703 + $0x10] sm:$0xff]
    %v1707 = vld [vmem:[%s1703 + $0x18] sm:$0xff]
    %1708 = vmatprep.subr.mxu0 %v461
    %1709 = vmatpush1.msra.mxu0 %v460
    %1710 = vmatprep.subr.mxu0 %v457
    %1711 = vmatpush1.msra.mxu0 %v456
    %1712 = vmatprep.subr.mxu0 %v453
    %1713 = vmatpush1.msra.mxu0 %v452
    %1714 = vmatprep.subr.mxu0 %v449
    %1715 = vmatpush1.msra.mxu0 %v448
    %1716 = vmatprep.subr.mxu0 %v445
    %1717 = vmatpush1.msra.mxu0 %v444
    %1718 = vmatprep.subr.mxu0 %v441
    %1719 = vmatpush1.msra.mxu0 %v440
    %1720 = vmatprep.subr.mxu0 %v437
    %1721 = vmatpush1.msra.mxu0 %v436
    %1722 = vmatprep.subr.mxu0 %v433
    %1723 = vmatpush1.msra.mxu0 %v432
    %1724 = vmatprep.subr.mxu0 %v429
    %1725 = vmatpush1.msra.mxu0 %v428
    %1726 = vmatprep.subr.mxu0 %v425
    %1727 = vmatpush1.msra.mxu0 %v424
    %1728 = vmatprep.subr.mxu0 %v421
    %1729 = vmatpush1.msra.mxu0 %v420
    %1730 = vmatprep.subr.mxu0 %v417
    %1731 = vmatpush1.msra.mxu0 %v416
    %1732 = vmatprep.subr.mxu0 %v413
    %1733 = vmatpush1.msra.mxu0 %v412
    %1734 = vmatprep.subr.mxu0 %v409
    %1735 = vmatpush1.msra.mxu0 %v408
    %1736 = vmatprep.subr.mxu0 %v405
    %1737 = vmatpush1.msra.mxu0 %v404
    %1738 = vmatprep.subr.mxu0 %v401
    %1739 = vmatpush1.msra.mxu0 %v400
    %1740 = vmatprep.subr.mxu0 0.0
    %1741 = vmatpush2.msra.mxu0 0.0
    %1742 = vmatprep.subr.mxu0 0.0
    %1743 = vmatpush2.msra.mxu0 0.0
    %1744 = vmatprep.subr.mxu0 0.0
    %1745 = vmatpush2.msra.mxu0 0.0
    %1746 = vmatprep.subr.mxu0 0.0
    %1747 = vmatpush2.msra.mxu0 0.0
    %1748 = vmatprep.subr.mxu0 0.0
    %1749 = vmatpush2.msra.mxu0 0.0
    %1750 = vmatprep.subr.mxu0 0.0
    %1751 = vmatpush2.msra.mxu0 0.0
    %1752 = vmatprep.subr.mxu0 0.0
    %1753 = vmatpush2.msra.mxu0 0.0
    %1754 = vmatprep.subr.mxu0 0.0
    %1755 = vmatpush2.msra.mxu0 0.0
    %1756 = vmatprep.subr.mxu0 0.0
    %1757 = vmatpush2.msra.mxu0 0.0
    %1758 = vmatprep.subr.mxu0 0.0
    %1759 = vmatpush2.msra.mxu0 0.0
    %1760 = vmatprep.subr.mxu0 0.0
    %1761 = vmatpush2.msra.mxu0 0.0
    %1762 = vmatprep.subr.mxu0 0.0
    %1763 = vmatpush2.msra.mxu0 0.0
    %1764 = vmatprep.subr.mxu0 0.0
    %1765 = vmatpush2.msra.mxu0 0.0
    %1766 = vmatprep.subr.mxu0 0.0
    %1767 = vmatpush2.msra.mxu0 0.0
    %1768 = vmatprep.subr.mxu0 0.0
    %1769 = vmatpush2.msra.mxu0 0.0
    %1770 = vmatprep.subr.mxu0 0.0
    %1771 = vmatpush2.msra.mxu0 0.0
    %1772 = vmatprep.mubr.f32.mxu0 0.0
    %1773 = vmatmul.mubr.f32.gmra.mxu0 %v1700
    %v1774 = vpop.f32.mrf.mxu0
    %v1775 = vadd.f32 0.0, %v1774
    %v1776 = vpop.f32.mrf.mxu0
    %v1777 = vadd.f32 0.0, %v1776
    %1778 = vdwg.mxu0
    %1779 = vmatprep.subr.mxu0 %v463
    %1780 = vmatpush1.msra.mxu0 %v462
    %1781 = vmatprep.subr.mxu0 %v459
    %1782 = vmatpush1.msra.mxu0 %v458
    %1783 = vmatprep.subr.mxu0 %v455
    %1784 = vmatpush1.msra.mxu0 %v454
    %1785 = vmatprep.subr.mxu0 %v451
    %1786 = vmatpush1.msra.mxu0 %v450
    %1787 = vmatprep.subr.mxu0 %v447
    %1788 = vmatpush1.msra.mxu0 %v446
    %1789 = vmatprep.subr.mxu0 %v443
    %1790 = vmatpush1.msra.mxu0 %v442
    %1791 = vmatprep.subr.mxu0 %v439
    %1792 = vmatpush1.msra.mxu0 %v438
    %1793 = vmatprep.subr.mxu0 %v435
    %1794 = vmatpush1.msra.mxu0 %v434
    %1795 = vmatprep.subr.mxu0 %v431
    %1796 = vmatpush1.msra.mxu0 %v430
    %1797 = vmatprep.subr.mxu0 %v427
    %1798 = vmatpush1.msra.mxu0 %v426
    %1799 = vmatprep.subr.mxu0 %v423
    %1800 = vmatpush1.msra.mxu0 %v422
    %1801 = vmatprep.subr.mxu0 %v419
    %1802 = vmatpush1.msra.mxu0 %v418
    %1803 = vmatprep.subr.mxu0 %v415
    %1804 = vmatpush1.msra.mxu0 %v414
    %1805 = vmatprep.subr.mxu0 %v411
    %1806 = vmatpush1.msra.mxu0 %v410
    %1807 = vmatprep.subr.mxu0 %v407
    %1808 = vmatpush1.msra.mxu0 %v406
    %1809 = vmatprep.subr.mxu0 %v403
    %1810 = vmatpush1.msra.mxu0 %v402
    %1811 = vmatprep.subr.mxu0 0.0
    %1812 = vmatpush2.msra.mxu0 0.0
    %1813 = vmatprep.subr.mxu0 0.0
    %1814 = vmatpush2.msra.mxu0 0.0
    %1815 = vmatprep.subr.mxu0 0.0
    %1816 = vmatpush2.msra.mxu0 0.0
    %1817 = vmatprep.subr.mxu0 0.0
    %1818 = vmatpush2.msra.mxu0 0.0
    %1819 = vmatprep.subr.mxu0 0.0
    %1820 = vmatpush2.msra.mxu0 0.0
    %1821 = vmatprep.subr.mxu0 0.0
    %1822 = vmatpush2.msra.mxu0 0.0
    %1823 = vmatprep.subr.mxu0 0.0
    %1824 = vmatpush2.msra.mxu0 0.0
    %1825 = vmatprep.subr.mxu0 0.0
    %1826 = vmatpush2.msra.mxu0 0.0
    %1827 = vmatprep.subr.mxu0 0.0
    %1828 = vmatpush2.msra.mxu0 0.0
    %1829 = vmatprep.subr.mxu0 0.0
    %1830 = vmatpush2.msra.mxu0 0.0
    %1831 = vmatprep.subr.mxu0 0.0
    %1832 = vmatpush2.msra.mxu0 0.0
    %1833 = vmatprep.subr.mxu0 0.0
    %1834 = vmatpush2.msra.mxu0 0.0
    %1835 = vmatprep.subr.mxu0 0.0
    %1836 = vmatpush2.msra.mxu0 0.0
    %1837 = vmatprep.subr.mxu0 0.0
    %1838 = vmatpush2.msra.mxu0 0.0
    %1839 = vmatprep.subr.mxu0 0.0
    %1840 = vmatpush2.msra.mxu0 0.0
    %1841 = vmatprep.subr.mxu0 0.0
    %1842 = vmatpush2.msra.mxu0 0.0
    %1843 = vmatprep.mubr.f32.mxu0 0.0
    %1844 = vmatmul.mubr.f32.gmra.mxu0 %v1700
    %v1845 = vpop.f32.mrf.mxu0
    %v1846 = vadd.f32 0.0, %v1845
    %v1847 = vpop.f32.mrf.mxu0
    %v1848 = vadd.f32 0.0, %v1847
    %1849 = vdwg.mxu0
    %v1850 = vadd.f32 %v1704, %v1775
    %v1851 = vadd.f32 %v1705, %v1777
    %v1852 = vadd.f32 %v1706, %v1846
    %v1853 = vadd.f32 %v1707, %v1848
    %v1854 = vxor.u32 %v1850, 2147483648
    %v1855 = vmul.f32 %v1854, 1.442695
    %v1856 = vpow.pop %v1855
    %v1857 = vadd.f32 %v1856, 1.0
    %v1858 = vrcp.pop %v1857
    %v1859 = vmul.f32 1.0, %v1858
    %v1860 = vxor.u32 %v1851, 2147483648
    %v1861 = vmul.f32 %v1860, 1.442695
    %v1862 = vpow.pop %v1861
    %v1863 = vadd.f32 %v1862, 1.0
    %v1864 = vrcp.pop %v1863
    %v1865 = vmul.f32 1.0, %v1864
    %v1866 = vtanh.pop %v1852
    %v1867 = vxor.u32 %v1853, 2147483648
    %v1868 = vmul.f32 %v1867, 1.442695
    %v1869 = vpow.pop %v1868
    %v1870 = vadd.f32 %v1869, 1.0
    %v1871 = vrcp.pop %v1870
    %v1872 = vmul.f32 1.0, %v1871
    %v1873 = vmul.f32 %v1865, %v1698
    %v1874 = vmul.f32 %v1859, %v1866
    %v1875 = vadd.f32 %v1873, %v1874
    %v1876 = vtanh.pop %v1875
    %v1877 = vmul.f32 %v1872, %v1876
    %s1878 = scalar_lea.vmem %s6, 56
    %1879 = vst [vmem:[%s1878] sm:$0xff] %v1877
    %1880 = vst [vmem:[#allocation2] sm:$0xff] %v1877
    %1881 = vst [vmem:[#allocation3] sm:$0xff] %v1875
    %1882 = vst [vmem:[%s7] sm:$0xff] %v1877
    %1883 = vst [vmem:[%s8] sm:$0xff] %v1875
    // Predicated region
    $region34: #{_lambda_.3} parent=1 // pred_check
      _
    $region35: #{_lambda_.3} parent=1 // pred_check_branch
      %1885 = sbr.rel (0) target = $region37
    $region36: #{_lambda_.3} parent=1 // pred_region
      _
    $region37: #{_lambda_.3} parent=1 // pred_fallthru
      _
    // Predicated region
    $region38: #{_lambda_.3} parent=1 // pred_check
      _
    $region39: #{_lambda_.3} parent=1 // pred_check_branch
      %1887 = sbr.rel (0) target = $region41
    $region40: #{_lambda_.3} parent=1 // pred_region
      _
    $region41: #{_lambda_.3} parent=1 // pred_fallthru
      _
    // Predicated region
    $region42: #{_lambda_.3} parent=1 // pred_check
      _
    $region43: #{_lambda_.3} parent=1 // pred_check_branch
      %1889 = sbr.rel (0) target = $region45
    $region44: #{_lambda_.3} parent=1 // pred_region
      _
    $region45: #{_lambda_.3} parent=1 // pred_fallthru
      _
    // Predicated region
    $region46: #{_lambda_.3} parent=1 // pred_check
      _
    $region47: #{_lambda_.3} parent=1 // pred_check_branch
      %1891 = sbr.rel (0) target = $region49
    $region48: #{_lambda_.3} parent=1 // pred_region
      _
    $region49: #{_lambda_.3} parent=1 // pred_fallthru
      _
    // Predicated region
    $region50: #{_lambda_.3} parent=1 // pred_check
      _
    $region51: #{_lambda_.3} parent=1 // pred_check_branch
      %1893 = sbr.rel (0) target = $region53
    $region52: #{_lambda_.3} parent=1 // pred_region
      _
    $region53: #{_lambda_.3} parent=1 // pred_fallthru
      _
    // Predicated region
    $region54: #{_lambda_.3} parent=1 // pred_check
      _
    $region55: #{_lambda_.3} parent=1 // pred_check_branch
      %1895 = sbr.rel (0) target = $region57
    $region56: #{_lambda_.3} parent=1 // pred_region
      _
    $region57: #{_lambda_.3} parent=1 // pred_fallthru
      _
    %1896 = vsyncpa [#allocation6], 1

// kernel: _lambda_.4
$region0: #{_lambda_.4}
  #allocation0 [shape = 'u32[]', space=smem, size = 0x4, offset = 0x4, fixed_abs, tag = 'smem constant byte address 0x4 - core index']
  #allocation1 [shape = 'u32[144,128]{1,0:T(1,128)}', space=vmem, size = 0x12000, scoped, tag = 'internal scratch']
  #allocation2 [shape = 'f32[8,128]{1,0:T(8,128)}', space=vmem, size = 0x1000, scoped, tag = 'scratch operand']
  #allocation3 [shape = 'f32[8,128]{1,0:T(8,128)}', space=vmem, size = 0x1000, scoped, tag = 'scratch operand']
  #allocation4 [shape = 'f32[8,8,512]{2,1,0:T(8,128)}', space=vmem, size = 0x20000, scoped, tag = 'scratch operand']
  %s0 = inlined_call_operand.vmem [shape: f32[8,8,128], index: 0, kind: input, shape index: {}]
  %s1 = inlined_call_operand.vmem [shape: f32[8,128], index: 1, kind: input, shape index: {}]
  %s2 = inlined_call_operand.vmem [shape: f32[8,128], index: 2, kind: input, shape index: {}]
  %s3 = inlined_call_operand.vmem [shape: f32[128,512], index: 3, kind: input, shape index: {}]
  %s4 = inlined_call_operand.vmem [shape: f32[128,512], index: 4, kind: input, shape index: {}]
  %s5 = inlined_call_operand.vmem [shape: f32[1,512], index: 5, kind: input, shape index: {}]
  %s6 = inlined_call_operand.vmem [shape: f32[8,8,128], index: 6, kind: output, shape index: {0}]
  %s7 = inlined_call_operand.vmem [shape: f32[8,128], index: 7, kind: output, shape index: {1}]
  %s8 = inlined_call_operand.vmem [shape: f32[8,128], index: 8, kind: output, shape index: {2}]
  %9 = xla_tuple %s6, %s7, %s8
  %s10 = sld [smem:[#allocation0]]
  $region54: #{_lambda_.4} parent=0
    _
  %s12 = ssub.s32 1, %s10
  %s13 = scalar_select 0, %s12, %s10
  // Predicated region
  $region2: #{_lambda_.4} parent=0 // pred_check
    _
  $region3: #{_lambda_.4} parent=0 // pred_check_branch
    %15 = sbr.rel (0) target = $region5
  $region4: #{_lambda_.4} parent=0 // pred_region
    _
  $region5: #{_lambda_.4} parent=0 // pred_fallthru
    _
  // Predicated region
  $region6: #{_lambda_.4} parent=0 // pred_check
    _
  $region7: #{_lambda_.4} parent=0 // pred_check_branch
    %17 = sbr.rel (0) target = $region9
  $region8: #{_lambda_.4} parent=0 // pred_region
    _
  $region9: #{_lambda_.4} parent=0 // pred_fallthru
    _
  // Predicated region
  $region10: #{_lambda_.4} parent=0 // pred_check
    _
  $region11: #{_lambda_.4} parent=0 // pred_check_branch
    %19 = sbr.rel (0) target = $region13
  $region12: #{_lambda_.4} parent=0 // pred_region
    _
  $region13: #{_lambda_.4} parent=0 // pred_fallthru
    _
  // Predicated region
  $region14: #{_lambda_.4} parent=0 // pred_check
    _
  $region15: #{_lambda_.4} parent=0 // pred_check_branch
    %21 = sbr.rel (0) target = $region17
  $region16: #{_lambda_.4} parent=0 // pred_region
    _
  $region17: #{_lambda_.4} parent=0 // pred_fallthru
    _
  // Predicated region
  $region18: #{_lambda_.4} parent=0 // pred_check
    _
  $region19: #{_lambda_.4} parent=0 // pred_check_branch
    %23 = sbr.rel (0) target = $region21
  $region20: #{_lambda_.4} parent=0 // pred_region
    _
  $region21: #{_lambda_.4} parent=0 // pred_fallthru
    _
  // Predicated region
  $region22: #{_lambda_.4} parent=0 // pred_check
    _
  $region23: #{_lambda_.4} parent=0 // pred_check_branch
    %25 = sbr.rel (0) target = $region25
  $region24: #{_lambda_.4} parent=0 // pred_region
    _
  $region25: #{_lambda_.4} parent=0 // pred_fallthru
    _
  %p26 = scmp.eq.s32.totalorder 0, 0
  // Predicated region
  $region26: #{_lambda_.4} parent=0 // pred_check
    %p27 = pneg %p26
  $region27: #{_lambda_.4} parent=0 // pred_check_branch
    %29 = sbr.rel (%p27) target = $region29
  $region28: #{_lambda_.4} parent=0 // pred_region
    %v30 = vld [vmem:[%s1] sm:$0xff]
    %31 = vst [vmem:[#allocation2] sm:$0xff] %v30
    %v32 = vld [vmem:[%s2] sm:$0xff]
    %33 = vst [vmem:[#allocation3] sm:$0xff] %v32
  $region29: #{_lambda_.4} parent=0 // pred_fallthru
    _
  %v34 = vld [vmem:[%s0] sm:$0xff]
  %v35 = vld [vmem:[%s0 + $0x8] sm:$0xff]
  %v36 = vld [vmem:[%s0 + $0x10] sm:$0xff]
  %v37 = vld [vmem:[%s0 + $0x18] sm:$0xff]
  %v38 = vld [vmem:[%s0 + $0x20] sm:$0xff]
  %v39 = vld [vmem:[%s0 + $0x28] sm:$0xff]
  %v40 = vld [vmem:[%s0 + $0x30] sm:$0xff]
  %v41 = vld [vmem:[%s0 + $0x38] sm:$0xff]
  %v42 = vld [vmem:[%s3] sm:$0xff]
  %v43 = vld [vmem:[%s3 + $0x8] sm:$0xff]
  %v44 = vld [vmem:[%s3 + $0x10] sm:$0xff]
  %v45 = vld [vmem:[%s3 + $0x18] sm:$0xff]
  %v46 = vld [vmem:[%s3 + $0x20] sm:$0xff]
  %v47 = vld [vmem:[%s3 + $0x28] sm:$0xff]
  %v48 = vld [vmem:[%s3 + $0x30] sm:$0xff]
  %v49 = vld [vmem:[%s3 + $0x38] sm:$0xff]
  %v50 = vld [vmem:[%s3 + $0x40] sm:$0xff]
  %v51 = vld [vmem:[%s3 + $0x48] sm:$0xff]
  %v52 = vld [vmem:[%s3 + $0x50] sm:$0xff]
  %v53 = vld [vmem:[%s3 + $0x58] sm:$0xff]
  %v54 = vld [vmem:[%s3 + $0x60] sm:$0xff]
  %v55 = vld [vmem:[%s3 + $0x68] sm:$0xff]
  %v56 = vld [vmem:[%s3 + $0x70] sm:$0xff]
  %v57 = vld [vmem:[%s3 + $0x78] sm:$0xff]
  %v58 = vld [vmem:[%s3 + $0x80] sm:$0xff]
  %v59 = vld [vmem:[%s3 + $0x88] sm:$0xff]
  %v60 = vld [vmem:[%s3 + $0x90] sm:$0xff]
  %v61 = vld [vmem:[%s3 + $0x98] sm:$0xff]
  %v62 = vld [vmem:[%s3 + $0xa0] sm:$0xff]
  %v63 = vld [vmem:[%s3 + $0xa8] sm:$0xff]
  %v64 = vld [vmem:[%s3 + $0xb0] sm:$0xff]
  %v65 = vld [vmem:[%s3 + $0xb8] sm:$0xff]
  %v66 = vld [vmem:[%s3 + $0xc0] sm:$0xff]
  %v67 = vld [vmem:[%s3 + $0xc8] sm:$0xff]
  %v68 = vld [vmem:[%s3 + $0xd0] sm:$0xff]
  %v69 = vld [vmem:[%s3 + $0xd8] sm:$0xff]
  %v70 = vld [vmem:[%s3 + $0xe0] sm:$0xff]
  %v71 = vld [vmem:[%s3 + $0xe8] sm:$0xff]
  %v72 = vld [vmem:[%s3 + $0xf0] sm:$0xff]
  %v73 = vld [vmem:[%s3 + $0xf8] sm:$0xff]
  %v74 = vld [vmem:[%s3 + $0x100] sm:$0xff]
  %v75 = vld [vmem:[%s3 + $0x108] sm:$0xff]
  %v76 = vld [vmem:[%s3 + $0x110] sm:$0xff]
  %v77 = vld [vmem:[%s3 + $0x118] sm:$0xff]
  %v78 = vld [vmem:[%s3 + $0x120] sm:$0xff]
  %v79 = vld [vmem:[%s3 + $0x128] sm:$0xff]
  %v80 = vld [vmem:[%s3 + $0x130] sm:$0xff]
  %v81 = vld [vmem:[%s3 + $0x138] sm:$0xff]
  %v82 = vld [vmem:[%s3 + $0x140] sm:$0xff]
  %v83 = vld [vmem:[%s3 + $0x148] sm:$0xff]
  %v84 = vld [vmem:[%s3 + $0x150] sm:$0xff]
  %v85 = vld [vmem:[%s3 + $0x158] sm:$0xff]
  %v86 = vld [vmem:[%s3 + $0x160] sm:$0xff]
  %v87 = vld [vmem:[%s3 + $0x168] sm:$0xff]
  %v88 = vld [vmem:[%s3 + $0x170] sm:$0xff]
  %v89 = vld [vmem:[%s3 + $0x178] sm:$0xff]
  %v90 = vld [vmem:[%s3 + $0x180] sm:$0xff]
  %v91 = vld [vmem:[%s3 + $0x188] sm:$0xff]
  %v92 = vld [vmem:[%s3 + $0x190] sm:$0xff]
  %v93 = vld [vmem:[%s3 + $0x198] sm:$0xff]
  %v94 = vld [vmem:[%s3 + $0x1a0] sm:$0xff]
  %v95 = vld [vmem:[%s3 + $0x1a8] sm:$0xff]
  %v96 = vld [vmem:[%s3 + $0x1b0] sm:$0xff]
  %v97 = vld [vmem:[%s3 + $0x1b8] sm:$0xff]
  %v98 = vld [vmem:[%s3 + $0x1c0] sm:$0xff]
  %v99 = vld [vmem:[%s3 + $0x1c8] sm:$0xff]
  %v100 = vld [vmem:[%s3 + $0x1d0] sm:$0xff]
  %v101 = vld [vmem:[%s3 + $0x1d8] sm:$0xff]
  %v102 = vld [vmem:[%s3 + $0x1e0] sm:$0xff]
  %v103 = vld [vmem:[%s3 + $0x1e8] sm:$0xff]
  %v104 = vld [vmem:[%s3 + $0x1f0] sm:$0xff]
  %v105 = vld [vmem:[%s3 + $0x1f8] sm:$0xff]
  %v106 = vld [vmem:[%s5] sm:$0xf]
  %v108 = vlaneseq
  %v109 = vshrl.u32 %v108, 7
  %v110 = vsub.s32 0, %v109
  %v111 = vrot.slane %v106, %v110
  %v112 = vlaneseq
  %v113 = vshrl.u32 %v112, 7
  %v114 = vsub.s32 1, %v113
  %v115 = vrot.slane %v106, %v114
  %v116 = vlaneseq
  %v117 = vshrl.u32 %v116, 7
  %v118 = vsub.s32 2, %v117
  %v119 = vrot.slane %v106, %v118
  %v120 = vlaneseq
  %v121 = vshrl.u32 %v120, 7
  %v122 = vsub.s32 3, %v121
  %v123 = vrot.slane %v106, %v122
  %128 = vmatprep.subr.mxu0 %v103
  %129 = vmatpush1.msra.mxu0 %v102
  %130 = vmatprep.subr.mxu0 %v99
  %131 = vmatpush1.msra.mxu0 %v98
  %132 = vmatprep.subr.mxu0 %v95
  %133 = vmatpush1.msra.mxu0 %v94
  %134 = vmatprep.subr.mxu0 %v91
  %135 = vmatpush1.msra.mxu0 %v90
  %136 = vmatprep.subr.mxu0 %v87
  %137 = vmatpush1.msra.mxu0 %v86
  %138 = vmatprep.subr.mxu0 %v83
  %139 = vmatpush1.msra.mxu0 %v82
  %140 = vmatprep.subr.mxu0 %v79
  %141 = vmatpush1.msra.mxu0 %v78
  %142 = vmatprep.subr.mxu0 %v75
  %143 = vmatpush1.msra.mxu0 %v74
  %144 = vmatprep.subr.mxu0 %v71
  %145 = vmatpush1.msra.mxu0 %v70
  %146 = vmatprep.subr.mxu0 %v67
  %147 = vmatpush1.msra.mxu0 %v66
  %148 = vmatprep.subr.mxu0 %v63
  %149 = vmatpush1.msra.mxu0 %v62
  %150 = vmatprep.subr.mxu0 %v59
  %151 = vmatpush1.msra.mxu0 %v58
  %152 = vmatprep.subr.mxu0 %v55
  %153 = vmatpush1.msra.mxu0 %v54
  %154 = vmatprep.subr.mxu0 %v51
  %155 = vmatpush1.msra.mxu0 %v50
  %156 = vmatprep.subr.mxu0 %v47
  %157 = vmatpush1.msra.mxu0 %v46
  %158 = vmatprep.subr.mxu0 %v43
  %159 = vmatpush1.msra.mxu0 %v42
  %160 = vmatprep.subr.mxu0 0.0
  %161 = vmatpush2.msra.mxu0 0.0
  %162 = vmatprep.subr.mxu0 0.0
  %163 = vmatpush2.msra.mxu0 0.0
  %164 = vmatprep.subr.mxu0 0.0
  %165 = vmatpush2.msra.mxu0 0.0
  %166 = vmatprep.subr.mxu0 0.0
  %167 = vmatpush2.msra.mxu0 0.0
  %168 = vmatprep.subr.mxu0 0.0
  %169 = vmatpush2.msra.mxu0 0.0
  %170 = vmatprep.subr.mxu0 0.0
  %171 = vmatpush2.msra.mxu0 0.0
  %172 = vmatprep.subr.mxu0 0.0
  %173 = vmatpush2.msra.mxu0 0.0
  %174 = vmatprep.subr.mxu0 0.0
  %175 = vmatpush2.msra.mxu0 0.0
  %176 = vmatprep.subr.mxu0 0.0
  %177 = vmatpush2.msra.mxu0 0.0
  %178 = vmatprep.subr.mxu0 0.0
  %179 = vmatpush2.msra.mxu0 0.0
  %180 = vmatprep.subr.mxu0 0.0
  %181 = vmatpush2.msra.mxu0 0.0
  %182 = vmatprep.subr.mxu0 0.0
  %183 = vmatpush2.msra.mxu0 0.0
  %184 = vmatprep.subr.mxu0 0.0
  %185 = vmatpush2.msra.mxu0 0.0
  %186 = vmatprep.subr.mxu0 0.0
  %187 = vmatpush2.msra.mxu0 0.0
  %188 = vmatprep.subr.mxu0 0.0
  %189 = vmatpush2.msra.mxu0 0.0
  %190 = vmatprep.subr.mxu0 0.0
  %191 = vmatpush2.msra.mxu0 0.0
  %192 = vmatprep.mubr.f32.mxu0 0.0
  %193 = vmatmul.mubr.f32.gmra.mxu0 %v34
  %v194 = vpop.f32.mrf.mxu0
  %v195 = vadd.f32 %v111, %v194
  %v196 = vpop.f32.mrf.mxu0
  %v197 = vadd.f32 %v115, %v196
  %198 = vmatprep.mubr.f32.mxu0 0.0
  %199 = vmatmul.mubr.f32.gmra.mxu0 %v35
  %v200 = vpop.f32.mrf.mxu0
  %v201 = vadd.f32 %v111, %v200
  %v202 = vpop.f32.mrf.mxu0
  %v203 = vadd.f32 %v115, %v202
  %204 = vmatprep.mubr.f32.mxu0 0.0
  %205 = vmatmul.mubr.f32.gmra.mxu0 %v36
  %v206 = vpop.f32.mrf.mxu0
  %v207 = vadd.f32 %v111, %v206
  %v208 = vpop.f32.mrf.mxu0
  %v209 = vadd.f32 %v115, %v208
  %210 = vmatprep.mubr.f32.mxu0 0.0
  %211 = vmatmul.mubr.f32.gmra.mxu0 %v37
  %v212 = vpop.f32.mrf.mxu0
  %v213 = vadd.f32 %v111, %v212
  %v214 = vpop.f32.mrf.mxu0
  %v215 = vadd.f32 %v115, %v214
  %216 = vmatprep.mubr.f32.mxu0 0.0
  %217 = vmatmul.mubr.f32.gmra.mxu0 %v38
  %v218 = vpop.f32.mrf.mxu0
  %v219 = vadd.f32 %v111, %v218
  %v220 = vpop.f32.mrf.mxu0
  %v221 = vadd.f32 %v115, %v220
  %222 = vmatprep.mubr.f32.mxu0 0.0
  %223 = vmatmul.mubr.f32.gmra.mxu0 %v39
  %v224 = vpop.f32.mrf.mxu0
  %v225 = vadd.f32 %v111, %v224
  %v226 = vpop.f32.mrf.mxu0
  %v227 = vadd.f32 %v115, %v226
  %228 = vmatprep.mubr.f32.mxu0 0.0
  %229 = vmatmul.mubr.f32.gmra.mxu0 %v40
  %v230 = vpop.f32.mrf.mxu0
  %v231 = vadd.f32 %v111, %v230
  %v232 = vpop.f32.mrf.mxu0
  %v233 = vadd.f32 %v115, %v232
  %234 = vmatprep.mubr.f32.mxu0 0.0
  %235 = vmatmul.mubr.f32.gmra.mxu0 %v41
  %v236 = vpop.f32.mrf.mxu0
  %v237 = vadd.f32 %v111, %v236
  %v238 = vpop.f32.mrf.mxu0
  %v239 = vadd.f32 %v115, %v238
  %240 = vdwg.mxu0
  %241 = vmatprep.subr.mxu0 %v105
  %242 = vmatpush1.msra.mxu0 %v104
  %243 = vmatprep.subr.mxu0 %v101
  %244 = vmatpush1.msra.mxu0 %v100
  %245 = vmatprep.subr.mxu0 %v97
  %246 = vmatpush1.msra.mxu0 %v96
  %247 = vmatprep.subr.mxu0 %v93
  %248 = vmatpush1.msra.mxu0 %v92
  %249 = vmatprep.subr.mxu0 %v89
  %250 = vmatpush1.msra.mxu0 %v88
  %251 = vmatprep.subr.mxu0 %v85
  %252 = vmatpush1.msra.mxu0 %v84
  %253 = vmatprep.subr.mxu0 %v81
  %254 = vmatpush1.msra.mxu0 %v80
  %255 = vmatprep.subr.mxu0 %v77
  %256 = vmatpush1.msra.mxu0 %v76
  %257 = vmatprep.subr.mxu0 %v73
  %258 = vmatpush1.msra.mxu0 %v72
  %259 = vmatprep.subr.mxu0 %v69
  %260 = vmatpush1.msra.mxu0 %v68
  %261 = vmatprep.subr.mxu0 %v65
  %262 = vmatpush1.msra.mxu0 %v64
  %263 = vmatprep.subr.mxu0 %v61
  %264 = vmatpush1.msra.mxu0 %v60
  %265 = vmatprep.subr.mxu0 %v57
  %266 = vmatpush1.msra.mxu0 %v56
  %267 = vmatprep.subr.mxu0 %v53
  %268 = vmatpush1.msra.mxu0 %v52
  %269 = vmatprep.subr.mxu0 %v49
  %270 = vmatpush1.msra.mxu0 %v48
  %271 = vmatprep.subr.mxu0 %v45
  %272 = vmatpush1.msra.mxu0 %v44
  %273 = vmatprep.subr.mxu0 0.0
  %274 = vmatpush2.msra.mxu0 0.0
  %275 = vmatprep.subr.mxu0 0.0
  %276 = vmatpush2.msra.mxu0 0.0
  %277 = vmatprep.subr.mxu0 0.0
  %278 = vmatpush2.msra.mxu0 0.0
  %279 = vmatprep.subr.mxu0 0.0
  %280 = vmatpush2.msra.mxu0 0.0
  %281 = vmatprep.subr.mxu0 0.0
  %282 = vmatpush2.msra.mxu0 0.0
  %283 = vmatprep.subr.mxu0 0.0
  %284 = vmatpush2.msra.mxu0 0.0
  %285 = vmatprep.subr.mxu0 0.0
  %286 = vmatpush2.msra.mxu0 0.0
  %287 = vmatprep.subr.mxu0 0.0
  %288 = vmatpush2.msra.mxu0 0.0
  %289 = vmatprep.subr.mxu0 0.0
  %290 = vmatpush2.msra.mxu0 0.0
  %291 = vmatprep.subr.mxu0 0.0
  %292 = vmatpush2.msra.mxu0 0.0
  %293 = vmatprep.subr.mxu0 0.0
  %294 = vmatpush2.msra.mxu0 0.0
  %295 = vmatprep.subr.mxu0 0.0
  %296 = vmatpush2.msra.mxu0 0.0
  %297 = vmatprep.subr.mxu0 0.0
  %298 = vmatpush2.msra.mxu0 0.0
  %299 = vmatprep.subr.mxu0 0.0
  %300 = vmatpush2.msra.mxu0 0.0
  %301 = vmatprep.subr.mxu0 0.0
  %302 = vmatpush2.msra.mxu0 0.0
  %303 = vmatprep.subr.mxu0 0.0
  %304 = vmatpush2.msra.mxu0 0.0
  %305 = vmatprep.mubr.f32.mxu0 0.0
  %306 = vmatmul.mubr.f32.gmra.mxu0 %v34
  %v307 = vpop.f32.mrf.mxu0
  %v308 = vadd.f32 %v119, %v307
  %v309 = vpop.f32.mrf.mxu0
  %v310 = vadd.f32 %v123, %v309
  %311 = vmatprep.mubr.f32.mxu0 0.0
  %312 = vmatmul.mubr.f32.gmra.mxu0 %v35
  %v313 = vpop.f32.mrf.mxu0
  %v314 = vadd.f32 %v119, %v313
  %v315 = vpop.f32.mrf.mxu0
  %v316 = vadd.f32 %v123, %v315
  %317 = vmatprep.mubr.f32.mxu0 0.0
  %318 = vmatmul.mubr.f32.gmra.mxu0 %v36
  %v319 = vpop.f32.mrf.mxu0
  %v320 = vadd.f32 %v119, %v319
  %v321 = vpop.f32.mrf.mxu0
  %v322 = vadd.f32 %v123, %v321
  %323 = vmatprep.mubr.f32.mxu0 0.0
  %324 = vmatmul.mubr.f32.gmra.mxu0 %v37
  %v325 = vpop.f32.mrf.mxu0
  %v326 = vadd.f32 %v119, %v325
  %v327 = vpop.f32.mrf.mxu0
  %v328 = vadd.f32 %v123, %v327
  %329 = vmatprep.mubr.f32.mxu0 0.0
  %330 = vmatmul.mubr.f32.gmra.mxu0 %v38
  %v331 = vpop.f32.mrf.mxu0
  %v332 = vadd.f32 %v119, %v331
  %v333 = vpop.f32.mrf.mxu0
  %v334 = vadd.f32 %v123, %v333
  %335 = vmatprep.mubr.f32.mxu0 0.0
  %336 = vmatmul.mubr.f32.gmra.mxu0 %v39
  %v337 = vpop.f32.mrf.mxu0
  %v338 = vadd.f32 %v119, %v337
  %v339 = vpop.f32.mrf.mxu0
  %v340 = vadd.f32 %v123, %v339
  %341 = vmatprep.mubr.f32.mxu0 0.0
  %342 = vmatmul.mubr.f32.gmra.mxu0 %v40
  %v343 = vpop.f32.mrf.mxu0
  %v344 = vadd.f32 %v119, %v343
  %v345 = vpop.f32.mrf.mxu0
  %v346 = vadd.f32 %v123, %v345
  %347 = vmatprep.mubr.f32.mxu0 0.0
  %348 = vmatmul.mubr.f32.gmra.mxu0 %v41
  %v349 = vpop.f32.mrf.mxu0
  %v350 = vadd.f32 %v119, %v349
  %v351 = vpop.f32.mrf.mxu0
  %v352 = vadd.f32 %v123, %v351
  %353 = vdwg.mxu0
  %354 = vst [vmem:[#allocation4] sm:$0xff] %v195
  %355 = vst [vmem:[#allocation4 + $0x8] sm:$0xff] %v197
  %356 = vst [vmem:[#allocation4 + $0x10] sm:$0xff] %v308
  %357 = vst [vmem:[#allocation4 + $0x18] sm:$0xff] %v310
  %358 = vst [vmem:[#allocation4 + $0x20] sm:$0xff] %v201
  %359 = vst [vmem:[#allocation4 + $0x28] sm:$0xff] %v203
  %360 = vst [vmem:[#allocation4 + $0x30] sm:$0xff] %v314
  %361 = vst [vmem:[#allocation4 + $0x38] sm:$0xff] %v316
  %362 = vst [vmem:[#allocation4 + $0x40] sm:$0xff] %v207
  %363 = vst [vmem:[#allocation4 + $0x48] sm:$0xff] %v209
  %364 = vst [vmem:[#allocation4 + $0x50] sm:$0xff] %v320
  %365 = vst [vmem:[#allocation4 + $0x58] sm:$0xff] %v322
  %366 = vst [vmem:[#allocation4 + $0x60] sm:$0xff] %v213
  %367 = vst [vmem:[#allocation4 + $0x68] sm:$0xff] %v215
  %368 = vst [vmem:[#allocation4 + $0x70] sm:$0xff] %v326
  %369 = vst [vmem:[#allocation4 + $0x78] sm:$0xff] %v328
  %370 = vst [vmem:[#allocation4 + $0x80] sm:$0xff] %v219
  %371 = vst [vmem:[#allocation4 + $0x88] sm:$0xff] %v221
  %372 = vst [vmem:[#allocation4 + $0x90] sm:$0xff] %v332
  %373 = vst [vmem:[#allocation4 + $0x98] sm:$0xff] %v334
  %374 = vst [vmem:[#allocation4 + $0xa0] sm:$0xff] %v225
  %375 = vst [vmem:[#allocation4 + $0xa8] sm:$0xff] %v227
  %376 = vst [vmem:[#allocation4 + $0xb0] sm:$0xff] %v338
  %377 = vst [vmem:[#allocation4 + $0xb8] sm:$0xff] %v340
  %378 = vst [vmem:[#allocation4 + $0xc0] sm:$0xff] %v231
  %379 = vst [vmem:[#allocation4 + $0xc8] sm:$0xff] %v233
  %380 = vst [vmem:[#allocation4 + $0xd0] sm:$0xff] %v344
  %381 = vst [vmem:[#allocation4 + $0xd8] sm:$0xff] %v346
  %382 = vst [vmem:[#allocation4 + $0xe0] sm:$0xff] %v237
  %383 = vst [vmem:[#allocation4 + $0xe8] sm:$0xff] %v239
  %384 = vst [vmem:[#allocation4 + $0xf0] sm:$0xff] %v350
  %385 = vst [vmem:[#allocation4 + $0xf8] sm:$0xff] %v352
  %v386 = vld [vmem:[%s4] sm:$0xff]
  %v387 = vld [vmem:[%s4 + $0x8] sm:$0xff]
  %v388 = vld [vmem:[%s4 + $0x10] sm:$0xff]
  %v389 = vld [vmem:[%s4 + $0x18] sm:$0xff]
  %v390 = vld [vmem:[%s4 + $0x20] sm:$0xff]
  %v391 = vld [vmem:[%s4 + $0x28] sm:$0xff]
  %v392 = vld [vmem:[%s4 + $0x30] sm:$0xff]
  %v393 = vld [vmem:[%s4 + $0x38] sm:$0xff]
  %v394 = vld [vmem:[%s4 + $0x40] sm:$0xff]
  %v395 = vld [vmem:[%s4 + $0x48] sm:$0xff]
  %v396 = vld [vmem:[%s4 + $0x50] sm:$0xff]
  %v397 = vld [vmem:[%s4 + $0x58] sm:$0xff]
  %v398 = vld [vmem:[%s4 + $0x60] sm:$0xff]
  %v399 = vld [vmem:[%s4 + $0x68] sm:$0xff]
  %v400 = vld [vmem:[%s4 + $0x70] sm:$0xff]
  %v401 = vld [vmem:[%s4 + $0x78] sm:$0xff]
  %v402 = vld [vmem:[%s4 + $0x80] sm:$0xff]
  %v403 = vld [vmem:[%s4 + $0x88] sm:$0xff]
  %v404 = vld [vmem:[%s4 + $0x90] sm:$0xff]
  %v405 = vld [vmem:[%s4 + $0x98] sm:$0xff]
  %v406 = vld [vmem:[%s4 + $0xa0] sm:$0xff]
  %v407 = vld [vmem:[%s4 + $0xa8] sm:$0xff]
  %v408 = vld [vmem:[%s4 + $0xb0] sm:$0xff]
  %v409 = vld [vmem:[%s4 + $0xb8] sm:$0xff]
  %v410 = vld [vmem:[%s4 + $0xc0] sm:$0xff]
  %v411 = vld [vmem:[%s4 + $0xc8] sm:$0xff]
  %v412 = vld [vmem:[%s4 + $0xd0] sm:$0xff]
  %v413 = vld [vmem:[%s4 + $0xd8] sm:$0xff]
  %v414 = vld [vmem:[%s4 + $0xe0] sm:$0xff]
  %v415 = vld [vmem:[%s4 + $0xe8] sm:$0xff]
  %v416 = vld [vmem:[%s4 + $0xf0] sm:$0xff]
  %v417 = vld [vmem:[%s4 + $0xf8] sm:$0xff]
  %v418 = vld [vmem:[%s4 + $0x100] sm:$0xff]
  %v419 = vld [vmem:[%s4 + $0x108] sm:$0xff]
  %v420 = vld [vmem:[%s4 + $0x110] sm:$0xff]
  %v421 = vld [vmem:[%s4 + $0x118] sm:$0xff]
  %v422 = vld [vmem:[%s4 + $0x120] sm:$0xff]
  %v423 = vld [vmem:[%s4 + $0x128] sm:$0xff]
  %v424 = vld [vmem:[%s4 + $0x130] sm:$0xff]
  %v425 = vld [vmem:[%s4 + $0x138] sm:$0xff]
  %v426 = vld [vmem:[%s4 + $0x140] sm:$0xff]
  %v427 = vld [vmem:[%s4 + $0x148] sm:$0xff]
  %v428 = vld [vmem:[%s4 + $0x150] sm:$0xff]
  %v429 = vld [vmem:[%s4 + $0x158] sm:$0xff]
  %v430 = vld [vmem:[%s4 + $0x160] sm:$0xff]
  %v431 = vld [vmem:[%s4 + $0x168] sm:$0xff]
  %v432 = vld [vmem:[%s4 + $0x170] sm:$0xff]
  %v433 = vld [vmem:[%s4 + $0x178] sm:$0xff]
  %v434 = vld [vmem:[%s4 + $0x180] sm:$0xff]
  %v435 = vld [vmem:[%s4 + $0x188] sm:$0xff]
  %v436 = vld [vmem:[%s4 + $0x190] sm:$0xff]
  %v437 = vld [vmem:[%s4 + $0x198] sm:$0xff]
  %v438 = vld [vmem:[%s4 + $0x1a0] sm:$0xff]
  %v439 = vld [vmem:[%s4 + $0x1a8] sm:$0xff]
  %v440 = vld [vmem:[%s4 + $0x1b0] sm:$0xff]
  %v441 = vld [vmem:[%s4 + $0x1b8] sm:$0xff]
  %v442 = vld [vmem:[%s4 + $0x1c0] sm:$0xff]
  %v443 = vld [vmem:[%s4 + $0x1c8] sm:$0xff]
  %v444 = vld [vmem:[%s4 + $0x1d0] sm:$0xff]
  %v445 = vld [vmem:[%s4 + $0x1d8] sm:$0xff]
  %v446 = vld [vmem:[%s4 + $0x1e0] sm:$0xff]
  %v447 = vld [vmem:[%s4 + $0x1e8] sm:$0xff]
  %v448 = vld [vmem:[%s4 + $0x1f0] sm:$0xff]
  %v449 = vld [vmem:[%s4 + $0x1f8] sm:$0xff]
  %v450 = vld [vmem:[#allocation2] sm:$0xff]
  %v451 = vld [vmem:[#allocation3] sm:$0xff]
  %v452 = vld [vmem:[#allocation4] sm:$0xff]
  %v453 = vld [vmem:[#allocation4 + $0x8] sm:$0xff]
  %v454 = vld [vmem:[#allocation4 + $0x10] sm:$0xff]
  %v455 = vld [vmem:[#allocation4 + $0x18] sm:$0xff]
  %456 = vmatprep.subr.mxu0 %v447
  %457 = vmatpush1.msra.mxu0 %v446
  %458 = vmatprep.subr.mxu0 %v443
  %459 = vmatpush1.msra.mxu0 %v442
  %460 = vmatprep.subr.mxu0 %v439
  %461 = vmatpush1.msra.mxu0 %v438
  %462 = vmatprep.subr.mxu0 %v435
  %463 = vmatpush1.msra.mxu0 %v434
  %464 = vmatprep.subr.mxu0 %v431
  %465 = vmatpush1.msra.mxu0 %v430
  %466 = vmatprep.subr.mxu0 %v427
  %467 = vmatpush1.msra.mxu0 %v426
  %468 = vmatprep.subr.mxu0 %v423
  %469 = vmatpush1.msra.mxu0 %v422
  %470 = vmatprep.subr.mxu0 %v419
  %471 = vmatpush1.msra.mxu0 %v418
  %472 = vmatprep.subr.mxu0 %v415
  %473 = vmatpush1.msra.mxu0 %v414
  %474 = vmatprep.subr.mxu0 %v411
  %475 = vmatpush1.msra.mxu0 %v410
  %476 = vmatprep.subr.mxu0 %v407
  %477 = vmatpush1.msra.mxu0 %v406
  %478 = vmatprep.subr.mxu0 %v403
  %479 = vmatpush1.msra.mxu0 %v402
  %480 = vmatprep.subr.mxu0 %v399
  %481 = vmatpush1.msra.mxu0 %v398
  %482 = vmatprep.subr.mxu0 %v395
  %483 = vmatpush1.msra.mxu0 %v394
  %484 = vmatprep.subr.mxu0 %v391
  %485 = vmatpush1.msra.mxu0 %v390
  %486 = vmatprep.subr.mxu0 %v387
  %487 = vmatpush1.msra.mxu0 %v386
  %488 = vmatprep.subr.mxu0 0.0
  %489 = vmatpush2.msra.mxu0 0.0
  %490 = vmatprep.subr.mxu0 0.0
  %491 = vmatpush2.msra.mxu0 0.0
  %492 = vmatprep.subr.mxu0 0.0
  %493 = vmatpush2.msra.mxu0 0.0
  %494 = vmatprep.subr.mxu0 0.0
  %495 = vmatpush2.msra.mxu0 0.0
  %496 = vmatprep.subr.mxu0 0.0
  %497 = vmatpush2.msra.mxu0 0.0
  %498 = vmatprep.subr.mxu0 0.0
  %499 = vmatpush2.msra.mxu0 0.0
  %500 = vmatprep.subr.mxu0 0.0
  %501 = vmatpush2.msra.mxu0 0.0
  %502 = vmatprep.subr.mxu0 0.0
  %503 = vmatpush2.msra.mxu0 0.0
  %504 = vmatprep.subr.mxu0 0.0
  %505 = vmatpush2.msra.mxu0 0.0
  %506 = vmatprep.subr.mxu0 0.0
  %507 = vmatpush2.msra.mxu0 0.0
  %508 = vmatprep.subr.mxu0 0.0
  %509 = vmatpush2.msra.mxu0 0.0
  %510 = vmatprep.subr.mxu0 0.0
  %511 = vmatpush2.msra.mxu0 0.0
  %512 = vmatprep.subr.mxu0 0.0
  %513 = vmatpush2.msra.mxu0 0.0
  %514 = vmatprep.subr.mxu0 0.0
  %515 = vmatpush2.msra.mxu0 0.0
  %516 = vmatprep.subr.mxu0 0.0
  %517 = vmatpush2.msra.mxu0 0.0
  %518 = vmatprep.subr.mxu0 0.0
  %519 = vmatpush2.msra.mxu0 0.0
  %520 = vmatprep.mubr.f32.mxu0 0.0
  %521 = vmatmul.mubr.f32.gmra.mxu0 %v450
  %v522 = vpop.f32.mrf.mxu0
  %v523 = vadd.f32 0.0, %v522
  %v524 = vpop.f32.mrf.mxu0
  %v525 = vadd.f32 0.0, %v524
  %526 = vdwg.mxu0
  %527 = vmatprep.subr.mxu0 %v449
  %528 = vmatpush1.msra.mxu0 %v448
  %529 = vmatprep.subr.mxu0 %v445
  %530 = vmatpush1.msra.mxu0 %v444
  %531 = vmatprep.subr.mxu0 %v441
  %532 = vmatpush1.msra.mxu0 %v440
  %533 = vmatprep.subr.mxu0 %v437
  %534 = vmatpush1.msra.mxu0 %v436
  %535 = vmatprep.subr.mxu0 %v433
  %536 = vmatpush1.msra.mxu0 %v432
  %537 = vmatprep.subr.mxu0 %v429
  %538 = vmatpush1.msra.mxu0 %v428
  %539 = vmatprep.subr.mxu0 %v425
  %540 = vmatpush1.msra.mxu0 %v424
  %541 = vmatprep.subr.mxu0 %v421
  %542 = vmatpush1.msra.mxu0 %v420
  %543 = vmatprep.subr.mxu0 %v417
  %544 = vmatpush1.msra.mxu0 %v416
  %545 = vmatprep.subr.mxu0 %v413
  %546 = vmatpush1.msra.mxu0 %v412
  %547 = vmatprep.subr.mxu0 %v409
  %548 = vmatpush1.msra.mxu0 %v408
  %549 = vmatprep.subr.mxu0 %v405
  %550 = vmatpush1.msra.mxu0 %v404
  %551 = vmatprep.subr.mxu0 %v401
  %552 = vmatpush1.msra.mxu0 %v400
  %553 = vmatprep.subr.mxu0 %v397
  %554 = vmatpush1.msra.mxu0 %v396
  %555 = vmatprep.subr.mxu0 %v393
  %556 = vmatpush1.msra.mxu0 %v392
  %557 = vmatprep.subr.mxu0 %v389
  %558 = vmatpush1.msra.mxu0 %v388
  %559 = vmatprep.subr.mxu0 0.0
  %560 = vmatpush2.msra.mxu0 0.0
  %561 = vmatprep.subr.mxu0 0.0
  %562 = vmatpush2.msra.mxu0 0.0
  %563 = vmatprep.subr.mxu0 0.0
  %564 = vmatpush2.msra.mxu0 0.0
  %565 = vmatprep.subr.mxu0 0.0
  %566 = vmatpush2.msra.mxu0 0.0
  %567 = vmatprep.subr.mxu0 0.0
  %568 = vmatpush2.msra.mxu0 0.0
  %569 = vmatprep.subr.mxu0 0.0
  %570 = vmatpush2.msra.mxu0 0.0
  %571 = vmatprep.subr.mxu0 0.0
  %572 = vmatpush2.msra.mxu0 0.0
  %573 = vmatprep.subr.mxu0 0.0
  %574 = vmatpush2.msra.mxu0 0.0
  %575 = vmatprep.subr.mxu0 0.0
  %576 = vmatpush2.msra.mxu0 0.0
  %577 = vmatprep.subr.mxu0 0.0
  %578 = vmatpush2.msra.mxu0 0.0
  %579 = vmatprep.subr.mxu0 0.0
  %580 = vmatpush2.msra.mxu0 0.0
  %581 = vmatprep.subr.mxu0 0.0
  %582 = vmatpush2.msra.mxu0 0.0
  %583 = vmatprep.subr.mxu0 0.0
  %584 = vmatpush2.msra.mxu0 0.0
  %585 = vmatprep.subr.mxu0 0.0
  %586 = vmatpush2.msra.mxu0 0.0
  %587 = vmatprep.subr.mxu0 0.0
  %588 = vmatpush2.msra.mxu0 0.0
  %589 = vmatprep.subr.mxu0 0.0
  %590 = vmatpush2.msra.mxu0 0.0
  %591 = vmatprep.mubr.f32.mxu0 0.0
  %592 = vmatmul.mubr.f32.gmra.mxu0 %v450
  %v593 = vpop.f32.mrf.mxu0
  %v594 = vadd.f32 0.0, %v593
  %v595 = vpop.f32.mrf.mxu0
  %v596 = vadd.f32 0.0, %v595
  %597 = vdwg.mxu0
  %v598 = vadd.f32 %v452, %v523
  %v599 = vadd.f32 %v453, %v525
  %v600 = vadd.f32 %v454, %v594
  %v601 = vadd.f32 %v455, %v596
  %v602 = vxor.u32 %v598, 2147483648
  %v603 = vmul.f32 %v602, 1.442695
  %v604 = vpow.pop %v603
  %v605 = vadd.f32 %v604, 1.0
  %v606 = vrcp.pop %v605
  %v607 = vmul.f32 1.0, %v606
  %v608 = vxor.u32 %v599, 2147483648
  %v609 = vmul.f32 %v608, 1.442695
  %v610 = vpow.pop %v609
  %v611 = vadd.f32 %v610, 1.0
  %v612 = vrcp.pop %v611
  %v613 = vmul.f32 1.0, %v612
  %v614 = vtanh.pop %v600
  %v615 = vxor.u32 %v601, 2147483648
  %v616 = vmul.f32 %v615, 1.442695
  %v617 = vpow.pop %v616
  %v618 = vadd.f32 %v617, 1.0
  %v619 = vrcp.pop %v618
  %v620 = vmul.f32 1.0, %v619
  %v621 = vmul.f32 %v613, %v451
  %v622 = vmul.f32 %v607, %v614
  %v623 = vadd.f32 %v621, %v622
  %v624 = vtanh.pop %v623
  %v625 = vmul.f32 %v620, %v624
  %626 = vst [vmem:[%s6] sm:$0xff] %v625
  %s627 = scalar_lea.vmem [#allocation4], 32
  %v628 = vld [vmem:[%s627] sm:$0xff]
  %v629 = vld [vmem:[%s627 + $0x8] sm:$0xff]
  %v630 = vld [vmem:[%s627 + $0x10] sm:$0xff]
  %v631 = vld [vmem:[%s627 + $0x18] sm:$0xff]
  %632 = vmatprep.subr.mxu0 %v447
  %633 = vmatpush1.msra.mxu0 %v446
  %634 = vmatprep.subr.mxu0 %v443
  %635 = vmatpush1.msra.mxu0 %v442
  %636 = vmatprep.subr.mxu0 %v439
  %637 = vmatpush1.msra.mxu0 %v438
  %638 = vmatprep.subr.mxu0 %v435
  %639 = vmatpush1.msra.mxu0 %v434
  %640 = vmatprep.subr.mxu0 %v431
  %641 = vmatpush1.msra.mxu0 %v430
  %642 = vmatprep.subr.mxu0 %v427
  %643 = vmatpush1.msra.mxu0 %v426
  %644 = vmatprep.subr.mxu0 %v423
  %645 = vmatpush1.msra.mxu0 %v422
  %646 = vmatprep.subr.mxu0 %v419
  %647 = vmatpush1.msra.mxu0 %v418
  %648 = vmatprep.subr.mxu0 %v415
  %649 = vmatpush1.msra.mxu0 %v414
  %650 = vmatprep.subr.mxu0 %v411
  %651 = vmatpush1.msra.mxu0 %v410
  %652 = vmatprep.subr.mxu0 %v407
  %653 = vmatpush1.msra.mxu0 %v406
  %654 = vmatprep.subr.mxu0 %v403
  %655 = vmatpush1.msra.mxu0 %v402
  %656 = vmatprep.subr.mxu0 %v399
  %657 = vmatpush1.msra.mxu0 %v398
  %658 = vmatprep.subr.mxu0 %v395
  %659 = vmatpush1.msra.mxu0 %v394
  %660 = vmatprep.subr.mxu0 %v391
  %661 = vmatpush1.msra.mxu0 %v390
  %662 = vmatprep.subr.mxu0 %v387
  %663 = vmatpush1.msra.mxu0 %v386
  %664 = vmatprep.subr.mxu0 0.0
  %665 = vmatpush2.msra.mxu0 0.0
  %666 = vmatprep.subr.mxu0 0.0
  %667 = vmatpush2.msra.mxu0 0.0
  %668 = vmatprep.subr.mxu0 0.0
  %669 = vmatpush2.msra.mxu0 0.0
  %670 = vmatprep.subr.mxu0 0.0
  %671 = vmatpush2.msra.mxu0 0.0
  %672 = vmatprep.subr.mxu0 0.0
  %673 = vmatpush2.msra.mxu0 0.0
  %674 = vmatprep.subr.mxu0 0.0
  %675 = vmatpush2.msra.mxu0 0.0
  %676 = vmatprep.subr.mxu0 0.0
  %677 = vmatpush2.msra.mxu0 0.0
  %678 = vmatprep.subr.mxu0 0.0
  %679 = vmatpush2.msra.mxu0 0.0
  %680 = vmatprep.subr.mxu0 0.0
  %681 = vmatpush2.msra.mxu0 0.0
  %682 = vmatprep.subr.mxu0 0.0
  %683 = vmatpush2.msra.mxu0 0.0
  %684 = vmatprep.subr.mxu0 0.0
  %685 = vmatpush2.msra.mxu0 0.0
  %686 = vmatprep.subr.mxu0 0.0
  %687 = vmatpush2.msra.mxu0 0.0
  %688 = vmatprep.subr.mxu0 0.0
  %689 = vmatpush2.msra.mxu0 0.0
  %690 = vmatprep.subr.mxu0 0.0
  %691 = vmatpush2.msra.mxu0 0.0
  %692 = vmatprep.subr.mxu0 0.0
  %693 = vmatpush2.msra.mxu0 0.0
  %694 = vmatprep.subr.mxu0 0.0
  %695 = vmatpush2.msra.mxu0 0.0
  %696 = vmatprep.mubr.f32.mxu0 0.0
  %697 = vmatmul.mubr.f32.gmra.mxu0 %v625
  %v698 = vpop.f32.mrf.mxu0
  %v699 = vadd.f32 0.0, %v698
  %v700 = vpop.f32.mrf.mxu0
  %v701 = vadd.f32 0.0, %v700
  %702 = vdwg.mxu0
  %703 = vmatprep.subr.mxu0 %v449
  %704 = vmatpush1.msra.mxu0 %v448
  %705 = vmatprep.subr.mxu0 %v445
  %706 = vmatpush1.msra.mxu0 %v444
  %707 = vmatprep.subr.mxu0 %v441
  %708 = vmatpush1.msra.mxu0 %v440
  %709 = vmatprep.subr.mxu0 %v437
  %710 = vmatpush1.msra.mxu0 %v436
  %711 = vmatprep.subr.mxu0 %v433
  %712 = vmatpush1.msra.mxu0 %v432
  %713 = vmatprep.subr.mxu0 %v429
  %714 = vmatpush1.msra.mxu0 %v428
  %715 = vmatprep.subr.mxu0 %v425
  %716 = vmatpush1.msra.mxu0 %v424
  %717 = vmatprep.subr.mxu0 %v421
  %718 = vmatpush1.msra.mxu0 %v420
  %719 = vmatprep.subr.mxu0 %v417
  %720 = vmatpush1.msra.mxu0 %v416
  %721 = vmatprep.subr.mxu0 %v413
  %722 = vmatpush1.msra.mxu0 %v412
  %723 = vmatprep.subr.mxu0 %v409
  %724 = vmatpush1.msra.mxu0 %v408
  %725 = vmatprep.subr.mxu0 %v405
  %726 = vmatpush1.msra.mxu0 %v404
  %727 = vmatprep.subr.mxu0 %v401
  %728 = vmatpush1.msra.mxu0 %v400
  %729 = vmatprep.subr.mxu0 %v397
  %730 = vmatpush1.msra.mxu0 %v396
  %731 = vmatprep.subr.mxu0 %v393
  %732 = vmatpush1.msra.mxu0 %v392
  %733 = vmatprep.subr.mxu0 %v389
  %734 = vmatpush1.msra.mxu0 %v388
  %735 = vmatprep.subr.mxu0 0.0
  %736 = vmatpush2.msra.mxu0 0.0
  %737 = vmatprep.subr.mxu0 0.0
  %738 = vmatpush2.msra.mxu0 0.0
  %739 = vmatprep.subr.mxu0 0.0
  %740 = vmatpush2.msra.mxu0 0.0
  %741 = vmatprep.subr.mxu0 0.0
  %742 = vmatpush2.msra.mxu0 0.0
  %743 = vmatprep.subr.mxu0 0.0
  %744 = vmatpush2.msra.mxu0 0.0
  %745 = vmatprep.subr.mxu0 0.0
  %746 = vmatpush2.msra.mxu0 0.0
  %747 = vmatprep.subr.mxu0 0.0
  %748 = vmatpush2.msra.mxu0 0.0
  %749 = vmatprep.subr.mxu0 0.0
  %750 = vmatpush2.msra.mxu0 0.0
  %751 = vmatprep.subr.mxu0 0.0
  %752 = vmatpush2.msra.mxu0 0.0
  %753 = vmatprep.subr.mxu0 0.0
  %754 = vmatpush2.msra.mxu0 0.0
  %755 = vmatprep.subr.mxu0 0.0
  %756 = vmatpush2.msra.mxu0 0.0
  %757 = vmatprep.subr.mxu0 0.0
  %758 = vmatpush2.msra.mxu0 0.0
  %759 = vmatprep.subr.mxu0 0.0
  %760 = vmatpush2.msra.mxu0 0.0
  %761 = vmatprep.subr.mxu0 0.0
  %762 = vmatpush2.msra.mxu0 0.0
  %763 = vmatprep.subr.mxu0 0.0
  %764 = vmatpush2.msra.mxu0 0.0
  %765 = vmatprep.subr.mxu0 0.0
  %766 = vmatpush2.msra.mxu0 0.0
  %767 = vmatprep.mubr.f32.mxu0 0.0
  %768 = vmatmul.mubr.f32.gmra.mxu0 %v625
  %v769 = vpop.f32.mrf.mxu0
  %v770 = vadd.f32 0.0, %v769
  %v771 = vpop.f32.mrf.mxu0
  %v772 = vadd.f32 0.0, %v771
  %773 = vdwg.mxu0
  %v774 = vadd.f32 %v628, %v699
  %v775 = vadd.f32 %v629, %v701
  %v776 = vadd.f32 %v630, %v770
  %v777 = vadd.f32 %v631, %v772
  %v778 = vxor.u32 %v774, 2147483648
  %v779 = vmul.f32 %v778, 1.442695
  %v780 = vpow.pop %v779
  %v781 = vadd.f32 %v780, 1.0
  %v782 = vrcp.pop %v781
  %v783 = vmul.f32 1.0, %v782
  %v784 = vxor.u32 %v775, 2147483648
  %v785 = vmul.f32 %v784, 1.442695
  %v786 = vpow.pop %v785
  %v787 = vadd.f32 %v786, 1.0
  %v788 = vrcp.pop %v787
  %v789 = vmul.f32 1.0, %v788
  %v790 = vtanh.pop %v776
  %v791 = vxor.u32 %v777, 2147483648
  %v792 = vmul.f32 %v791, 1.442695
  %v793 = vpow.pop %v792
  %v794 = vadd.f32 %v793, 1.0
  %v795 = vrcp.pop %v794
  %v796 = vmul.f32 1.0, %v795
  %v797 = vmul.f32 %v789, %v623
  %v798 = vmul.f32 %v783, %v790
  %v799 = vadd.f32 %v797, %v798
  %v800 = vtanh.pop %v799
  %v801 = vmul.f32 %v796, %v800
  %s802 = scalar_lea.vmem %s6, 8
  %803 = vst [vmem:[%s802] sm:$0xff] %v801
  %s804 = scalar_lea.vmem [#allocation4], 64
  %v805 = vld [vmem:[%s804] sm:$0xff]
  %v806 = vld [vmem:[%s804 + $0x8] sm:$0xff]
  %v807 = vld [vmem:[%s804 + $0x10] sm:$0xff]
  %v808 = vld [vmem:[%s804 + $0x18] sm:$0xff]
  %809 = vmatprep.subr.mxu0 %v447
  %810 = vmatpush1.msra.mxu0 %v446
  %811 = vmatprep.subr.mxu0 %v443
  %812 = vmatpush1.msra.mxu0 %v442
  %813 = vmatprep.subr.mxu0 %v439
  %814 = vmatpush1.msra.mxu0 %v438
  %815 = vmatprep.subr.mxu0 %v435
  %816 = vmatpush1.msra.mxu0 %v434
  %817 = vmatprep.subr.mxu0 %v431
  %818 = vmatpush1.msra.mxu0 %v430
  %819 = vmatprep.subr.mxu0 %v427
  %820 = vmatpush1.msra.mxu0 %v426
  %821 = vmatprep.subr.mxu0 %v423
  %822 = vmatpush1.msra.mxu0 %v422
  %823 = vmatprep.subr.mxu0 %v419
  %824 = vmatpush1.msra.mxu0 %v418
  %825 = vmatprep.subr.mxu0 %v415
  %826 = vmatpush1.msra.mxu0 %v414
  %827 = vmatprep.subr.mxu0 %v411
  %828 = vmatpush1.msra.mxu0 %v410
  %829 = vmatprep.subr.mxu0 %v407
  %830 = vmatpush1.msra.mxu0 %v406
  %831 = vmatprep.subr.mxu0 %v403
  %832 = vmatpush1.msra.mxu0 %v402
  %833 = vmatprep.subr.mxu0 %v399
  %834 = vmatpush1.msra.mxu0 %v398
  %835 = vmatprep.subr.mxu0 %v395
  %836 = vmatpush1.msra.mxu0 %v394
  %837 = vmatprep.subr.mxu0 %v391
  %838 = vmatpush1.msra.mxu0 %v390
  %839 = vmatprep.subr.mxu0 %v387
  %840 = vmatpush1.msra.mxu0 %v386
  %841 = vmatprep.subr.mxu0 0.0
  %842 = vmatpush2.msra.mxu0 0.0
  %843 = vmatprep.subr.mxu0 0.0
  %844 = vmatpush2.msra.mxu0 0.0
  %845 = vmatprep.subr.mxu0 0.0
  %846 = vmatpush2.msra.mxu0 0.0
  %847 = vmatprep.subr.mxu0 0.0
  %848 = vmatpush2.msra.mxu0 0.0
  %849 = vmatprep.subr.mxu0 0.0
  %850 = vmatpush2.msra.mxu0 0.0
  %851 = vmatprep.subr.mxu0 0.0
  %852 = vmatpush2.msra.mxu0 0.0
  %853 = vmatprep.subr.mxu0 0.0
  %854 = vmatpush2.msra.mxu0 0.0
  %855 = vmatprep.subr.mxu0 0.0
  %856 = vmatpush2.msra.mxu0 0.0
  %857 = vmatprep.subr.mxu0 0.0
  %858 = vmatpush2.msra.mxu0 0.0
  %859 = vmatprep.subr.mxu0 0.0
  %860 = vmatpush2.msra.mxu0 0.0
  %861 = vmatprep.subr.mxu0 0.0
  %862 = vmatpush2.msra.mxu0 0.0
  %863 = vmatprep.subr.mxu0 0.0
  %864 = vmatpush2.msra.mxu0 0.0
  %865 = vmatprep.subr.mxu0 0.0
  %866 = vmatpush2.msra.mxu0 0.0
  %867 = vmatprep.subr.mxu0 0.0
  %868 = vmatpush2.msra.mxu0 0.0
  %869 = vmatprep.subr.mxu0 0.0
  %870 = vmatpush2.msra.mxu0 0.0
  %871 = vmatprep.subr.mxu0 0.0
  %872 = vmatpush2.msra.mxu0 0.0
  %873 = vmatprep.mubr.f32.mxu0 0.0
  %874 = vmatmul.mubr.f32.gmra.mxu0 %v801
  %v875 = vpop.f32.mrf.mxu0
  %v876 = vadd.f32 0.0, %v875
  %v877 = vpop.f32.mrf.mxu0
  %v878 = vadd.f32 0.0, %v877
  %879 = vdwg.mxu0
  %880 = vmatprep.subr.mxu0 %v449
  %881 = vmatpush1.msra.mxu0 %v448
  %882 = vmatprep.subr.mxu0 %v445
  %883 = vmatpush1.msra.mxu0 %v444
  %884 = vmatprep.subr.mxu0 %v441
  %885 = vmatpush1.msra.mxu0 %v440
  %886 = vmatprep.subr.mxu0 %v437
  %887 = vmatpush1.msra.mxu0 %v436
  %888 = vmatprep.subr.mxu0 %v433
  %889 = vmatpush1.msra.mxu0 %v432
  %890 = vmatprep.subr.mxu0 %v429
  %891 = vmatpush1.msra.mxu0 %v428
  %892 = vmatprep.subr.mxu0 %v425
  %893 = vmatpush1.msra.mxu0 %v424
  %894 = vmatprep.subr.mxu0 %v421
  %895 = vmatpush1.msra.mxu0 %v420
  %896 = vmatprep.subr.mxu0 %v417
  %897 = vmatpush1.msra.mxu0 %v416
  %898 = vmatprep.subr.mxu0 %v413
  %899 = vmatpush1.msra.mxu0 %v412
  %900 = vmatprep.subr.mxu0 %v409
  %901 = vmatpush1.msra.mxu0 %v408
  %902 = vmatprep.subr.mxu0 %v405
  %903 = vmatpush1.msra.mxu0 %v404
  %904 = vmatprep.subr.mxu0 %v401
  %905 = vmatpush1.msra.mxu0 %v400
  %906 = vmatprep.subr.mxu0 %v397
  %907 = vmatpush1.msra.mxu0 %v396
  %908 = vmatprep.subr.mxu0 %v393
  %909 = vmatpush1.msra.mxu0 %v392
  %910 = vmatprep.subr.mxu0 %v389
  %911 = vmatpush1.msra.mxu0 %v388
  %912 = vmatprep.subr.mxu0 0.0
  %913 = vmatpush2.msra.mxu0 0.0
  %914 = vmatprep.subr.mxu0 0.0
  %915 = vmatpush2.msra.mxu0 0.0
  %916 = vmatprep.subr.mxu0 0.0
  %917 = vmatpush2.msra.mxu0 0.0
  %918 = vmatprep.subr.mxu0 0.0
  %919 = vmatpush2.msra.mxu0 0.0
  %920 = vmatprep.subr.mxu0 0.0
  %921 = vmatpush2.msra.mxu0 0.0
  %922 = vmatprep.subr.mxu0 0.0
  %923 = vmatpush2.msra.mxu0 0.0
  %924 = vmatprep.subr.mxu0 0.0
  %925 = vmatpush2.msra.mxu0 0.0
  %926 = vmatprep.subr.mxu0 0.0
  %927 = vmatpush2.msra.mxu0 0.0
  %928 = vmatprep.subr.mxu0 0.0
  %929 = vmatpush2.msra.mxu0 0.0
  %930 = vmatprep.subr.mxu0 0.0
  %931 = vmatpush2.msra.mxu0 0.0
  %932 = vmatprep.subr.mxu0 0.0
  %933 = vmatpush2.msra.mxu0 0.0
  %934 = vmatprep.subr.mxu0 0.0
  %935 = vmatpush2.msra.mxu0 0.0
  %936 = vmatprep.subr.mxu0 0.0
  %937 = vmatpush2.msra.mxu0 0.0
  %938 = vmatprep.subr.mxu0 0.0
  %939 = vmatpush2.msra.mxu0 0.0
  %940 = vmatprep.subr.mxu0 0.0
  %941 = vmatpush2.msra.mxu0 0.0
  %942 = vmatprep.subr.mxu0 0.0
  %943 = vmatpush2.msra.mxu0 0.0
  %944 = vmatprep.mubr.f32.mxu0 0.0
  %945 = vmatmul.mubr.f32.gmra.mxu0 %v801
  %v946 = vpop.f32.mrf.mxu0
  %v947 = vadd.f32 0.0, %v946
  %v948 = vpop.f32.mrf.mxu0
  %v949 = vadd.f32 0.0, %v948
  %950 = vdwg.mxu0
  %v951 = vadd.f32 %v805, %v876
  %v952 = vadd.f32 %v806, %v878
  %v953 = vadd.f32 %v807, %v947
  %v954 = vadd.f32 %v808, %v949
  %v955 = vxor.u32 %v951, 2147483648
  %v956 = vmul.f32 %v955, 1.442695
  %v957 = vpow.pop %v956
  %v958 = vadd.f32 %v957, 1.0
  %v959 = vrcp.pop %v958
  %v960 = vmul.f32 1.0, %v959
  %v961 = vxor.u32 %v952, 2147483648
  %v962 = vmul.f32 %v961, 1.442695
  %v963 = vpow.pop %v962
  %v964 = vadd.f32 %v963, 1.0
  %v965 = vrcp.pop %v964
  %v966 = vmul.f32 1.0, %v965
  %v967 = vtanh.pop %v953
  %v968 = vxor.u32 %v954, 2147483648
  %v969 = vmul.f32 %v968, 1.442695
  %v970 = vpow.pop %v969
  %v971 = vadd.f32 %v970, 1.0
  %v972 = vrcp.pop %v971
  %v973 = vmul.f32 1.0, %v972
  %v974 = vmul.f32 %v966, %v799
  %v975 = vmul.f32 %v960, %v967
  %v976 = vadd.f32 %v974, %v975
  %v977 = vtanh.pop %v976
  %v978 = vmul.f32 %v973, %v977
  %s979 = scalar_lea.vmem %s6, 16
  %980 = vst [vmem:[%s979] sm:$0xff] %v978
  %s981 = scalar_lea.vmem [#allocation4], 96
  %v982 = vld [vmem:[%s981] sm:$0xff]
  %v983 = vld [vmem:[%s981 + $0x8] sm:$0xff]
  %v984 = vld [vmem:[%s981 + $0x10] sm:$0xff]
  %v985 = vld [vmem:[%s981 + $0x18] sm:$0xff]
  %986 = vmatprep.subr.mxu0 %v447
  %987 = vmatpush1.msra.mxu0 %v446
  %988 = vmatprep.subr.mxu0 %v443
  %989 = vmatpush1.msra.mxu0 %v442
  %990 = vmatprep.subr.mxu0 %v439
  %991 = vmatpush1.msra.mxu0 %v438
  %992 = vmatprep.subr.mxu0 %v435
  %993 = vmatpush1.msra.mxu0 %v434
  %994 = vmatprep.subr.mxu0 %v431
  %995 = vmatpush1.msra.mxu0 %v430
  %996 = vmatprep.subr.mxu0 %v427
  %997 = vmatpush1.msra.mxu0 %v426
  %998 = vmatprep.subr.mxu0 %v423
  %999 = vmatpush1.msra.mxu0 %v422
  %1000 = vmatprep.subr.mxu0 %v419
  %1001 = vmatpush1.msra.mxu0 %v418
  %1002 = vmatprep.subr.mxu0 %v415
  %1003 = vmatpush1.msra.mxu0 %v414
  %1004 = vmatprep.subr.mxu0 %v411
  %1005 = vmatpush1.msra.mxu0 %v410
  %1006 = vmatprep.subr.mxu0 %v407
  %1007 = vmatpush1.msra.mxu0 %v406
  %1008 = vmatprep.subr.mxu0 %v403
  %1009 = vmatpush1.msra.mxu0 %v402
  %1010 = vmatprep.subr.mxu0 %v399
  %1011 = vmatpush1.msra.mxu0 %v398
  %1012 = vmatprep.subr.mxu0 %v395
  %1013 = vmatpush1.msra.mxu0 %v394
  %1014 = vmatprep.subr.mxu0 %v391
  %1015 = vmatpush1.msra.mxu0 %v390
  %1016 = vmatprep.subr.mxu0 %v387
  %1017 = vmatpush1.msra.mxu0 %v386
  %1018 = vmatprep.subr.mxu0 0.0
  %1019 = vmatpush2.msra.mxu0 0.0
  %1020 = vmatprep.subr.mxu0 0.0
  %1021 = vmatpush2.msra.mxu0 0.0
  %1022 = vmatprep.subr.mxu0 0.0
  %1023 = vmatpush2.msra.mxu0 0.0
  %1024 = vmatprep.subr.mxu0 0.0
  %1025 = vmatpush2.msra.mxu0 0.0
  %1026 = vmatprep.subr.mxu0 0.0
  %1027 = vmatpush2.msra.mxu0 0.0
  %1028 = vmatprep.subr.mxu0 0.0
  %1029 = vmatpush2.msra.mxu0 0.0
  %1030 = vmatprep.subr.mxu0 0.0
  %1031 = vmatpush2.msra.mxu0 0.0
  %1032 = vmatprep.subr.mxu0 0.0
  %1033 = vmatpush2.msra.mxu0 0.0
  %1034 = vmatprep.subr.mxu0 0.0
  %1035 = vmatpush2.msra.mxu0 0.0
  %1036 = vmatprep.subr.mxu0 0.0
  %1037 = vmatpush2.msra.mxu0 0.0
  %1038 = vmatprep.subr.mxu0 0.0
  %1039 = vmatpush2.msra.mxu0 0.0
  %1040 = vmatprep.subr.mxu0 0.0
  %1041 = vmatpush2.msra.mxu0 0.0
  %1042 = vmatprep.subr.mxu0 0.0
  %1043 = vmatpush2.msra.mxu0 0.0
  %1044 = vmatprep.subr.mxu0 0.0
  %1045 = vmatpush2.msra.mxu0 0.0
  %1046 = vmatprep.subr.mxu0 0.0
  %1047 = vmatpush2.msra.mxu0 0.0
  %1048 = vmatprep.subr.mxu0 0.0
  %1049 = vmatpush2.msra.mxu0 0.0
  %1050 = vmatprep.mubr.f32.mxu0 0.0
  %1051 = vmatmul.mubr.f32.gmra.mxu0 %v978
  %v1052 = vpop.f32.mrf.mxu0
  %v1053 = vadd.f32 0.0, %v1052
  %v1054 = vpop.f32.mrf.mxu0
  %v1055 = vadd.f32 0.0, %v1054
  %1056 = vdwg.mxu0
  %1057 = vmatprep.subr.mxu0 %v449
  %1058 = vmatpush1.msra.mxu0 %v448
  %1059 = vmatprep.subr.mxu0 %v445
  %1060 = vmatpush1.msra.mxu0 %v444
  %1061 = vmatprep.subr.mxu0 %v441
  %1062 = vmatpush1.msra.mxu0 %v440
  %1063 = vmatprep.subr.mxu0 %v437
  %1064 = vmatpush1.msra.mxu0 %v436
  %1065 = vmatprep.subr.mxu0 %v433
  %1066 = vmatpush1.msra.mxu0 %v432
  %1067 = vmatprep.subr.mxu0 %v429
  %1068 = vmatpush1.msra.mxu0 %v428
  %1069 = vmatprep.subr.mxu0 %v425
  %1070 = vmatpush1.msra.mxu0 %v424
  %1071 = vmatprep.subr.mxu0 %v421
  %1072 = vmatpush1.msra.mxu0 %v420
  %1073 = vmatprep.subr.mxu0 %v417
  %1074 = vmatpush1.msra.mxu0 %v416
  %1075 = vmatprep.subr.mxu0 %v413
  %1076 = vmatpush1.msra.mxu0 %v412
  %1077 = vmatprep.subr.mxu0 %v409
  %1078 = vmatpush1.msra.mxu0 %v408
  %1079 = vmatprep.subr.mxu0 %v405
  %1080 = vmatpush1.msra.mxu0 %v404
  %1081 = vmatprep.subr.mxu0 %v401
  %1082 = vmatpush1.msra.mxu0 %v400
  %1083 = vmatprep.subr.mxu0 %v397
  %1084 = vmatpush1.msra.mxu0 %v396
  %1085 = vmatprep.subr.mxu0 %v393
  %1086 = vmatpush1.msra.mxu0 %v392
  %1087 = vmatprep.subr.mxu0 %v389
  %1088 = vmatpush1.msra.mxu0 %v388
  %1089 = vmatprep.subr.mxu0 0.0
  %1090 = vmatpush2.msra.mxu0 0.0
  %1091 = vmatprep.subr.mxu0 0.0
  %1092 = vmatpush2.msra.mxu0 0.0
  %1093 = vmatprep.subr.mxu0 0.0
  %1094 = vmatpush2.msra.mxu0 0.0
  %1095 = vmatprep.subr.mxu0 0.0
  %1096 = vmatpush2.msra.mxu0 0.0
  %1097 = vmatprep.subr.mxu0 0.0
  %1098 = vmatpush2.msra.mxu0 0.0
  %1099 = vmatprep.subr.mxu0 0.0
  %1100 = vmatpush2.msra.mxu0 0.0
  %1101 = vmatprep.subr.mxu0 0.0
  %1102 = vmatpush2.msra.mxu0 0.0
  %1103 = vmatprep.subr.mxu0 0.0
  %1104 = vmatpush2.msra.mxu0 0.0
  %1105 = vmatprep.subr.mxu0 0.0
  %1106 = vmatpush2.msra.mxu0 0.0
  %1107 = vmatprep.subr.mxu0 0.0
  %1108 = vmatpush2.msra.mxu0 0.0
  %1109 = vmatprep.subr.mxu0 0.0
  %1110 = vmatpush2.msra.mxu0 0.0
  %1111 = vmatprep.subr.mxu0 0.0
  %1112 = vmatpush2.msra.mxu0 0.0
  %1113 = vmatprep.subr.mxu0 0.0
  %1114 = vmatpush2.msra.mxu0 0.0
  %1115 = vmatprep.subr.mxu0 0.0
  %1116 = vmatpush2.msra.mxu0 0.0
  %1117 = vmatprep.subr.mxu0 0.0
  %1118 = vmatpush2.msra.mxu0 0.0
  %1119 = vmatprep.subr.mxu0 0.0
  %1120 = vmatpush2.msra.mxu0 0.0
  %1121 = vmatprep.mubr.f32.mxu0 0.0
  %1122 = vmatmul.mubr.f32.gmra.mxu0 %v978
  %v1123 = vpop.f32.mrf.mxu0
  %v1124 = vadd.f32 0.0, %v1123
  %v1125 = vpop.f32.mrf.mxu0
  %v1126 = vadd.f32 0.0, %v1125
  %1127 = vdwg.mxu0
  %v1128 = vadd.f32 %v982, %v1053
  %v1129 = vadd.f32 %v983, %v1055
  %v1130 = vadd.f32 %v984, %v1124
  %v1131 = vadd.f32 %v985, %v1126
  %v1132 = vxor.u32 %v1128, 2147483648
  %v1133 = vmul.f32 %v1132, 1.442695
  %v1134 = vpow.pop %v1133
  %v1135 = vadd.f32 %v1134, 1.0
  %v1136 = vrcp.pop %v1135
  %v1137 = vmul.f32 1.0, %v1136
  %v1138 = vxor.u32 %v1129, 2147483648
  %v1139 = vmul.f32 %v1138, 1.442695
  %v1140 = vpow.pop %v1139
  %v1141 = vadd.f32 %v1140, 1.0
  %v1142 = vrcp.pop %v1141
  %v1143 = vmul.f32 1.0, %v1142
  %v1144 = vtanh.pop %v1130
  %v1145 = vxor.u32 %v1131, 2147483648
  %v1146 = vmul.f32 %v1145, 1.442695
  %v1147 = vpow.pop %v1146
  %v1148 = vadd.f32 %v1147, 1.0
  %v1149 = vrcp.pop %v1148
  %v1150 = vmul.f32 1.0, %v1149
  %v1151 = vmul.f32 %v1143, %v976
  %v1152 = vmul.f32 %v1137, %v1144
  %v1153 = vadd.f32 %v1151, %v1152
  %v1154 = vtanh.pop %v1153
  %v1155 = vmul.f32 %v1150, %v1154
  %s1156 = scalar_lea.vmem %s6, 24
  %1157 = vst [vmem:[%s1156] sm:$0xff] %v1155
  %s1158 = scalar_lea.vmem [#allocation4], 128
  %v1159 = vld [vmem:[%s1158] sm:$0xff]
  %v1160 = vld [vmem:[%s1158 + $0x8] sm:$0xff]
  %v1161 = vld [vmem:[%s1158 + $0x10] sm:$0xff]
  %v1162 = vld [vmem:[%s1158 + $0x18] sm:$0xff]
  %1163 = vmatprep.subr.mxu0 %v447
  %1164 = vmatpush1.msra.mxu0 %v446
  %1165 = vmatprep.subr.mxu0 %v443
  %1166 = vmatpush1.msra.mxu0 %v442
  %1167 = vmatprep.subr.mxu0 %v439
  %1168 = vmatpush1.msra.mxu0 %v438
  %1169 = vmatprep.subr.mxu0 %v435
  %1170 = vmatpush1.msra.mxu0 %v434
  %1171 = vmatprep.subr.mxu0 %v431
  %1172 = vmatpush1.msra.mxu0 %v430
  %1173 = vmatprep.subr.mxu0 %v427
  %1174 = vmatpush1.msra.mxu0 %v426
  %1175 = vmatprep.subr.mxu0 %v423
  %1176 = vmatpush1.msra.mxu0 %v422
  %1177 = vmatprep.subr.mxu0 %v419
  %1178 = vmatpush1.msra.mxu0 %v418
  %1179 = vmatprep.subr.mxu0 %v415
  %1180 = vmatpush1.msra.mxu0 %v414
  %1181 = vmatprep.subr.mxu0 %v411
  %1182 = vmatpush1.msra.mxu0 %v410
  %1183 = vmatprep.subr.mxu0 %v407
  %1184 = vmatpush1.msra.mxu0 %v406
  %1185 = vmatprep.subr.mxu0 %v403
  %1186 = vmatpush1.msra.mxu0 %v402
  %1187 = vmatprep.subr.mxu0 %v399
  %1188 = vmatpush1.msra.mxu0 %v398
  %1189 = vmatprep.subr.mxu0 %v395
  %1190 = vmatpush1.msra.mxu0 %v394
  %1191 = vmatprep.subr.mxu0 %v391
  %1192 = vmatpush1.msra.mxu0 %v390
  %1193 = vmatprep.subr.mxu0 %v387
  %1194 = vmatpush1.msra.mxu0 %v386
  %1195 = vmatprep.subr.mxu0 0.0
  %1196 = vmatpush2.msra.mxu0 0.0
  %1197 = vmatprep.subr.mxu0 0.0
  %1198 = vmatpush2.msra.mxu0 0.0
  %1199 = vmatprep.subr.mxu0 0.0
  %1200 = vmatpush2.msra.mxu0 0.0
  %1201 = vmatprep.subr.mxu0 0.0
  %1202 = vmatpush2.msra.mxu0 0.0
  %1203 = vmatprep.subr.mxu0 0.0
  %1204 = vmatpush2.msra.mxu0 0.0
  %1205 = vmatprep.subr.mxu0 0.0
  %1206 = vmatpush2.msra.mxu0 0.0
  %1207 = vmatprep.subr.mxu0 0.0
  %1208 = vmatpush2.msra.mxu0 0.0
  %1209 = vmatprep.subr.mxu0 0.0
  %1210 = vmatpush2.msra.mxu0 0.0
  %1211 = vmatprep.subr.mxu0 0.0
  %1212 = vmatpush2.msra.mxu0 0.0
  %1213 = vmatprep.subr.mxu0 0.0
  %1214 = vmatpush2.msra.mxu0 0.0
  %1215 = vmatprep.subr.mxu0 0.0
  %1216 = vmatpush2.msra.mxu0 0.0
  %1217 = vmatprep.subr.mxu0 0.0
  %1218 = vmatpush2.msra.mxu0 0.0
  %1219 = vmatprep.subr.mxu0 0.0
  %1220 = vmatpush2.msra.mxu0 0.0
  %1221 = vmatprep.subr.mxu0 0.0
  %1222 = vmatpush2.msra.mxu0 0.0
  %1223 = vmatprep.subr.mxu0 0.0
  %1224 = vmatpush2.msra.mxu0 0.0
  %1225 = vmatprep.subr.mxu0 0.0
  %1226 = vmatpush2.msra.mxu0 0.0
  %1227 = vmatprep.mubr.f32.mxu0 0.0
  %1228 = vmatmul.mubr.f32.gmra.mxu0 %v1155
  %v1229 = vpop.f32.mrf.mxu0
  %v1230 = vadd.f32 0.0, %v1229
  %v1231 = vpop.f32.mrf.mxu0
  %v1232 = vadd.f32 0.0, %v1231
  %1233 = vdwg.mxu0
  %1234 = vmatprep.subr.mxu0 %v449
  %1235 = vmatpush1.msra.mxu0 %v448
  %1236 = vmatprep.subr.mxu0 %v445
  %1237 = vmatpush1.msra.mxu0 %v444
  %1238 = vmatprep.subr.mxu0 %v441
  %1239 = vmatpush1.msra.mxu0 %v440
  %1240 = vmatprep.subr.mxu0 %v437
  %1241 = vmatpush1.msra.mxu0 %v436
  %1242 = vmatprep.subr.mxu0 %v433
  %1243 = vmatpush1.msra.mxu0 %v432
  %1244 = vmatprep.subr.mxu0 %v429
  %1245 = vmatpush1.msra.mxu0 %v428
  %1246 = vmatprep.subr.mxu0 %v425
  %1247 = vmatpush1.msra.mxu0 %v424
  %1248 = vmatprep.subr.mxu0 %v421
  %1249 = vmatpush1.msra.mxu0 %v420
  %1250 = vmatprep.subr.mxu0 %v417
  %1251 = vmatpush1.msra.mxu0 %v416
  %1252 = vmatprep.subr.mxu0 %v413
  %1253 = vmatpush1.msra.mxu0 %v412
  %1254 = vmatprep.subr.mxu0 %v409
  %1255 = vmatpush1.msra.mxu0 %v408
  %1256 = vmatprep.subr.mxu0 %v405
  %1257 = vmatpush1.msra.mxu0 %v404
  %1258 = vmatprep.subr.mxu0 %v401
  %1259 = vmatpush1.msra.mxu0 %v400
  %1260 = vmatprep.subr.mxu0 %v397
  %1261 = vmatpush1.msra.mxu0 %v396
  %1262 = vmatprep.subr.mxu0 %v393
  %1263 = vmatpush1.msra.mxu0 %v392
  %1264 = vmatprep.subr.mxu0 %v389
  %1265 = vmatpush1.msra.mxu0 %v388
  %1266 = vmatprep.subr.mxu0 0.0
  %1267 = vmatpush2.msra.mxu0 0.0
  %1268 = vmatprep.subr.mxu0 0.0
  %1269 = vmatpush2.msra.mxu0 0.0
  %1270 = vmatprep.subr.mxu0 0.0
  %1271 = vmatpush2.msra.mxu0 0.0
  %1272 = vmatprep.subr.mxu0 0.0
  %1273 = vmatpush2.msra.mxu0 0.0
  %1274 = vmatprep.subr.mxu0 0.0
  %1275 = vmatpush2.msra.mxu0 0.0
  %1276 = vmatprep.subr.mxu0 0.0
  %1277 = vmatpush2.msra.mxu0 0.0
  %1278 = vmatprep.subr.mxu0 0.0
  %1279 = vmatpush2.msra.mxu0 0.0
  %1280 = vmatprep.subr.mxu0 0.0
  %1281 = vmatpush2.msra.mxu0 0.0
  %1282 = vmatprep.subr.mxu0 0.0
  %1283 = vmatpush2.msra.mxu0 0.0
  %1284 = vmatprep.subr.mxu0 0.0
  %1285 = vmatpush2.msra.mxu0 0.0
  %1286 = vmatprep.subr.mxu0 0.0
  %1287 = vmatpush2.msra.mxu0 0.0
  %1288 = vmatprep.subr.mxu0 0.0
  %1289 = vmatpush2.msra.mxu0 0.0
  %1290 = vmatprep.subr.mxu0 0.0
  %1291 = vmatpush2.msra.mxu0 0.0
  %1292 = vmatprep.subr.mxu0 0.0
  %1293 = vmatpush2.msra.mxu0 0.0
  %1294 = vmatprep.subr.mxu0 0.0
  %1295 = vmatpush2.msra.mxu0 0.0
  %1296 = vmatprep.subr.mxu0 0.0
  %1297 = vmatpush2.msra.mxu0 0.0
  %1298 = vmatprep.mubr.f32.mxu0 0.0
  %1299 = vmatmul.mubr.f32.gmra.mxu0 %v1155
  %v1300 = vpop.f32.mrf.mxu0
  %v1301 = vadd.f32 0.0, %v1300
  %v1302 = vpop.f32.mrf.mxu0
  %v1303 = vadd.f32 0.0, %v1302
  %1304 = vdwg.mxu0
  %v1305 = vadd.f32 %v1159, %v1230
  %v1306 = vadd.f32 %v1160, %v1232
  %v1307 = vadd.f32 %v1161, %v1301
  %v1308 = vadd.f32 %v1162, %v1303
  %v1309 = vxor.u32 %v1305, 2147483648
  %v1310 = vmul.f32 %v1309, 1.442695
  %v1311 = vpow.pop %v1310
  %v1312 = vadd.f32 %v1311, 1.0
  %v1313 = vrcp.pop %v1312
  %v1314 = vmul.f32 1.0, %v1313
  %v1315 = vxor.u32 %v1306, 2147483648
  %v1316 = vmul.f32 %v1315, 1.442695
  %v1317 = vpow.pop %v1316
  %v1318 = vadd.f32 %v1317, 1.0
  %v1319 = vrcp.pop %v1318
  %v1320 = vmul.f32 1.0, %v1319
  %v1321 = vtanh.pop %v1307
  %v1322 = vxor.u32 %v1308, 2147483648
  %v1323 = vmul.f32 %v1322, 1.442695
  %v1324 = vpow.pop %v1323
  %v1325 = vadd.f32 %v1324, 1.0
  %v1326 = vrcp.pop %v1325
  %v1327 = vmul.f32 1.0, %v1326
  %v1328 = vmul.f32 %v1320, %v1153
  %v1329 = vmul.f32 %v1314, %v1321
  %v1330 = vadd.f32 %v1328, %v1329
  %v1331 = vtanh.pop %v1330
  %v1332 = vmul.f32 %v1327, %v1331
  %s1333 = scalar_lea.vmem %s6, 32
  %1334 = vst [vmem:[%s1333] sm:$0xff] %v1332
  %s1335 = scalar_lea.vmem [#allocation4], 160
  %v1336 = vld [vmem:[%s1335] sm:$0xff]
  %v1337 = vld [vmem:[%s1335 + $0x8] sm:$0xff]
  %v1338 = vld [vmem:[%s1335 + $0x10] sm:$0xff]
  %v1339 = vld [vmem:[%s1335 + $0x18] sm:$0xff]
  %1340 = vmatprep.subr.mxu0 %v447
  %1341 = vmatpush1.msra.mxu0 %v446
  %1342 = vmatprep.subr.mxu0 %v443
  %1343 = vmatpush1.msra.mxu0 %v442
  %1344 = vmatprep.subr.mxu0 %v439
  %1345 = vmatpush1.msra.mxu0 %v438
  %1346 = vmatprep.subr.mxu0 %v435
  %1347 = vmatpush1.msra.mxu0 %v434
  %1348 = vmatprep.subr.mxu0 %v431
  %1349 = vmatpush1.msra.mxu0 %v430
  %1350 = vmatprep.subr.mxu0 %v427
  %1351 = vmatpush1.msra.mxu0 %v426
  %1352 = vmatprep.subr.mxu0 %v423
  %1353 = vmatpush1.msra.mxu0 %v422
  %1354 = vmatprep.subr.mxu0 %v419
  %1355 = vmatpush1.msra.mxu0 %v418
  %1356 = vmatprep.subr.mxu0 %v415
  %1357 = vmatpush1.msra.mxu0 %v414
  %1358 = vmatprep.subr.mxu0 %v411
  %1359 = vmatpush1.msra.mxu0 %v410
  %1360 = vmatprep.subr.mxu0 %v407
  %1361 = vmatpush1.msra.mxu0 %v406
  %1362 = vmatprep.subr.mxu0 %v403
  %1363 = vmatpush1.msra.mxu0 %v402
  %1364 = vmatprep.subr.mxu0 %v399
  %1365 = vmatpush1.msra.mxu0 %v398
  %1366 = vmatprep.subr.mxu0 %v395
  %1367 = vmatpush1.msra.mxu0 %v394
  %1368 = vmatprep.subr.mxu0 %v391
  %1369 = vmatpush1.msra.mxu0 %v390
  %1370 = vmatprep.subr.mxu0 %v387
  %1371 = vmatpush1.msra.mxu0 %v386
  %1372 = vmatprep.subr.mxu0 0.0
  %1373 = vmatpush2.msra.mxu0 0.0
  %1374 = vmatprep.subr.mxu0 0.0
  %1375 = vmatpush2.msra.mxu0 0.0
  %1376 = vmatprep.subr.mxu0 0.0
  %1377 = vmatpush2.msra.mxu0 0.0
  %1378 = vmatprep.subr.mxu0 0.0
  %1379 = vmatpush2.msra.mxu0 0.0
  %1380 = vmatprep.subr.mxu0 0.0
  %1381 = vmatpush2.msra.mxu0 0.0
  %1382 = vmatprep.subr.mxu0 0.0
  %1383 = vmatpush2.msra.mxu0 0.0
  %1384 = vmatprep.subr.mxu0 0.0
  %1385 = vmatpush2.msra.mxu0 0.0
  %1386 = vmatprep.subr.mxu0 0.0
  %1387 = vmatpush2.msra.mxu0 0.0
  %1388 = vmatprep.subr.mxu0 0.0
  %1389 = vmatpush2.msra.mxu0 0.0
  %1390 = vmatprep.subr.mxu0 0.0
  %1391 = vmatpush2.msra.mxu0 0.0
  %1392 = vmatprep.subr.mxu0 0.0
  %1393 = vmatpush2.msra.mxu0 0.0
  %1394 = vmatprep.subr.mxu0 0.0
  %1395 = vmatpush2.msra.mxu0 0.0
  %1396 = vmatprep.subr.mxu0 0.0
  %1397 = vmatpush2.msra.mxu0 0.0
  %1398 = vmatprep.subr.mxu0 0.0
  %1399 = vmatpush2.msra.mxu0 0.0
  %1400 = vmatprep.subr.mxu0 0.0
  %1401 = vmatpush2.msra.mxu0 0.0
  %1402 = vmatprep.subr.mxu0 0.0
  %1403 = vmatpush2.msra.mxu0 0.0
  %1404 = vmatprep.mubr.f32.mxu0 0.0
  %1405 = vmatmul.mubr.f32.gmra.mxu0 %v1332
  %v1406 = vpop.f32.mrf.mxu0
  %v1407 = vadd.f32 0.0, %v1406
  %v1408 = vpop.f32.mrf.mxu0
  %v1409 = vadd.f32 0.0, %v1408
  %1410 = vdwg.mxu0
  %1411 = vmatprep.subr.mxu0 %v449
  %1412 = vmatpush1.msra.mxu0 %v448
  %1413 = vmatprep.subr.mxu0 %v445
  %1414 = vmatpush1.msra.mxu0 %v444
  %1415 = vmatprep.subr.mxu0 %v441
  %1416 = vmatpush1.msra.mxu0 %v440
  %1417 = vmatprep.subr.mxu0 %v437
  %1418 = vmatpush1.msra.mxu0 %v436
  %1419 = vmatprep.subr.mxu0 %v433
  %1420 = vmatpush1.msra.mxu0 %v432
  %1421 = vmatprep.subr.mxu0 %v429
  %1422 = vmatpush1.msra.mxu0 %v428
  %1423 = vmatprep.subr.mxu0 %v425
  %1424 = vmatpush1.msra.mxu0 %v424
  %1425 = vmatprep.subr.mxu0 %v421
  %1426 = vmatpush1.msra.mxu0 %v420
  %1427 = vmatprep.subr.mxu0 %v417
  %1428 = vmatpush1.msra.mxu0 %v416
  %1429 = vmatprep.subr.mxu0 %v413
  %1430 = vmatpush1.msra.mxu0 %v412
  %1431 = vmatprep.subr.mxu0 %v409
  %1432 = vmatpush1.msra.mxu0 %v408
  %1433 = vmatprep.subr.mxu0 %v405
  %1434 = vmatpush1.msra.mxu0 %v404
  %1435 = vmatprep.subr.mxu0 %v401
  %1436 = vmatpush1.msra.mxu0 %v400
  %1437 = vmatprep.subr.mxu0 %v397
  %1438 = vmatpush1.msra.mxu0 %v396
  %1439 = vmatprep.subr.mxu0 %v393
  %1440 = vmatpush1.msra.mxu0 %v392
  %1441 = vmatprep.subr.mxu0 %v389
  %1442 = vmatpush1.msra.mxu0 %v388
  %1443 = vmatprep.subr.mxu0 0.0
  %1444 = vmatpush2.msra.mxu0 0.0
  %1445 = vmatprep.subr.mxu0 0.0
  %1446 = vmatpush2.msra.mxu0 0.0
  %1447 = vmatprep.subr.mxu0 0.0
  %1448 = vmatpush2.msra.mxu0 0.0
  %1449 = vmatprep.subr.mxu0 0.0
  %1450 = vmatpush2.msra.mxu0 0.0
  %1451 = vmatprep.subr.mxu0 0.0
  %1452 = vmatpush2.msra.mxu0 0.0
  %1453 = vmatprep.subr.mxu0 0.0
  %1454 = vmatpush2.msra.mxu0 0.0
  %1455 = vmatprep.subr.mxu0 0.0
  %1456 = vmatpush2.msra.mxu0 0.0
  %1457 = vmatprep.subr.mxu0 0.0
  %1458 = vmatpush2.msra.mxu0 0.0
  %1459 = vmatprep.subr.mxu0 0.0
  %1460 = vmatpush2.msra.mxu0 0.0
  %1461 = vmatprep.subr.mxu0 0.0
  %1462 = vmatpush2.msra.mxu0 0.0
  %1463 = vmatprep.subr.mxu0 0.0
  %1464 = vmatpush2.msra.mxu0 0.0
  %1465 = vmatprep.subr.mxu0 0.0
  %1466 = vmatpush2.msra.mxu0 0.0
  %1467 = vmatprep.subr.mxu0 0.0
  %1468 = vmatpush2.msra.mxu0 0.0
  %1469 = vmatprep.subr.mxu0 0.0
  %1470 = vmatpush2.msra.mxu0 0.0
  %1471 = vmatprep.subr.mxu0 0.0
  %1472 = vmatpush2.msra.mxu0 0.0
  %1473 = vmatprep.subr.mxu0 0.0
  %1474 = vmatpush2.msra.mxu0 0.0
  %1475 = vmatprep.mubr.f32.mxu0 0.0
  %1476 = vmatmul.mubr.f32.gmra.mxu0 %v1332
  %v1477 = vpop.f32.mrf.mxu0
  %v1478 = vadd.f32 0.0, %v1477
  %v1479 = vpop.f32.mrf.mxu0
  %v1480 = vadd.f32 0.0, %v1479
  %1481 = vdwg.mxu0
  %v1482 = vadd.f32 %v1336, %v1407
  %v1483 = vadd.f32 %v1337, %v1409
  %v1484 = vadd.f32 %v1338, %v1478
  %v1485 = vadd.f32 %v1339, %v1480
  %v1486 = vxor.u32 %v1482, 2147483648
  %v1487 = vmul.f32 %v1486, 1.442695
  %v1488 = vpow.pop %v1487
  %v1489 = vadd.f32 %v1488, 1.0
  %v1490 = vrcp.pop %v1489
  %v1491 = vmul.f32 1.0, %v1490
  %v1492 = vxor.u32 %v1483, 2147483648
  %v1493 = vmul.f32 %v1492, 1.442695
  %v1494 = vpow.pop %v1493
  %v1495 = vadd.f32 %v1494, 1.0
  %v1496 = vrcp.pop %v1495
  %v1497 = vmul.f32 1.0, %v1496
  %v1498 = vtanh.pop %v1484
  %v1499 = vxor.u32 %v1485, 2147483648
  %v1500 = vmul.f32 %v1499, 1.442695
  %v1501 = vpow.pop %v1500
  %v1502 = vadd.f32 %v1501, 1.0
  %v1503 = vrcp.pop %v1502
  %v1504 = vmul.f32 1.0, %v1503
  %v1505 = vmul.f32 %v1497, %v1330
  %v1506 = vmul.f32 %v1491, %v1498
  %v1507 = vadd.f32 %v1505, %v1506
  %v1508 = vtanh.pop %v1507
  %v1509 = vmul.f32 %v1504, %v1508
  %s1510 = scalar_lea.vmem %s6, 40
  %1511 = vst [vmem:[%s1510] sm:$0xff] %v1509
  %s1512 = scalar_lea.vmem [#allocation4], 192
  %v1513 = vld [vmem:[%s1512] sm:$0xff]
  %v1514 = vld [vmem:[%s1512 + $0x8] sm:$0xff]
  %v1515 = vld [vmem:[%s1512 + $0x10] sm:$0xff]
  %v1516 = vld [vmem:[%s1512 + $0x18] sm:$0xff]
  %1517 = vmatprep.subr.mxu0 %v447
  %1518 = vmatpush1.msra.mxu0 %v446
  %1519 = vmatprep.subr.mxu0 %v443
  %1520 = vmatpush1.msra.mxu0 %v442
  %1521 = vmatprep.subr.mxu0 %v439
  %1522 = vmatpush1.msra.mxu0 %v438
  %1523 = vmatprep.subr.mxu0 %v435
  %1524 = vmatpush1.msra.mxu0 %v434
  %1525 = vmatprep.subr.mxu0 %v431
  %1526 = vmatpush1.msra.mxu0 %v430
  %1527 = vmatprep.subr.mxu0 %v427
  %1528 = vmatpush1.msra.mxu0 %v426
  %1529 = vmatprep.subr.mxu0 %v423
  %1530 = vmatpush1.msra.mxu0 %v422
  %1531 = vmatprep.subr.mxu0 %v419
  %1532 = vmatpush1.msra.mxu0 %v418
  %1533 = vmatprep.subr.mxu0 %v415
  %1534 = vmatpush1.msra.mxu0 %v414
  %1535 = vmatprep.subr.mxu0 %v411
  %1536 = vmatpush1.msra.mxu0 %v410
  %1537 = vmatprep.subr.mxu0 %v407
  %1538 = vmatpush1.msra.mxu0 %v406
  %1539 = vmatprep.subr.mxu0 %v403
  %1540 = vmatpush1.msra.mxu0 %v402
  %1541 = vmatprep.subr.mxu0 %v399
  %1542 = vmatpush1.msra.mxu0 %v398
  %1543 = vmatprep.subr.mxu0 %v395
  %1544 = vmatpush1.msra.mxu0 %v394
  %1545 = vmatprep.subr.mxu0 %v391
  %1546 = vmatpush1.msra.mxu0 %v390
  %1547 = vmatprep.subr.mxu0 %v387
  %1548 = vmatpush1.msra.mxu0 %v386
  %1549 = vmatprep.subr.mxu0 0.0
  %1550 = vmatpush2.msra.mxu0 0.0
  %1551 = vmatprep.subr.mxu0 0.0
  %1552 = vmatpush2.msra.mxu0 0.0
  %1553 = vmatprep.subr.mxu0 0.0
  %1554 = vmatpush2.msra.mxu0 0.0
  %1555 = vmatprep.subr.mxu0 0.0
  %1556 = vmatpush2.msra.mxu0 0.0
  %1557 = vmatprep.subr.mxu0 0.0
  %1558 = vmatpush2.msra.mxu0 0.0
  %1559 = vmatprep.subr.mxu0 0.0
  %1560 = vmatpush2.msra.mxu0 0.0
  %1561 = vmatprep.subr.mxu0 0.0
  %1562 = vmatpush2.msra.mxu0 0.0
  %1563 = vmatprep.subr.mxu0 0.0
  %1564 = vmatpush2.msra.mxu0 0.0
  %1565 = vmatprep.subr.mxu0 0.0
  %1566 = vmatpush2.msra.mxu0 0.0
  %1567 = vmatprep.subr.mxu0 0.0
  %1568 = vmatpush2.msra.mxu0 0.0
  %1569 = vmatprep.subr.mxu0 0.0
  %1570 = vmatpush2.msra.mxu0 0.0
  %1571 = vmatprep.subr.mxu0 0.0
  %1572 = vmatpush2.msra.mxu0 0.0
  %1573 = vmatprep.subr.mxu0 0.0
  %1574 = vmatpush2.msra.mxu0 0.0
  %1575 = vmatprep.subr.mxu0 0.0
  %1576 = vmatpush2.msra.mxu0 0.0
  %1577 = vmatprep.subr.mxu0 0.0
  %1578 = vmatpush2.msra.mxu0 0.0
  %1579 = vmatprep.subr.mxu0 0.0
  %1580 = vmatpush2.msra.mxu0 0.0
  %1581 = vmatprep.mubr.f32.mxu0 0.0
  %1582 = vmatmul.mubr.f32.gmra.mxu0 %v1509
  %v1583 = vpop.f32.mrf.mxu0
  %v1584 = vadd.f32 0.0, %v1583
  %v1585 = vpop.f32.mrf.mxu0
  %v1586 = vadd.f32 0.0, %v1585
  %1587 = vdwg.mxu0
  %1588 = vmatprep.subr.mxu0 %v449
  %1589 = vmatpush1.msra.mxu0 %v448
  %1590 = vmatprep.subr.mxu0 %v445
  %1591 = vmatpush1.msra.mxu0 %v444
  %1592 = vmatprep.subr.mxu0 %v441
  %1593 = vmatpush1.msra.mxu0 %v440
  %1594 = vmatprep.subr.mxu0 %v437
  %1595 = vmatpush1.msra.mxu0 %v436
  %1596 = vmatprep.subr.mxu0 %v433
  %1597 = vmatpush1.msra.mxu0 %v432
  %1598 = vmatprep.subr.mxu0 %v429
  %1599 = vmatpush1.msra.mxu0 %v428
  %1600 = vmatprep.subr.mxu0 %v425
  %1601 = vmatpush1.msra.mxu0 %v424
  %1602 = vmatprep.subr.mxu0 %v421
  %1603 = vmatpush1.msra.mxu0 %v420
  %1604 = vmatprep.subr.mxu0 %v417
  %1605 = vmatpush1.msra.mxu0 %v416
  %1606 = vmatprep.subr.mxu0 %v413
  %1607 = vmatpush1.msra.mxu0 %v412
  %1608 = vmatprep.subr.mxu0 %v409
  %1609 = vmatpush1.msra.mxu0 %v408
  %1610 = vmatprep.subr.mxu0 %v405
  %1611 = vmatpush1.msra.mxu0 %v404
  %1612 = vmatprep.subr.mxu0 %v401
  %1613 = vmatpush1.msra.mxu0 %v400
  %1614 = vmatprep.subr.mxu0 %v397
  %1615 = vmatpush1.msra.mxu0 %v396
  %1616 = vmatprep.subr.mxu0 %v393
  %1617 = vmatpush1.msra.mxu0 %v392
  %1618 = vmatprep.subr.mxu0 %v389
  %1619 = vmatpush1.msra.mxu0 %v388
  %1620 = vmatprep.subr.mxu0 0.0
  %1621 = vmatpush2.msra.mxu0 0.0
  %1622 = vmatprep.subr.mxu0 0.0
  %1623 = vmatpush2.msra.mxu0 0.0
  %1624 = vmatprep.subr.mxu0 0.0
  %1625 = vmatpush2.msra.mxu0 0.0
  %1626 = vmatprep.subr.mxu0 0.0
  %1627 = vmatpush2.msra.mxu0 0.0
  %1628 = vmatprep.subr.mxu0 0.0
  %1629 = vmatpush2.msra.mxu0 0.0
  %1630 = vmatprep.subr.mxu0 0.0
  %1631 = vmatpush2.msra.mxu0 0.0
  %1632 = vmatprep.subr.mxu0 0.0
  %1633 = vmatpush2.msra.mxu0 0.0
  %1634 = vmatprep.subr.mxu0 0.0
  %1635 = vmatpush2.msra.mxu0 0.0
  %1636 = vmatprep.subr.mxu0 0.0
  %1637 = vmatpush2.msra.mxu0 0.0
  %1638 = vmatprep.subr.mxu0 0.0
  %1639 = vmatpush2.msra.mxu0 0.0
  %1640 = vmatprep.subr.mxu0 0.0
  %1641 = vmatpush2.msra.mxu0 0.0
  %1642 = vmatprep.subr.mxu0 0.0
  %1643 = vmatpush2.msra.mxu0 0.0
  %1644 = vmatprep.subr.mxu0 0.0
  %1645 = vmatpush2.msra.mxu0 0.0
  %1646 = vmatprep.subr.mxu0 0.0
  %1647 = vmatpush2.msra.mxu0 0.0
  %1648 = vmatprep.subr.mxu0 0.0
  %1649 = vmatpush2.msra.mxu0 0.0
  %1650 = vmatprep.subr.mxu0 0.0
  %1651 = vmatpush2.msra.mxu0 0.0
  %1652 = vmatprep.mubr.f32.mxu0 0.0
  %1653 = vmatmul.mubr.f32.gmra.mxu0 %v1509
  %v1654 = vpop.f32.mrf.mxu0
  %v1655 = vadd.f32 0.0, %v1654
  %v1656 = vpop.f32.mrf.mxu0
  %v1657 = vadd.f32 0.0, %v1656
  %1658 = vdwg.mxu0
  %v1659 = vadd.f32 %v1513, %v1584
  %v1660 = vadd.f32 %v1514, %v1586
  %v1661 = vadd.f32 %v1515, %v1655
  %v1662 = vadd.f32 %v1516, %v1657
  %v1663 = vxor.u32 %v1659, 2147483648
  %v1664 = vmul.f32 %v1663, 1.442695
  %v1665 = vpow.pop %v1664
  %v1666 = vadd.f32 %v1665, 1.0
  %v1667 = vrcp.pop %v1666
  %v1668 = vmul.f32 1.0, %v1667
  %v1669 = vxor.u32 %v1660, 2147483648
  %v1670 = vmul.f32 %v1669, 1.442695
  %v1671 = vpow.pop %v1670
  %v1672 = vadd.f32 %v1671, 1.0
  %v1673 = vrcp.pop %v1672
  %v1674 = vmul.f32 1.0, %v1673
  %v1675 = vtanh.pop %v1661
  %v1676 = vxor.u32 %v1662, 2147483648
  %v1677 = vmul.f32 %v1676, 1.442695
  %v1678 = vpow.pop %v1677
  %v1679 = vadd.f32 %v1678, 1.0
  %v1680 = vrcp.pop %v1679
  %v1681 = vmul.f32 1.0, %v1680
  %v1682 = vmul.f32 %v1674, %v1507
  %v1683 = vmul.f32 %v1668, %v1675
  %v1684 = vadd.f32 %v1682, %v1683
  %v1685 = vtanh.pop %v1684
  %v1686 = vmul.f32 %v1681, %v1685
  %s1687 = scalar_lea.vmem %s6, 48
  %1688 = vst [vmem:[%s1687] sm:$0xff] %v1686
  %s1689 = scalar_lea.vmem [#allocation4], 224
  %v1690 = vld [vmem:[%s1689] sm:$0xff]
  %v1691 = vld [vmem:[%s1689 + $0x8] sm:$0xff]
  %v1692 = vld [vmem:[%s1689 + $0x10] sm:$0xff]
  %v1693 = vld [vmem:[%s1689 + $0x18] sm:$0xff]
  %1694 = vmatprep.subr.mxu0 %v447
  %1695 = vmatpush1.msra.mxu0 %v446
  %1696 = vmatprep.subr.mxu0 %v443
  %1697 = vmatpush1.msra.mxu0 %v442
  %1698 = vmatprep.subr.mxu0 %v439
  %1699 = vmatpush1.msra.mxu0 %v438
  %1700 = vmatprep.subr.mxu0 %v435
  %1701 = vmatpush1.msra.mxu0 %v434
  %1702 = vmatprep.subr.mxu0 %v431
  %1703 = vmatpush1.msra.mxu0 %v430
  %1704 = vmatprep.subr.mxu0 %v427
  %1705 = vmatpush1.msra.mxu0 %v426
  %1706 = vmatprep.subr.mxu0 %v423
  %1707 = vmatpush1.msra.mxu0 %v422
  %1708 = vmatprep.subr.mxu0 %v419
  %1709 = vmatpush1.msra.mxu0 %v418
  %1710 = vmatprep.subr.mxu0 %v415
  %1711 = vmatpush1.msra.mxu0 %v414
  %1712 = vmatprep.subr.mxu0 %v411
  %1713 = vmatpush1.msra.mxu0 %v410
  %1714 = vmatprep.subr.mxu0 %v407
  %1715 = vmatpush1.msra.mxu0 %v406
  %1716 = vmatprep.subr.mxu0 %v403
  %1717 = vmatpush1.msra.mxu0 %v402
  %1718 = vmatprep.subr.mxu0 %v399
  %1719 = vmatpush1.msra.mxu0 %v398
  %1720 = vmatprep.subr.mxu0 %v395
  %1721 = vmatpush1.msra.mxu0 %v394
  %1722 = vmatprep.subr.mxu0 %v391
  %1723 = vmatpush1.msra.mxu0 %v390
  %1724 = vmatprep.subr.mxu0 %v387
  %1725 = vmatpush1.msra.mxu0 %v386
  %1726 = vmatprep.subr.mxu0 0.0
  %1727 = vmatpush2.msra.mxu0 0.0
  %1728 = vmatprep.subr.mxu0 0.0
  %1729 = vmatpush2.msra.mxu0 0.0
  %1730 = vmatprep.subr.mxu0 0.0
  %1731 = vmatpush2.msra.mxu0 0.0
  %1732 = vmatprep.subr.mxu0 0.0
  %1733 = vmatpush2.msra.mxu0 0.0
  %1734 = vmatprep.subr.mxu0 0.0
  %1735 = vmatpush2.msra.mxu0 0.0
  %1736 = vmatprep.subr.mxu0 0.0
  %1737 = vmatpush2.msra.mxu0 0.0
  %1738 = vmatprep.subr.mxu0 0.0
  %1739 = vmatpush2.msra.mxu0 0.0
  %1740 = vmatprep.subr.mxu0 0.0
  %1741 = vmatpush2.msra.mxu0 0.0
  %1742 = vmatprep.subr.mxu0 0.0
  %1743 = vmatpush2.msra.mxu0 0.0
  %1744 = vmatprep.subr.mxu0 0.0
  %1745 = vmatpush2.msra.mxu0 0.0
  %1746 = vmatprep.subr.mxu0 0.0
  %1747 = vmatpush2.msra.mxu0 0.0
  %1748 = vmatprep.subr.mxu0 0.0
  %1749 = vmatpush2.msra.mxu0 0.0
  %1750 = vmatprep.subr.mxu0 0.0
  %1751 = vmatpush2.msra.mxu0 0.0
  %1752 = vmatprep.subr.mxu0 0.0
  %1753 = vmatpush2.msra.mxu0 0.0
  %1754 = vmatprep.subr.mxu0 0.0
  %1755 = vmatpush2.msra.mxu0 0.0
  %1756 = vmatprep.subr.mxu0 0.0
  %1757 = vmatpush2.msra.mxu0 0.0
  %1758 = vmatprep.mubr.f32.mxu0 0.0
  %1759 = vmatmul.mubr.f32.gmra.mxu0 %v1686
  %v1760 = vpop.f32.mrf.mxu0
  %v1761 = vadd.f32 0.0, %v1760
  %v1762 = vpop.f32.mrf.mxu0
  %v1763 = vadd.f32 0.0, %v1762
  %1764 = vdwg.mxu0
  %1765 = vmatprep.subr.mxu0 %v449
  %1766 = vmatpush1.msra.mxu0 %v448
  %1767 = vmatprep.subr.mxu0 %v445
  %1768 = vmatpush1.msra.mxu0 %v444
  %1769 = vmatprep.subr.mxu0 %v441
  %1770 = vmatpush1.msra.mxu0 %v440
  %1771 = vmatprep.subr.mxu0 %v437
  %1772 = vmatpush1.msra.mxu0 %v436
  %1773 = vmatprep.subr.mxu0 %v433
  %1774 = vmatpush1.msra.mxu0 %v432
  %1775 = vmatprep.subr.mxu0 %v429
  %1776 = vmatpush1.msra.mxu0 %v428
  %1777 = vmatprep.subr.mxu0 %v425
  %1778 = vmatpush1.msra.mxu0 %v424
  %1779 = vmatprep.subr.mxu0 %v421
  %1780 = vmatpush1.msra.mxu0 %v420
  %1781 = vmatprep.subr.mxu0 %v417
  %1782 = vmatpush1.msra.mxu0 %v416
  %1783 = vmatprep.subr.mxu0 %v413
  %1784 = vmatpush1.msra.mxu0 %v412
  %1785 = vmatprep.subr.mxu0 %v409
  %1786 = vmatpush1.msra.mxu0 %v408
  %1787 = vmatprep.subr.mxu0 %v405
  %1788 = vmatpush1.msra.mxu0 %v404
  %1789 = vmatprep.subr.mxu0 %v401
  %1790 = vmatpush1.msra.mxu0 %v400
  %1791 = vmatprep.subr.mxu0 %v397
  %1792 = vmatpush1.msra.mxu0 %v396
  %1793 = vmatprep.subr.mxu0 %v393
  %1794 = vmatpush1.msra.mxu0 %v392
  %1795 = vmatprep.subr.mxu0 %v389
  %1796 = vmatpush1.msra.mxu0 %v388
  %1797 = vmatprep.subr.mxu0 0.0
  %1798 = vmatpush2.msra.mxu0 0.0
  %1799 = vmatprep.subr.mxu0 0.0
  %1800 = vmatpush2.msra.mxu0 0.0
  %1801 = vmatprep.subr.mxu0 0.0
  %1802 = vmatpush2.msra.mxu0 0.0
  %1803 = vmatprep.subr.mxu0 0.0
  %1804 = vmatpush2.msra.mxu0 0.0
  %1805 = vmatprep.subr.mxu0 0.0
  %1806 = vmatpush2.msra.mxu0 0.0
  %1807 = vmatprep.subr.mxu0 0.0
  %1808 = vmatpush2.msra.mxu0 0.0
  %1809 = vmatprep.subr.mxu0 0.0
  %1810 = vmatpush2.msra.mxu0 0.0
  %1811 = vmatprep.subr.mxu0 0.0
  %1812 = vmatpush2.msra.mxu0 0.0
  %1813 = vmatprep.subr.mxu0 0.0
  %1814 = vmatpush2.msra.mxu0 0.0
  %1815 = vmatprep.subr.mxu0 0.0
  %1816 = vmatpush2.msra.mxu0 0.0
  %1817 = vmatprep.subr.mxu0 0.0
  %1818 = vmatpush2.msra.mxu0 0.0
  %1819 = vmatprep.subr.mxu0 0.0
  %1820 = vmatpush2.msra.mxu0 0.0
  %1821 = vmatprep.subr.mxu0 0.0
  %1822 = vmatpush2.msra.mxu0 0.0
  %1823 = vmatprep.subr.mxu0 0.0
  %1824 = vmatpush2.msra.mxu0 0.0
  %1825 = vmatprep.subr.mxu0 0.0
  %1826 = vmatpush2.msra.mxu0 0.0
  %1827 = vmatprep.subr.mxu0 0.0
  %1828 = vmatpush2.msra.mxu0 0.0
  %1829 = vmatprep.mubr.f32.mxu0 0.0
  %1830 = vmatmul.mubr.f32.gmra.mxu0 %v1686
  %v1831 = vpop.f32.mrf.mxu0
  %v1832 = vadd.f32 0.0, %v1831
  %v1833 = vpop.f32.mrf.mxu0
  %v1834 = vadd.f32 0.0, %v1833
  %1835 = vdwg.mxu0
  %v1836 = vadd.f32 %v1690, %v1761
  %v1837 = vadd.f32 %v1691, %v1763
  %v1838 = vadd.f32 %v1692, %v1832
  %v1839 = vadd.f32 %v1693, %v1834
  %v1840 = vxor.u32 %v1836, 2147483648
  %v1841 = vmul.f32 %v1840, 1.442695
  %v1842 = vpow.pop %v1841
  %v1843 = vadd.f32 %v1842, 1.0
  %v1844 = vrcp.pop %v1843
  %v1845 = vmul.f32 1.0, %v1844
  %v1846 = vxor.u32 %v1837, 2147483648
  %v1847 = vmul.f32 %v1846, 1.442695
  %v1848 = vpow.pop %v1847
  %v1849 = vadd.f32 %v1848, 1.0
  %v1850 = vrcp.pop %v1849
  %v1851 = vmul.f32 1.0, %v1850
  %v1852 = vtanh.pop %v1838
  %v1853 = vxor.u32 %v1839, 2147483648
  %v1854 = vmul.f32 %v1853, 1.442695
  %v1855 = vpow.pop %v1854
  %v1856 = vadd.f32 %v1855, 1.0
  %v1857 = vrcp.pop %v1856
  %v1858 = vmul.f32 1.0, %v1857
  %v1859 = vmul.f32 %v1851, %v1684
  %v1860 = vmul.f32 %v1845, %v1852
  %v1861 = vadd.f32 %v1859, %v1860
  %v1862 = vtanh.pop %v1861
  %v1863 = vmul.f32 %v1858, %v1862
  %s1864 = scalar_lea.vmem %s6, 56
  %1865 = vst [vmem:[%s1864] sm:$0xff] %v1863
  %1866 = vst [vmem:[#allocation2] sm:$0xff] %v1863
  %1867 = vst [vmem:[#allocation3] sm:$0xff] %v1861
  %1868 = vst [vmem:[%s7] sm:$0xff] %v1863
  %1869 = vst [vmem:[%s8] sm:$0xff] %v1861
  // Predicated region
  $region30: #{_lambda_.4} parent=0 // pred_check
    _
  $region31: #{_lambda_.4} parent=0 // pred_check_branch
    %1871 = sbr.rel (0) target = $region33
  $region32: #{_lambda_.4} parent=0 // pred_region
    _
  $region33: #{_lambda_.4} parent=0 // pred_fallthru
    _
  // Predicated region
  $region34: #{_lambda_.4} parent=0 // pred_check
    _
  $region35: #{_lambda_.4} parent=0 // pred_check_branch
    %1873 = sbr.rel (0) target = $region37
  $region36: #{_lambda_.4} parent=0 // pred_region
    _
  $region37: #{_lambda_.4} parent=0 // pred_fallthru
    _
  // Predicated region
  $region38: #{_lambda_.4} parent=0 // pred_check
    _
  $region39: #{_lambda_.4} parent=0 // pred_check_branch
    %1875 = sbr.rel (0) target = $region41
  $region40: #{_lambda_.4} parent=0 // pred_region
    _
  $region41: #{_lambda_.4} parent=0 // pred_fallthru
    _
  // Predicated region
  $region42: #{_lambda_.4} parent=0 // pred_check
    _
  $region43: #{_lambda_.4} parent=0 // pred_check_branch
    %1877 = sbr.rel (0) target = $region45
  $region44: #{_lambda_.4} parent=0 // pred_region
    _
  $region45: #{_lambda_.4} parent=0 // pred_fallthru
    _
  // Predicated region
  $region46: #{_lambda_.4} parent=0 // pred_check
    _
  $region47: #{_lambda_.4} parent=0 // pred_check_branch
    %1879 = sbr.rel (0) target = $region49
  $region48: #{_lambda_.4} parent=0 // pred_region
    _
  $region49: #{_lambda_.4} parent=0 // pred_fallthru
    _
  // Predicated region
  $region50: #{_lambda_.4} parent=0 // pred_check
    _
  $region51: #{_lambda_.4} parent=0 // pred_check_branch
    %1881 = sbr.rel (0) target = $region53
  $region52: #{_lambda_.4} parent=0 // pred_region
    _
  $region53: #{_lambda_.4} parent=0 // pred_fallthru
    _

</llo_original>
